<compile_context>
chip_gen: v7x
topology: tpu7x:2x2x1
jax: 0.10.0
libtpu: 0.0.40
codegen_flags: <defaults>
</compile_context>

<pallas_src>
import functools

import jax
import jax.numpy as jnp
from jax import lax
from jax.experimental import pallas as pl
from jax.experimental.pallas import tpu as pltpu


def _round_up(x, mult):
    return ((x + mult - 1) // mult) * mult


def _masked_gram_kernel(num_classes, xn_ref, xa_ref, oh_ref,
                        gn_out_ref, ga_out_ref, gn_acc, ga_acc):
    """Grid = (split s, row-tile t).  For each row tile, accumulate for every
    class j:  Gn[j] += (x_nat * pi_j)^T x_nat  and  Ga[j] += (x_adv * pi_j)^T x_adv
    into f32 VMEM scratch; write the per-split partial Grams once at the last t."""
    t = pl.program_id(1)

    @pl.when(t == 0)
    def _():
        gn_acc[...] = jnp.zeros_like(gn_acc)
        ga_acc[...] = jnp.zeros_like(ga_acc)

    xn = xn_ref[...]                                   # (tm, pp) matmul dtype
    xa = xa_ref[...]
    contract_rows = (((0,), (0,)), ((), ()))           # X^T X without an X^T input

    for j in range(num_classes):                       # k is tiny (binary) -> unrolled
        mask = oh_ref[:, j:j + 1].astype(xn.dtype)     # (tm, 1) membership of class j
        gn_acc[j] += lax.dot_general(xn * mask, xn, contract_rows,
                                     preferred_element_type=jnp.float32)
        ga_acc[j] += lax.dot_general(xa * mask, xa, contract_rows,
                                     preferred_element_type=jnp.float32)

    @pl.when(t == pl.num_programs(1) - 1)
    def _():
        gn_out_ref[0] = gn_acc[...]
        ga_out_ref[0] = ga_acc[...]


def classwise_grams(x_nat, x_adv, y, num_classes, *, row_tile=512, n_splits=2,
                    matmul_dtype=jnp.bfloat16):
    """Returns (Gn, Ga, counts) with Gn_j = X_nat^T diag(Pi_j) X_nat (f32, (k,p,p)),
    Ga_j likewise for X_adv, and counts_j = trace(Pi_j)."""
    m, p = x_nat.shape
    k = int(num_classes)
    tm = int(row_tile)
    pp = max(128, _round_up(p, 128))          # lane-dense / MXU-friendly feature width

    n_tiles = -(-m // tm)
    tiles_per_split = -(-n_tiles // n_splits)
    m_pad = n_splits * tiles_per_split * tm   # zero rows contribute nothing to the Grams

    xn = jnp.pad(x_nat.astype(matmul_dtype), ((0, m_pad - m), (0, pp - p)))
    xa = jnp.pad(x_adv.astype(matmul_dtype), ((0, m_pad - m), (0, pp - p)))
    onehot = jax.nn.one_hot(y, k, dtype=jnp.float32)                   # (m, k)
    counts = jnp.sum(onehot, axis=0)                                   # trPi_j
    oh = jnp.pad(onehot, ((0, m_pad - m), (0, 0)))                     # pad rows -> zero mask

    def x_map(s, t):
        return (s * tiles_per_split + t, 0)

    def out_map(s, t):
        return (s, 0, 0, 0)

    kernel = functools.partial(_masked_gram_kernel, k)

    gn_part, ga_part = pl.pallas_call(
        kernel,
        out_shape=(
            jax.ShapeDtypeStruct((n_splits, k, pp, pp), jnp.float32),
            jax.ShapeDtypeStruct((n_splits, k, pp, pp), jnp.float32),
        ),
        grid=(n_splits, tiles_per_split),
        in_specs=[
            pl.BlockSpec((tm, pp), x_map),       # X_nat row tiles
            pl.BlockSpec((tm, pp), x_map),       # X_adv row tiles
            pl.BlockSpec((tm, k), x_map),        # one-hot memberships (tiny f32)
        ],
        out_specs=(
            pl.BlockSpec((1, k, pp, pp), out_map),
            pl.BlockSpec((1, k, pp, pp), out_map),
        ),
        scratch_shapes=[
            pltpu.VMEM((k, pp, pp), jnp.float32),   # Gram accumulators (nat)
            pltpu.VMEM((k, pp, pp), jnp.float32),   # Gram accumulators (adv)
        ],
        compiler_params=pltpu.CompilerParams(
            dimension_semantics=("parallel", "arbitrary"),   # splits across TCs (v7x)
        ),
    )(xn, xa, oh)

    # Combine the per-split partials; padded feature columns are all-zero rows/cols
    # of the Gram, slice back to (p, p).
    gn = jnp.sum(gn_part, axis=0)[:, :p, :p]
    ga = jnp.sum(ga_part, axis=0)[:, :p, :p]
    return gn, ga, counts


def _classwise_grams_reference(x_nat, x_adv, y, num_classes):
    """Plain-XLA reference path (also sensible for tiny shapes)."""
    k = int(num_classes)
    x_nat = x_nat.astype(jnp.float32)
    x_adv = x_adv.astype(jnp.float32)
    pi = jax.nn.one_hot(y, k, dtype=jnp.float32)
    hp = lax.Precision.HIGHEST
    gn = jnp.einsum("mk,mp,mq->kpq", pi, x_nat, x_nat, precision=hp)
    ga = jnp.einsum("mk,mp,mq->kpq", pi, x_adv, x_adv, precision=hp)
    return gn, ga, pi.sum(axis=0)


def _logdet_spd(a):
    # TODO(synk): logdet (Cholesky/LU factorization) has no Pallas TPU primitive;
    # the matrices are I + c * X^T X (SPD), so use a Cholesky-based logdet in XLA.
    chol = jnp.linalg.cholesky(a)
    diag = jnp.diagonal(chol, axis1=-2, axis2=-1)
    return 2.0 * jnp.sum(jnp.log(diag), axis=-1)


def _loss_from_grams(gn, ga, counts, p, eps, gam2):
    tr_pi = counts.astype(jnp.float32) + 1e-8
    coef = p / (2.0 * tr_pi * eps)                         # (k,)
    eye = jnp.eye(gn.shape[-1], dtype=jnp.float32)
    e = eye[None] + coef[:, None, None] * (gn + ga)        # == (Cn + Ca) / 2
    cn = eye[None] + 2.0 * coef[:, None, None] * gn
    ca = eye[None] + 2.0 * coef[:, None, None] * ga
    expand_term = jnp.sum(_logdet_spd(e)) / 2.0
    compress_term = jnp.sum(_logdet_spd(cn) + _logdet_spd(ca)) / 2.0 / 2.0
    total_loss_empi = gam2 * (-expand_term) + compress_term
    return total_loss_empi, expand_term, compress_term


@functools.partial(jax.jit, static_argnames=(
    "num_classes", "gam1", "gam2", "eps", "use_pallas", "row_tile", "matmul_dtype"))
def mcr2_binary_classwise_forward(x_nat, x_adv, y, num_classes,
                                  gam1=1.0, gam2=1.0, eps=0.01,
                                  use_pallas=True, row_tile=512,
                                  matmul_dtype=jnp.bfloat16):
    """Reproduces MCR2_binary_classwise.forward (gam1 unused there, kept for parity)."""
    del gam1
    k = int(num_classes)
    p = x_nat.shape[1]
    if use_pallas:
        gn, ga, counts = classwise_grams(
            x_nat, x_adv, y, k, row_tile=row_tile, matmul_dtype=matmul_dtype)
    else:
        gn, ga, counts = _classwise_grams_reference(x_nat, x_adv, y, k)
    return _loss_from_grams(gn, ga, counts, float(p), float(eps), gam2)


if __name__ == "__main__":
    key = jax.random.PRNGKey(0)
    k1, k2, k3 = jax.random.split(key, 3)

    m, p, num_classes = 8, 32, 2          # samples, feature dim, binary classes
    x_nat = jax.random.normal(k1, (m, p), dtype=jnp.float32)
    x_adv = x_nat + 0.1 * jax.random.normal(k2, (m, p), dtype=jnp.float32)
    y = jax.random.randint(k3, (m,), 0, num_classes)

    # Default Pallas path (bf16 MXU inputs, f32 accumulation).
    total_bf, expand_bf, compress_bf = mcr2_binary_classwise_forward(
        x_nat, x_adv, y, num_classes=num_classes, gam1=1.0, gam2=1.0, eps=0.01,
        use_pallas=True)
    total_bf = jax.block_until_ready(total_bf)
    _ = float(expand_bf), float(compress_bf)      # .item() equivalents

    # f32 Pallas path (tight structural check) and plain-XLA reference path.
    total_f32, expand_f32, compress_f32 = mcr2_binary_classwise_forward(
        x_nat, x_adv, y, num_classes=num_classes, gam1=1.0, gam2=1.0, eps=0.01,
        use_pallas=True, matmul_dtype=jnp.float32)
    total_ref, expand_ref, compress_ref = mcr2_binary_classwise_forward(
        x_nat, x_adv, y, num_classes=num_classes, gam1=1.0, gam2=1.0, eps=0.01,
        use_pallas=False)
    jax.block_until_ready((total_f32, total_ref))

    scale = abs(float(expand_ref)) + abs(float(compress_ref)) + 1.0

    tight = 5e-3   # f32 Pallas kernel vs f32 HIGHEST-precision XLA reference
    assert jnp.allclose(expand_f32, expand_ref, rtol=tight, atol=tight * scale)
    assert jnp.allclose(compress_f32, compress_ref, rtol=tight, atol=tight * scale)
    assert jnp.allclose(total_f32, total_ref, rtol=tight, atol=tight * scale)

    loose = 3e-2   # bf16 MXU inputs change Gram numerics slightly
    assert jnp.allclose(expand_bf, expand_ref, rtol=loose, atol=loose * scale)
    assert jnp.allclose(compress_bf, compress_ref, rtol=loose, atol=loose * scale)
    assert jnp.allclose(total_bf, total_ref, rtol=loose, atol=loose * scale)

    print("KERNEL_OK")
</pallas_src>

<mosaic_0001>
module attributes {stable_mosaic.version = 11 : i64} {
  func.func @_masked_gram_kernel(%arg0: i32, %arg1: i32, %arg2: memref<512x128xbf16, #tpu.memory_space<vmem>>, %arg3: memref<512x128xbf16, #tpu.memory_space<vmem>>, %arg4: memref<512x2xf32, #tpu.memory_space<vmem>>, %arg5: memref<1x2x128x128xf32, #tpu.memory_space<vmem>>, %arg6: memref<1x2x128x128xf32, #tpu.memory_space<vmem>>, %arg7: memref<2x128x128xf32, #tpu.memory_space<vmem>>, %arg8: memref<2x128x128xf32, #tpu.memory_space<vmem>>) attributes {dimension_semantics = [#tpu.dimension_semantics<parallel>, #tpu.dimension_semantics<arbitrary>], iteration_bounds = array<i64: 2, 1>, scalar_prefetch = 0 : i64, scratch_operands = 2 : i64, tpu.core_type = #tpu.core_type<tc>, window_params = [{transform_indices = @transform_0, window_bounds = array<i64: 512, 128>}, {transform_indices = @transform_1, window_bounds = array<i64: 512, 128>}, {transform_indices = @transform_2, window_bounds = array<i64: 512, 2>}, {transform_indices = @transform_3, window_bounds = array<i64: 1, 2, 128, 128>}, {transform_indices = @transform_4, window_bounds = array<i64: 1, 2, 128, 128>}]} {
    %c0_i32 = arith.constant 0 : i32
    %0 = arith.cmpi eq, %arg1, %c0_i32 : i32
    %1 = arith.extui %0 : i1 to i32
    %c0_i32_0 = arith.constant 0 : i32
    %2 = arith.cmpi ne, %1, %c0_i32_0 : i32
    scf.if %2 {
      %cst_36 = arith.constant 0.000000e+00 : f32
      %48 = vector.broadcast %cst_36 : f32 to vector<2x128x128xf32>
      %c0_37 = arith.constant 0 : index
      %c0_38 = arith.constant 0 : index
      %c0_39 = arith.constant 0 : index
      %49 = vector.load %arg7[%c0_37, %c0_38, %c0_39] : memref<2x128x128xf32, #tpu.memory_space<vmem>>, vector<2x128x128xf32>
      tpu.vector_store %arg7[%c0_37, %c0_38, %c0_39], %48 {strides = array<i32>} : memref<2x128x128xf32, #tpu.memory_space<vmem>>, vector<2x128x128xf32>,
      %cst_40 = arith.constant 0.000000e+00 : f32
      %50 = vector.broadcast %cst_40 : f32 to vector<2x128x128xf32>
      %c0_41 = arith.constant 0 : index
      %c0_42 = arith.constant 0 : index
      %c0_43 = arith.constant 0 : index
      %51 = vector.load %arg8[%c0_41, %c0_42, %c0_43] : memref<2x128x128xf32, #tpu.memory_space<vmem>>, vector<2x128x128xf32>
      tpu.vector_store %arg8[%c0_41, %c0_42, %c0_43], %50 {strides = array<i32>} : memref<2x128x128xf32, #tpu.memory_space<vmem>>, vector<2x128x128xf32>,
    } else {
    }
    %c0 = arith.constant 0 : index
    %c0_1 = arith.constant 0 : index
    %3 = vector.load %arg2[%c0, %c0_1] : memref<512x128xbf16, #tpu.memory_space<vmem>>, vector<512x128xbf16>
    %c0_2 = arith.constant 0 : index
    %c0_3 = arith.constant 0 : index
    %4 = vector.load %arg3[%c0_2, %c0_3] : memref<512x128xbf16, #tpu.memory_space<vmem>>, vector<512x128xbf16>
    %c0_4 = arith.constant 0 : index
    %c0_5 = arith.constant 0 : index
    %5 = vector.load %arg4[%c0_4, %c0_5] : memref<512x2xf32, #tpu.memory_space<vmem>>, vector<512x1xf32>
    %6 = arith.truncf %5 : vector<512x1xf32> to vector<512x1xbf16>
    %c0_6 = arith.constant 0 : index
    %c0_7 = arith.constant 0 : index
    %c0_8 = arith.constant 0 : index
    %7 = vector.load %arg7[%c0_6, %c0_7, %c0_8] : memref<2x128x128xf32, #tpu.memory_space<vmem>>, vector<1x128x128xf32>
    %8 = vector.shape_cast %7 : vector<1x128x128xf32> to vector<128x128xf32>
    %9 = vector.broadcast %6 : vector<512x1xbf16> to vector<512x128xbf16>
    %10 = arith.mulf %3, %9 : vector<512x128xbf16>
    %cst = arith.constant dense<0.000000e+00> : vector<128x128xf32>
    %11 = tpu.matmul %10, %3, %cst {dimension_numbers = #tpu.dot_dimension_numbers<[0], [0], [1], [1], [0, 1, 1, 1], [], []>} : vector<512x128xbf16>, vector<512x128xbf16>, vector<128x128xf32> -> vector<128x128xf32>
    %12 = arith.addf %8, %11 : vector<128x128xf32>
    %c0_9 = arith.constant 0 : index
    %c0_10 = arith.constant 0 : index
    %c0_11 = arith.constant 0 : index
    %13 = vector.load %arg7[%c0_9, %c0_10, %c0_11] : memref<2x128x128xf32, #tpu.memory_space<vmem>>, vector<1x128x128xf32>
    %14 = vector.shape_cast %13 : vector<1x128x128xf32> to vector<128x128xf32>
    %15 = vector.shape_cast %12 : vector<128x128xf32> to vector<1x128x128xf32>
    tpu.vector_store %arg7[%c0_9, %c0_10, %c0_11], %15 {strides = array<i32>} : memref<2x128x128xf32, #tpu.memory_space<vmem>>, vector<1x128x128xf32>,
    %c0_12 = arith.constant 0 : index
    %c0_13 = arith.constant 0 : index
    %c0_14 = arith.constant 0 : index
    %16 = vector.load %arg8[%c0_12, %c0_13, %c0_14] : memref<2x128x128xf32, #tpu.memory_space<vmem>>, vector<1x128x128xf32>
    %17 = vector.shape_cast %16 : vector<1x128x128xf32> to vector<128x128xf32>
    %18 = vector.broadcast %6 : vector<512x1xbf16> to vector<512x128xbf16>
    %19 = arith.mulf %4, %18 : vector<512x128xbf16>
    %cst_15 = arith.constant dense<0.000000e+00> : vector<128x128xf32>
    %20 = tpu.matmul %19, %4, %cst_15 {dimension_numbers = #tpu.dot_dimension_numbers<[0], [0], [1], [1], [0, 1, 1, 1], [], []>} : vector<512x128xbf16>, vector<512x128xbf16>, vector<128x128xf32> -> vector<128x128xf32>
    %21 = arith.addf %17, %20 : vector<128x128xf32>
    %c0_16 = arith.constant 0 : index
    %c0_17 = arith.constant 0 : index
    %c0_18 = arith.constant 0 : index
    %22 = vector.load %arg8[%c0_16, %c0_17, %c0_18] : memref<2x128x128xf32, #tpu.memory_space<vmem>>, vector<1x128x128xf32>
    %23 = vector.shape_cast %22 : vector<1x128x128xf32> to vector<128x128xf32>
    %24 = vector.shape_cast %21 : vector<128x128xf32> to vector<1x128x128xf32>
    tpu.vector_store %arg8[%c0_16, %c0_17, %c0_18], %24 {strides = array<i32>} : memref<2x128x128xf32, #tpu.memory_space<vmem>>, vector<1x128x128xf32>,
    %c0_19 = arith.constant 0 : index
    %c1 = arith.constant 1 : index
    %25 = vector.load %arg4[%c0_19, %c1] : memref<512x2xf32, #tpu.memory_space<vmem>>, vector<512x1xf32>
    %26 = arith.truncf %25 : vector<512x1xf32> to vector<512x1xbf16>
    %c1_20 = arith.constant 1 : index
    %c0_21 = arith.constant 0 : index
    %c0_22 = arith.constant 0 : index
    %27 = vector.load %arg7[%c1_20, %c0_21, %c0_22] : memref<2x128x128xf32, #tpu.memory_space<vmem>>, vector<1x128x128xf32>
    %28 = vector.shape_cast %27 : vector<1x128x128xf32> to vector<128x128xf32>
    %29 = vector.broadcast %26 : vector<512x1xbf16> to vector<512x128xbf16>
    %30 = arith.mulf %3, %29 : vector<512x128xbf16>
    %cst_23 = arith.constant dense<0.000000e+00> : vector<128x128xf32>
    %31 = tpu.matmul %30, %3, %cst_23 {dimension_numbers = #tpu.dot_dimension_numbers<[0], [0], [1], [1], [0, 1, 1, 1], [], []>} : vector<512x128xbf16>, vector<512x128xbf16>, vector<128x128xf32> -> vector<128x128xf32>
    %32 = arith.addf %28, %31 : vector<128x128xf32>
    %c1_24 = arith.constant 1 : index
    %c0_25 = arith.constant 0 : index
    %c0_26 = arith.constant 0 : index
    %33 = vector.load %arg7[%c1_24, %c0_25, %c0_26] : memref<2x128x128xf32, #tpu.memory_space<vmem>>, vector<1x128x128xf32>
    %34 = vector.shape_cast %33 : vector<1x128x128xf32> to vector<128x128xf32>
    %35 = vector.shape_cast %32 : vector<128x128xf32> to vector<1x128x128xf32>
    tpu.vector_store %arg7[%c1_24, %c0_25, %c0_26], %35 {strides = array<i32>} : memref<2x128x128xf32, #tpu.memory_space<vmem>>, vector<1x128x128xf32>,
    %c1_27 = arith.constant 1 : index
    %c0_28 = arith.constant 0 : index
    %c0_29 = arith.constant 0 : index
    %36 = vector.load %arg8[%c1_27, %c0_28, %c0_29] : memref<2x128x128xf32, #tpu.memory_space<vmem>>, vector<1x128x128xf32>
    %37 = vector.shape_cast %36 : vector<1x128x128xf32> to vector<128x128xf32>
    %38 = vector.broadcast %26 : vector<512x1xbf16> to vector<512x128xbf16>
    %39 = arith.mulf %4, %38 : vector<512x128xbf16>
    %cst_30 = arith.constant dense<0.000000e+00> : vector<128x128xf32>
    %40 = tpu.matmul %39, %4, %cst_30 {dimension_numbers = #tpu.dot_dimension_numbers<[0], [0], [1], [1], [0, 1, 1, 1], [], []>} : vector<512x128xbf16>, vector<512x128xbf16>, vector<128x128xf32> -> vector<128x128xf32>
    %41 = arith.addf %37, %40 : vector<128x128xf32>
    %c1_31 = arith.constant 1 : index
    %c0_32 = arith.constant 0 : index
    %c0_33 = arith.constant 0 : index
    %42 = vector.load %arg8[%c1_31, %c0_32, %c0_33] : memref<2x128x128xf32, #tpu.memory_space<vmem>>, vector<1x128x128xf32>
    %43 = vector.shape_cast %42 : vector<1x128x128xf32> to vector<128x128xf32>
    %44 = vector.shape_cast %41 : vector<128x128xf32> to vector<1x128x128xf32>
    tpu.vector_store %arg8[%c1_31, %c0_32, %c0_33], %44 {strides = array<i32>} : memref<2x128x128xf32, #tpu.memory_space<vmem>>, vector<1x128x128xf32>,
    %c0_i32_34 = arith.constant 0 : i32
    %45 = arith.cmpi eq, %arg1, %c0_i32_34 : i32
    %46 = arith.extui %45 : i1 to i32
    %c0_i32_35 = arith.constant 0 : i32
    %47 = arith.cmpi ne, %46, %c0_i32_35 : i32
    scf.if %47 {
      %c0_36 = arith.constant 0 : index
      %c0_37 = arith.constant 0 : index
      %c0_38 = arith.constant 0 : index
      %48 = vector.load %arg7[%c0_36, %c0_37, %c0_38] : memref<2x128x128xf32, #tpu.memory_space<vmem>>, vector<2x128x128xf32>
      %c0_39 = arith.constant 0 : index
      %c0_40 = arith.constant 0 : index
      %c0_41 = arith.constant 0 : index
      %c0_42 = arith.constant 0 : index
      %49 = vector.load %arg5[%c0_39, %c0_40, %c0_41, %c0_42] : memref<1x2x128x128xf32, #tpu.memory_space<vmem>>, vector<1x2x128x128xf32>
      %50 = vector.shape_cast %49 : vector<1x2x128x128xf32> to vector<2x128x128xf32>
      %51 = vector.shape_cast %48 : vector<2x128x128xf32> to vector<1x2x128x128xf32>
      tpu.vector_store %arg5[%c0_39, %c0_40, %c0_41, %c0_42], %51 {strides = array<i32>} : memref<1x2x128x128xf32, #tpu.memory_space<vmem>>, vector<1x2x128x128xf32>,
      %c0_43 = arith.constant 0 : index
      %c0_44 = arith.constant 0 : index
      %c0_45 = arith.constant 0 : index
      %52 = vector.load %arg8[%c0_43, %c0_44, %c0_45] : memref<2x128x128xf32, #tpu.memory_space<vmem>>, vector<2x128x128xf32>
      %c0_46 = arith.constant 0 : index
      %c0_47 = arith.constant 0 : index
      %c0_48 = arith.constant 0 : index
      %c0_49 = arith.constant 0 : index
      %53 = vector.load %arg6[%c0_46, %c0_47, %c0_48, %c0_49] : memref<1x2x128x128xf32, #tpu.memory_space<vmem>>, vector<1x2x128x128xf32>
      %54 = vector.shape_cast %53 : vector<1x2x128x128xf32> to vector<2x128x128xf32>
      %55 = vector.shape_cast %52 : vector<2x128x128xf32> to vector<1x2x128x128xf32>
      tpu.vector_store %arg6[%c0_46, %c0_47, %c0_48, %c0_49], %55 {strides = array<i32>} : memref<1x2x128x128xf32, #tpu.memory_space<vmem>>, vector<1x2x128x128xf32>,
    } else {
    }
    return
  }
  func.func @transform_0(%arg0: i32, %arg1: i32) -> (i32, i32) {
    %c1_i32 = arith.constant 1 : i32
    %0 = arith.muli %arg0, %c1_i32 : i32
    %1 = arith.addi %0, %arg1 : i32
    %c0_i32 = arith.constant 0 : i32
    %c0_i32_0 = arith.constant 0 : i32
    return %1, %c0_i32 : i32, i32
  }
  func.func @transform_1(%arg0: i32, %arg1: i32) -> (i32, i32) {
    %c1_i32 = arith.constant 1 : i32
    %0 = arith.muli %arg0, %c1_i32 : i32
    %1 = arith.addi %0, %arg1 : i32
    %c0_i32 = arith.constant 0 : i32
    %c0_i32_0 = arith.constant 0 : i32
    return %1, %c0_i32 : i32, i32
  }
  func.func @transform_2(%arg0: i32, %arg1: i32) -> (i32, i32) {
    %c1_i32 = arith.constant 1 : i32
    %0 = arith.muli %arg0, %c1_i32 : i32
    %1 = arith.addi %0, %arg1 : i32
    %c0_i32 = arith.constant 0 : i32
    %c0_i32_0 = arith.constant 0 : i32
    return %1, %c0_i32 : i32, i32
  }
  func.func @transform_3(%arg0: i32, %arg1: i32) -> (i32, i32, i32, i32) {
    %c0_i32 = arith.constant 0 : i32
    %c0_i32_0 = arith.constant 0 : i32
    %c0_i32_1 = arith.constant 0 : i32
    %c0_i32_2 = arith.constant 0 : i32
    return %arg0, %c0_i32, %c0_i32_0, %c0_i32_1 : i32, i32, i32, i32
  }
  func.func @transform_4(%arg0: i32, %arg1: i32) -> (i32, i32, i32, i32) {
    %c0_i32 = arith.constant 0 : i32
    %c0_i32_0 = arith.constant 0 : i32
    %c0_i32_1 = arith.constant 0 : i32
    %c0_i32_2 = arith.constant 0 : i32
    return %arg0, %c0_i32, %c0_i32_0, %c0_i32_1 : i32, i32, i32, i32
  }
}

</mosaic_0001>

<llo_original>
// kernel: custom-call.11
$region0: #{custom-call.11}
  %s0 = inlined_call_operand.vmem [shape: f32[2,32,32], index: 0, kind: input, shape index: {}]
  %s1 = inlined_call_operand.vmem [shape: f32[2,32,32], index: 1, kind: output, shape index: {}]
  $region1: #{custom-call.11} parent=0
    #allocation0 [shape = 'u8[32768]{0}', space=vmem, size = 0x8000, scoped, tag = 'operand span for operand 0']
    #allocation1 [shape = 'u8[32768]{0}', space=vmem, size = 0x8000, scoped, tag = 'operand span for operand 1']
    loop: start=0, step=1, limit=4
    $region2: #{custom-call.11} parent=1 // loop_pre_header
      _
    $region3: #{custom-call.11} parent=1 // loop_header
      %s3 = sphi 0, %s7
      %p4 = scmp.ge.s32.totalorder %s3, 4
      %s10 = sphi 0, %s29
      %s11 = sphi 0, %s25
      %s12 = sphi 0, %s21
      %s13 = sphi 0, %s10
      %s14 = sphi 0, %s11
      %s15 = sphi 0, %s12
      %s16 = sphi 0, %s13
      %s17 = sphi 0, %s14
      %s18 = sphi 0, %s15
    $region4: #{custom-call.11} parent=1 // loop_header_branch
      %6 = sbr.rel (%p4) target = $region8
    $region5: #{custom-call.11} parent=1 // loop_body
      %s8 = ssub.s32 %s3, 1
      %s9 = ssub.s32 %s3, 2
      %s19 = sadd.s32 1, %s12
      %p20 = scmp.ge.s32.totalorder %s19, 1
      %s21 = scalar_select %p20, 0, %s19
      %s22 = sadd.s32 1, %s11
      %s23 = scalar_select %p20, %s22, %s11
      %p24 = scmp.ge.s32.totalorder %s23, 1
      %s25 = scalar_select %p24, 0, %s23
      %s26 = sadd.s32 1, %s10
      %s27 = scalar_select %p24, %s26, %s10
      %p28 = scmp.ge.s32.totalorder %s27, 2
      %s29 = scalar_select %p28, 0, %s27
      %p30 = scmp.le.s32.totalorder 1, %s3
      %p31 = scmp.lt.s32.totalorder %s3, 3
      %p32 = pnand %p30, %p31
      %p33 = pneg %p32
      // Predicated region
      $region9: #{custom-call.11} parent=5 // pred_check
        _
      $region10: #{custom-call.11} parent=5 // pred_check_branch
        %35 = sbr.rel (%p32) target = $region12
      $region11: #{custom-call.11} parent=5 // pred_region
        %s36 = ssub.s32 %s3, 1
      $region12: #{custom-call.11} parent=5 // pred_fallthru
        _
      %p37 = scmp.lt.s32.totalorder %s3, 2
      // Predicated region
      $region13: #{custom-call.11} parent=5 // pred_check
        %p38 = pneg %p37
      $region14: #{custom-call.11} parent=5 // pred_check_branch
        %40 = sbr.rel (%p38) target = $region16
      $region15: #{custom-call.11} parent=5 // pred_region
        %s41 = sand.u32 %s3, 1
        %s42 = sand.u32 %s3, 1
        %s43 = smul.addr %s42, 32
        %s44 = scalar_lea.vmem [#allocation0], %s43
        %s45 = sadd.s32 %s12, %s11
        %s46 = smul.addr %s10, 4
        %s47 = sadd.s32 %s45, %s46
        %s48 = smul.addr %s47, 8
        %s49 = scalar_lea.vmem %s0, %s48
        // Predicated region
        $region17: #{custom-call.11} parent=15 // pred_check
          _
        $region18: #{custom-call.11} parent=15 // pred_check_branch
          %51 = sbr.rel (0) target = $region20
        $region19: #{custom-call.11} parent=15 // pred_region
          // Predicated region
          $region21: #{custom-call.11} parent=19 // pred_check
            _
          $region22: #{custom-call.11} parent=19 // pred_check_branch
            %53 = sbr.rel (0) target = $region24
          $region23: #{custom-call.11} parent=19 // pred_region
            // Predicated region
            $region36: #{custom-call.11} parent=23 // pred_check
              _
            $region37: #{custom-call.11} parent=23 // pred_check_branch
              %74 = sbr.rel (0) target = $region39
            $region38: #{custom-call.11} parent=23 // pred_region
              loop: start=0, step=1, limit=1
              $region40: #{custom-call.11} parent=38 // loop_pre_header
                _
              $region41: #{custom-call.11} parent=38 // loop_header
                %s76 = sphi 0, %s80
                %p77 = scmp.ge.s32.totalorder %s76, 1
                %s81 = sphi %s49, %s49
                %s82 = sphi %s44, %s44
              $region42: #{custom-call.11} parent=38 // loop_header_branch
                %79 = sbr.rel (%p77) target = $region46
              $region43: #{custom-call.11} parent=38 // loop_body
                %v83 = vld [vmem:[%s81] sm:$0xff]
                %84 = vst [vmem:[%s82] sm:$0xff] %v83
                %v85 = vld [vmem:[%s81 + $0x8] sm:$0xff]
                %86 = vst [vmem:[%s82 + $0x8] sm:$0xff] %v85
                %v87 = vld [vmem:[%s81 + $0x10] sm:$0xff]
                %88 = vst [vmem:[%s82 + $0x10] sm:$0xff] %v87
                %v89 = vld [vmem:[%s81 + $0x18] sm:$0xff]
                %90 = vst [vmem:[%s82 + $0x18] sm:$0xff] %v89
              $region44: #{custom-call.11} parent=38 // loop_footer
                %s80 = sadd.s32 1, %s76
              $region45: #{custom-call.11} parent=38 // loop_footer_branch
                %75 = sbr.rel target = $region41
              $region46: #{custom-call.11} parent=38 // loop_exit
                _
            $region39: #{custom-call.11} parent=23 // pred_fallthru
              _
            // Predicated region
            $region47: #{custom-call.11} parent=23 // pred_check
              _
            $region48: #{custom-call.11} parent=23 // pred_check_branch
              %92 = sbr.rel target = $region50
            $region49: #{custom-call.11} parent=23 // pred_region
              _
            $region50: #{custom-call.11} parent=23 // pred_fallthru
              _
          $region24: #{custom-call.11} parent=19 // pred_fallthru
            _
          // Predicated region
          $region25: #{custom-call.11} parent=19 // pred_check
            _
          $region26: #{custom-call.11} parent=19 // pred_check_branch
            %55 = sbr.rel target = $region28
          $region27: #{custom-call.11} parent=19 // pred_region
            loop: start=0, step=1, limit=1
            $region29: #{custom-call.11} parent=27 // loop_pre_header
              _
            $region30: #{custom-call.11} parent=27 // loop_header
              %s58 = sphi 0, %s62
              %p59 = scmp.ge.s32.totalorder %s58, 1
              %s63 = sphi %s49, %s49
              %s64 = sphi %s44, %s44
            $region31: #{custom-call.11} parent=27 // loop_header_branch
              %61 = sbr.rel (%p59) target = $region35
            $region32: #{custom-call.11} parent=27 // loop_body
              %v65 = vld [vmem:[%s63] sm:$0xff]
              %66 = vst [vmem:[%s64] sm:$0xff] %v65
              %v67 = vld [vmem:[%s63 + $0x8] sm:$0xff]
              %68 = vst [vmem:[%s64 + $0x8] sm:$0xff] %v67
              %v69 = vld [vmem:[%s63 + $0x10] sm:$0xff]
              %70 = vst [vmem:[%s64 + $0x10] sm:$0xff] %v69
              %v71 = vld [vmem:[%s63 + $0x18] sm:$0xff]
              %72 = vst [vmem:[%s64 + $0x18] sm:$0xff] %v71
            $region33: #{custom-call.11} parent=27 // loop_footer
              %s62 = sadd.s32 1, %s58
            $region34: #{custom-call.11} parent=27 // loop_footer_branch
              %57 = sbr.rel target = $region30
            $region35: #{custom-call.11} parent=27 // loop_exit
              _
          $region28: #{custom-call.11} parent=19 // pred_fallthru
            _
        $region20: #{custom-call.11} parent=15 // pred_fallthru
          _
        %93 = vnop
      $region16: #{custom-call.11} parent=5 // pred_fallthru
        _
      %p94 = scmp.le.s32.totalorder 1, %s3
      %p95 = scmp.lt.s32.totalorder %s3, 3
      %p96 = pnand %p94, %p95
      %p97 = pneg %p96
      // Predicated region
      $region51: #{custom-call.11} parent=5 // pred_check
        _
      $region52: #{custom-call.11} parent=5 // pred_check_branch
        %99 = sbr.rel (%p96) target = $region54
      $region53: #{custom-call.11} parent=5 // pred_region
        %s100 = ssub.s32 %s3, 1
        %s101 = sand.u32 %s8, 1
        %s102 = sand.u32 %s8, 1
        %s103 = smul.addr %s102, 32
        %s104 = scalar_lea.vmem [#allocation0], %s103
        %s105 = sand.u32 %s8, 1
        %s106 = sand.u32 %s8, 1
        %s107 = smul.addr %s106, 32
        %s108 = scalar_lea.vmem [#allocation0], %s107
        %s109 = sand.u32 %s8, 1
        %s110 = sand.u32 %s8, 1
        %s111 = smul.addr %s110, 32
        %s112 = scalar_lea.vmem [#allocation1], %s111
        %113 = vst [vmem:[%s112] sm:$0xff] 0.0
        %s114 = scalar_lea.vmem %s112, 8 [#allocation1]
        %115 = vst [vmem:[%s114] sm:$0xff] 0.0
        %s116 = scalar_lea.vmem %s112, 16 [#allocation1]
        %117 = vst [vmem:[%s116] sm:$0xff] 0.0
        %s118 = scalar_lea.vmem %s112, 24 [#allocation1]
        %119 = vst [vmem:[%s118] sm:$0xff] 0.0
        %vm120 = vcmask 7168
        %v121 = vld [vmem:[%s112] ss:$0 sm:$0xff]
        %v122 = vld [vmem:[%s104] ss:$0 sm:$0xff]
        %v123 = vmul.f32 %v121, %v121
        %124 = vadd.xlane.f32.xlu0 %v123
        %v125 = vpop.xlane.xlu0 %124
        %v126 = vsub.f32 %v122, %v125
        %v127 = vrsqrt.pop %v126
        %v128 = vld [vmem:[%s104] sm:$0xff]
        %v129 = vld [vmem:[%s112] sm:$0xff]
        %v130 = vmul.f32 %v129, %v121
        %131 = vadd.xlane.f32.xlu0 %v130
        %v132 = vpop.xlane.xlu0 %131
        %v133 = vsub.f32 %v128, %v132
        %v134 = vmul.f32 %v133, %v127
        %v135 = vsel %vm120, %v134, 0.0
        %v136 = vadd.f32 %v129, %v135
        %137 = vst [vmem:[%s112] sm:$0xff] %v136
        %s138 = scalar_lea.vmem %s104, 8 [#allocation0]
        %v139 = vld [vmem:[%s138] sm:$0xff]
        %s140 = scalar_lea.vmem %s112, 8 [#allocation1]
        %v141 = vld [vmem:[%s140] sm:$0xff]
        %v142 = vmul.f32 %v141, %v121
        %143 = vadd.xlane.f32.xlu0 %v142
        %v144 = vpop.xlane.xlu0 %143
        %v145 = vsub.f32 %v139, %v144
        %v146 = vmul.f32 %v145, %v127
        %v147 = vsel %vm120, %v146, 0.0
        %v148 = vadd.f32 %v141, %v147
        %s149 = scalar_lea.vmem %s112, 8 [#allocation1]
        %150 = vst [vmem:[%s149] sm:$0xff] %v148
        %s151 = scalar_lea.vmem %s104, 16 [#allocation0]
        %v152 = vld [vmem:[%s151] sm:$0xff]
        %s153 = scalar_lea.vmem %s112, 16 [#allocation1]
        %v154 = vld [vmem:[%s153] sm:$0xff]
        %v155 = vmul.f32 %v154, %v121
        %156 = vadd.xlane.f32.xlu0 %v155
        %v157 = vpop.xlane.xlu0 %156
        %v158 = vsub.f32 %v152, %v157
        %v159 = vmul.f32 %v158, %v127
        %v160 = vsel %vm120, %v159, 0.0
        %v161 = vadd.f32 %v154, %v160
        %s162 = scalar_lea.vmem %s112, 16 [#allocation1]
        %163 = vst [vmem:[%s162] sm:$0xff] %v161
        %s164 = scalar_lea.vmem %s104, 24 [#allocation0]
        %v165 = vld [vmem:[%s164] sm:$0xff]
        %s166 = scalar_lea.vmem %s112, 24 [#allocation1]
        %v167 = vld [vmem:[%s166] sm:$0xff]
        %v168 = vmul.f32 %v167, %v121
        %169 = vadd.xlane.f32.xlu0 %v168
        %v170 = vpop.xlane.xlu0 %169
        %v171 = vsub.f32 %v165, %v170
        %v172 = vmul.f32 %v171, %v127
        %v173 = vsel %vm120, %v172, 0.0
        %v174 = vadd.f32 %v167, %v173
        %s175 = scalar_lea.vmem %s112, 24 [#allocation1]
        %176 = vst [vmem:[%s175] sm:$0xff] %v174
        %vm177 = vcmask 15368
        %s178 = scalar_lea.vmem %s112, 1 [#allocation1]
        %v179 = vld [vmem:[%s178] ss:$0 sm:$0xff]
        %s180 = scalar_lea.vmem %s104, 1 [#allocation0]
        %v181 = vld [vmem:[%s180] ss:$0 sm:$0xff]
        %v182 = vmul.f32 %v179, %v179
        %183 = vadd.xlane.f32.xlu0 %v182
        %v184 = vpop.xlane.xlu0 %183
        %v185 = vsub.f32 %v181, %v184
        %v186 = vrsqrt.pop %v185
        %v187 = vld [vmem:[%s104] sm:$0xff]
        %v188 = vld [vmem:[%s112] sm:$0xff]
        %v189 = vmul.f32 %v188, %v179
        %190 = vadd.xlane.f32.xlu0 %v189
        %v191 = vpop.xlane.xlu0 %190
        %v192 = vsub.f32 %v187, %v191
        %v193 = vmul.f32 %v192, %v186
        %vm194 = vcmask 1047553
        %vm195 = vmand %vm177, %vm194
        %v196 = vsel %vm195, %v193, 0.0
        %v197 = vadd.f32 %v188, %v196
        %198 = vst [vmem:[%s112] sm:$0xff] %v197
        %s199 = scalar_lea.vmem %s104, 8 [#allocation0]
        %v200 = vld [vmem:[%s199] sm:$0xff]
        %s201 = scalar_lea.vmem %s112, 8 [#allocation1]
        %v202 = vld [vmem:[%s201] sm:$0xff]
        %v203 = vmul.f32 %v202, %v179
        %204 = vadd.xlane.f32.xlu0 %v203
        %v205 = vpop.xlane.xlu0 %204
        %v206 = vsub.f32 %v200, %v205
        %v207 = vmul.f32 %v206, %v186
        %v208 = vsel %vm177, %v207, 0.0
        %v209 = vadd.f32 %v202, %v208
        %s210 = scalar_lea.vmem %s112, 8 [#allocation1]
        %211 = vst [vmem:[%s210] sm:$0xff] %v209
        %s212 = scalar_lea.vmem %s104, 16 [#allocation0]
        %v213 = vld [vmem:[%s212] sm:$0xff]
        %s214 = scalar_lea.vmem %s112, 16 [#allocation1]
        %v215 = vld [vmem:[%s214] sm:$0xff]
        %v216 = vmul.f32 %v215, %v179
        %217 = vadd.xlane.f32.xlu0 %v216
        %v218 = vpop.xlane.xlu0 %217
        %v219 = vsub.f32 %v213, %v218
        %v220 = vmul.f32 %v219, %v186
        %v221 = vsel %vm177, %v220, 0.0
        %v222 = vadd.f32 %v215, %v221
        %s223 = scalar_lea.vmem %s112, 16 [#allocation1]
        %224 = vst [vmem:[%s223] sm:$0xff] %v222
        %s225 = scalar_lea.vmem %s104, 24 [#allocation0]
        %v226 = vld [vmem:[%s225] sm:$0xff]
        %s227 = scalar_lea.vmem %s112, 24 [#allocation1]
        %v228 = vld [vmem:[%s227] sm:$0xff]
        %v229 = vmul.f32 %v228, %v179
        %230 = vadd.xlane.f32.xlu0 %v229
        %v231 = vpop.xlane.xlu0 %230
        %v232 = vsub.f32 %v226, %v231
        %v233 = vmul.f32 %v232, %v186
        %v234 = vsel %vm177, %v233, 0.0
        %v235 = vadd.f32 %v228, %v234
        %s236 = scalar_lea.vmem %s112, 24 [#allocation1]
        %237 = vst [vmem:[%s236] sm:$0xff] %v235
        %vm238 = vcmask 23568
        %s239 = scalar_lea.vmem %s112, 2 [#allocation1]
        %v240 = vld [vmem:[%s239] ss:$0 sm:$0xff]
        %s241 = scalar_lea.vmem %s104, 2 [#allocation0]
        %v242 = vld [vmem:[%s241] ss:$0 sm:$0xff]
        %v243 = vmul.f32 %v240, %v240
        %244 = vadd.xlane.f32.xlu0 %v243
        %v245 = vpop.xlane.xlu0 %244
        %v246 = vsub.f32 %v242, %v245
        %v247 = vrsqrt.pop %v246
        %v248 = vld [vmem:[%s104] sm:$0xff]
        %v249 = vld [vmem:[%s112] sm:$0xff]
        %v250 = vmul.f32 %v249, %v240
        %251 = vadd.xlane.f32.xlu0 %v250
        %v252 = vpop.xlane.xlu0 %251
        %v253 = vsub.f32 %v248, %v252
        %v254 = vmul.f32 %v253, %v247
        %vm255 = vcmask 1047554
        %vm256 = vmand %vm238, %vm255
        %v257 = vsel %vm256, %v254, 0.0
        %v258 = vadd.f32 %v249, %v257
        %259 = vst [vmem:[%s112] sm:$0xff] %v258
        %s260 = scalar_lea.vmem %s104, 8 [#allocation0]
        %v261 = vld [vmem:[%s260] sm:$0xff]
        %s262 = scalar_lea.vmem %s112, 8 [#allocation1]
        %v263 = vld [vmem:[%s262] sm:$0xff]
        %v264 = vmul.f32 %v263, %v240
        %265 = vadd.xlane.f32.xlu0 %v264
        %v266 = vpop.xlane.xlu0 %265
        %v267 = vsub.f32 %v261, %v266
        %v268 = vmul.f32 %v267, %v247
        %v269 = vsel %vm238, %v268, 0.0
        %v270 = vadd.f32 %v263, %v269
        %s271 = scalar_lea.vmem %s112, 8 [#allocation1]
        %272 = vst [vmem:[%s271] sm:$0xff] %v270
        %s273 = scalar_lea.vmem %s104, 16 [#allocation0]
        %v274 = vld [vmem:[%s273] sm:$0xff]
        %s275 = scalar_lea.vmem %s112, 16 [#allocation1]
        %v276 = vld [vmem:[%s275] sm:$0xff]
        %v277 = vmul.f32 %v276, %v240
        %278 = vadd.xlane.f32.xlu0 %v277
        %v279 = vpop.xlane.xlu0 %278
        %v280 = vsub.f32 %v274, %v279
        %v281 = vmul.f32 %v280, %v247
        %v282 = vsel %vm238, %v281, 0.0
        %v283 = vadd.f32 %v276, %v282
        %s284 = scalar_lea.vmem %s112, 16 [#allocation1]
        %285 = vst [vmem:[%s284] sm:$0xff] %v283
        %s286 = scalar_lea.vmem %s104, 24 [#allocation0]
        %v287 = vld [vmem:[%s286] sm:$0xff]
        %s288 = scalar_lea.vmem %s112, 24 [#allocation1]
        %v289 = vld [vmem:[%s288] sm:$0xff]
        %v290 = vmul.f32 %v289, %v240
        %291 = vadd.xlane.f32.xlu0 %v290
        %v292 = vpop.xlane.xlu0 %291
        %v293 = vsub.f32 %v287, %v292
        %v294 = vmul.f32 %v293, %v247
        %v295 = vsel %vm238, %v294, 0.0
        %v296 = vadd.f32 %v289, %v295
        %s297 = scalar_lea.vmem %s112, 24 [#allocation1]
        %298 = vst [vmem:[%s297] sm:$0xff] %v296
        %vm299 = vcmask 31768
        %s300 = scalar_lea.vmem %s112, 3 [#allocation1]
        %v301 = vld [vmem:[%s300] ss:$0 sm:$0xff]
        %s302 = scalar_lea.vmem %s104, 3 [#allocation0]
        %v303 = vld [vmem:[%s302] ss:$0 sm:$0xff]
        %v304 = vmul.f32 %v301, %v301
        %305 = vadd.xlane.f32.xlu0 %v304
        %v306 = vpop.xlane.xlu0 %305
        %v307 = vsub.f32 %v303, %v306
        %v308 = vrsqrt.pop %v307
        %v309 = vld [vmem:[%s104] sm:$0xff]
        %v310 = vld [vmem:[%s112] sm:$0xff]
        %v311 = vmul.f32 %v310, %v301
        %312 = vadd.xlane.f32.xlu0 %v311
        %v313 = vpop.xlane.xlu0 %312
        %v314 = vsub.f32 %v309, %v313
        %v315 = vmul.f32 %v314, %v308
        %vm316 = vcmask 1047555
        %vm317 = vmand %vm299, %vm316
        %v318 = vsel %vm317, %v315, 0.0
        %v319 = vadd.f32 %v310, %v318
        %320 = vst [vmem:[%s112] sm:$0xff] %v319
        %s321 = scalar_lea.vmem %s104, 8 [#allocation0]
        %v322 = vld [vmem:[%s321] sm:$0xff]
        %s323 = scalar_lea.vmem %s112, 8 [#allocation1]
        %v324 = vld [vmem:[%s323] sm:$0xff]
        %v325 = vmul.f32 %v324, %v301
        %326 = vadd.xlane.f32.xlu0 %v325
        %v327 = vpop.xlane.xlu0 %326
        %v328 = vsub.f32 %v322, %v327
        %v329 = vmul.f32 %v328, %v308
        %v330 = vsel %vm299, %v329, 0.0
        %v331 = vadd.f32 %v324, %v330
        %s332 = scalar_lea.vmem %s112, 8 [#allocation1]
        %333 = vst [vmem:[%s332] sm:$0xff] %v331
        %s334 = scalar_lea.vmem %s104, 16 [#allocation0]
        %v335 = vld [vmem:[%s334] sm:$0xff]
        %s336 = scalar_lea.vmem %s112, 16 [#allocation1]
        %v337 = vld [vmem:[%s336] sm:$0xff]
        %v338 = vmul.f32 %v337, %v301
        %339 = vadd.xlane.f32.xlu0 %v338
        %v340 = vpop.xlane.xlu0 %339
        %v341 = vsub.f32 %v335, %v340
        %v342 = vmul.f32 %v341, %v308
        %v343 = vsel %vm299, %v342, 0.0
        %v344 = vadd.f32 %v337, %v343
        %s345 = scalar_lea.vmem %s112, 16 [#allocation1]
        %346 = vst [vmem:[%s345] sm:$0xff] %v344
        %s347 = scalar_lea.vmem %s104, 24 [#allocation0]
        %v348 = vld [vmem:[%s347] sm:$0xff]
        %s349 = scalar_lea.vmem %s112, 24 [#allocation1]
        %v350 = vld [vmem:[%s349] sm:$0xff]
        %v351 = vmul.f32 %v350, %v301
        %352 = vadd.xlane.f32.xlu0 %v351
        %v353 = vpop.xlane.xlu0 %352
        %v354 = vsub.f32 %v348, %v353
        %v355 = vmul.f32 %v354, %v308
        %v356 = vsel %vm299, %v355, 0.0
        %v357 = vadd.f32 %v350, %v356
        %s358 = scalar_lea.vmem %s112, 24 [#allocation1]
        %359 = vst [vmem:[%s358] sm:$0xff] %v357
        %vm360 = vcmask 39968
        %s361 = scalar_lea.vmem %s112, 4 [#allocation1]
        %v362 = vld [vmem:[%s361] ss:$0 sm:$0xff]
        %s363 = scalar_lea.vmem %s104, 4 [#allocation0]
        %v364 = vld [vmem:[%s363] ss:$0 sm:$0xff]
        %v365 = vmul.f32 %v362, %v362
        %366 = vadd.xlane.f32.xlu0 %v365
        %v367 = vpop.xlane.xlu0 %366
        %v368 = vsub.f32 %v364, %v367
        %v369 = vrsqrt.pop %v368
        %v370 = vld [vmem:[%s104] sm:$0xff]
        %v371 = vld [vmem:[%s112] sm:$0xff]
        %v372 = vmul.f32 %v371, %v362
        %373 = vadd.xlane.f32.xlu0 %v372
        %v374 = vpop.xlane.xlu0 %373
        %v375 = vsub.f32 %v370, %v374
        %v376 = vmul.f32 %v375, %v369
        %vm377 = vcmask 1047556
        %vm378 = vmand %vm360, %vm377
        %v379 = vsel %vm378, %v376, 0.0
        %v380 = vadd.f32 %v371, %v379
        %381 = vst [vmem:[%s112] sm:$0xff] %v380
        %s382 = scalar_lea.vmem %s104, 8 [#allocation0]
        %v383 = vld [vmem:[%s382] sm:$0xff]
        %s384 = scalar_lea.vmem %s112, 8 [#allocation1]
        %v385 = vld [vmem:[%s384] sm:$0xff]
        %v386 = vmul.f32 %v385, %v362
        %387 = vadd.xlane.f32.xlu0 %v386
        %v388 = vpop.xlane.xlu0 %387
        %v389 = vsub.f32 %v383, %v388
        %v390 = vmul.f32 %v389, %v369
        %v391 = vsel %vm360, %v390, 0.0
        %v392 = vadd.f32 %v385, %v391
        %s393 = scalar_lea.vmem %s112, 8 [#allocation1]
        %394 = vst [vmem:[%s393] sm:$0xff] %v392
        %s395 = scalar_lea.vmem %s104, 16 [#allocation0]
        %v396 = vld [vmem:[%s395] sm:$0xff]
        %s397 = scalar_lea.vmem %s112, 16 [#allocation1]
        %v398 = vld [vmem:[%s397] sm:$0xff]
        %v399 = vmul.f32 %v398, %v362
        %400 = vadd.xlane.f32.xlu0 %v399
        %v401 = vpop.xlane.xlu0 %400
        %v402 = vsub.f32 %v396, %v401
        %v403 = vmul.f32 %v402, %v369
        %v404 = vsel %vm360, %v403, 0.0
        %v405 = vadd.f32 %v398, %v404
        %s406 = scalar_lea.vmem %s112, 16 [#allocation1]
        %407 = vst [vmem:[%s406] sm:$0xff] %v405
        %s408 = scalar_lea.vmem %s104, 24 [#allocation0]
        %v409 = vld [vmem:[%s408] sm:$0xff]
        %s410 = scalar_lea.vmem %s112, 24 [#allocation1]
        %v411 = vld [vmem:[%s410] sm:$0xff]
        %v412 = vmul.f32 %v411, %v362
        %413 = vadd.xlane.f32.xlu0 %v412
        %v414 = vpop.xlane.xlu0 %413
        %v415 = vsub.f32 %v409, %v414
        %v416 = vmul.f32 %v415, %v369
        %v417 = vsel %vm360, %v416, 0.0
        %v418 = vadd.f32 %v411, %v417
        %s419 = scalar_lea.vmem %s112, 24 [#allocation1]
        %420 = vst [vmem:[%s419] sm:$0xff] %v418
        %vm421 = vcmask 48168
        %s422 = scalar_lea.vmem %s112, 5 [#allocation1]
        %v423 = vld [vmem:[%s422] ss:$0 sm:$0xff]
        %s424 = scalar_lea.vmem %s104, 5 [#allocation0]
        %v425 = vld [vmem:[%s424] ss:$0 sm:$0xff]
        %v426 = vmul.f32 %v423, %v423
        %427 = vadd.xlane.f32.xlu0 %v426
        %v428 = vpop.xlane.xlu0 %427
        %v429 = vsub.f32 %v425, %v428
        %v430 = vrsqrt.pop %v429
        %v431 = vld [vmem:[%s104] sm:$0xff]
        %v432 = vld [vmem:[%s112] sm:$0xff]
        %v433 = vmul.f32 %v432, %v423
        %434 = vadd.xlane.f32.xlu0 %v433
        %v435 = vpop.xlane.xlu0 %434
        %v436 = vsub.f32 %v431, %v435
        %v437 = vmul.f32 %v436, %v430
        %vm438 = vcmask 1047557
        %vm439 = vmand %vm421, %vm438
        %v440 = vsel %vm439, %v437, 0.0
        %v441 = vadd.f32 %v432, %v440
        %442 = vst [vmem:[%s112] sm:$0xff] %v441
        %s443 = scalar_lea.vmem %s104, 8 [#allocation0]
        %v444 = vld [vmem:[%s443] sm:$0xff]
        %s445 = scalar_lea.vmem %s112, 8 [#allocation1]
        %v446 = vld [vmem:[%s445] sm:$0xff]
        %v447 = vmul.f32 %v446, %v423
        %448 = vadd.xlane.f32.xlu0 %v447
        %v449 = vpop.xlane.xlu0 %448
        %v450 = vsub.f32 %v444, %v449
        %v451 = vmul.f32 %v450, %v430
        %v452 = vsel %vm421, %v451, 0.0
        %v453 = vadd.f32 %v446, %v452
        %s454 = scalar_lea.vmem %s112, 8 [#allocation1]
        %455 = vst [vmem:[%s454] sm:$0xff] %v453
        %s456 = scalar_lea.vmem %s104, 16 [#allocation0]
        %v457 = vld [vmem:[%s456] sm:$0xff]
        %s458 = scalar_lea.vmem %s112, 16 [#allocation1]
        %v459 = vld [vmem:[%s458] sm:$0xff]
        %v460 = vmul.f32 %v459, %v423
        %461 = vadd.xlane.f32.xlu0 %v460
        %v462 = vpop.xlane.xlu0 %461
        %v463 = vsub.f32 %v457, %v462
        %v464 = vmul.f32 %v463, %v430
        %v465 = vsel %vm421, %v464, 0.0
        %v466 = vadd.f32 %v459, %v465
        %s467 = scalar_lea.vmem %s112, 16 [#allocation1]
        %468 = vst [vmem:[%s467] sm:$0xff] %v466
        %s469 = scalar_lea.vmem %s104, 24 [#allocation0]
        %v470 = vld [vmem:[%s469] sm:$0xff]
        %s471 = scalar_lea.vmem %s112, 24 [#allocation1]
        %v472 = vld [vmem:[%s471] sm:$0xff]
        %v473 = vmul.f32 %v472, %v423
        %474 = vadd.xlane.f32.xlu0 %v473
        %v475 = vpop.xlane.xlu0 %474
        %v476 = vsub.f32 %v470, %v475
        %v477 = vmul.f32 %v476, %v430
        %v478 = vsel %vm421, %v477, 0.0
        %v479 = vadd.f32 %v472, %v478
        %s480 = scalar_lea.vmem %s112, 24 [#allocation1]
        %481 = vst [vmem:[%s480] sm:$0xff] %v479
        %vm482 = vcmask 56368
        %s483 = scalar_lea.vmem %s112, 6 [#allocation1]
        %v484 = vld [vmem:[%s483] ss:$0 sm:$0xff]
        %s485 = scalar_lea.vmem %s104, 6 [#allocation0]
        %v486 = vld [vmem:[%s485] ss:$0 sm:$0xff]
        %v487 = vmul.f32 %v484, %v484
        %488 = vadd.xlane.f32.xlu0 %v487
        %v489 = vpop.xlane.xlu0 %488
        %v490 = vsub.f32 %v486, %v489
        %v491 = vrsqrt.pop %v490
        %v492 = vld [vmem:[%s104] sm:$0xff]
        %v493 = vld [vmem:[%s112] sm:$0xff]
        %v494 = vmul.f32 %v493, %v484
        %495 = vadd.xlane.f32.xlu0 %v494
        %v496 = vpop.xlane.xlu0 %495
        %v497 = vsub.f32 %v492, %v496
        %v498 = vmul.f32 %v497, %v491
        %vm499 = vcmask 1047558
        %vm500 = vmand %vm482, %vm499
        %v501 = vsel %vm500, %v498, 0.0
        %v502 = vadd.f32 %v493, %v501
        %503 = vst [vmem:[%s112] sm:$0xff] %v502
        %s504 = scalar_lea.vmem %s104, 8 [#allocation0]
        %v505 = vld [vmem:[%s504] sm:$0xff]
        %s506 = scalar_lea.vmem %s112, 8 [#allocation1]
        %v507 = vld [vmem:[%s506] sm:$0xff]
        %v508 = vmul.f32 %v507, %v484
        %509 = vadd.xlane.f32.xlu0 %v508
        %v510 = vpop.xlane.xlu0 %509
        %v511 = vsub.f32 %v505, %v510
        %v512 = vmul.f32 %v511, %v491
        %v513 = vsel %vm482, %v512, 0.0
        %v514 = vadd.f32 %v507, %v513
        %s515 = scalar_lea.vmem %s112, 8 [#allocation1]
        %516 = vst [vmem:[%s515] sm:$0xff] %v514
        %s517 = scalar_lea.vmem %s104, 16 [#allocation0]
        %v518 = vld [vmem:[%s517] sm:$0xff]
        %s519 = scalar_lea.vmem %s112, 16 [#allocation1]
        %v520 = vld [vmem:[%s519] sm:$0xff]
        %v521 = vmul.f32 %v520, %v484
        %522 = vadd.xlane.f32.xlu0 %v521
        %v523 = vpop.xlane.xlu0 %522
        %v524 = vsub.f32 %v518, %v523
        %v525 = vmul.f32 %v524, %v491
        %v526 = vsel %vm482, %v525, 0.0
        %v527 = vadd.f32 %v520, %v526
        %s528 = scalar_lea.vmem %s112, 16 [#allocation1]
        %529 = vst [vmem:[%s528] sm:$0xff] %v527
        %s530 = scalar_lea.vmem %s104, 24 [#allocation0]
        %v531 = vld [vmem:[%s530] sm:$0xff]
        %s532 = scalar_lea.vmem %s112, 24 [#allocation1]
        %v533 = vld [vmem:[%s532] sm:$0xff]
        %v534 = vmul.f32 %v533, %v484
        %535 = vadd.xlane.f32.xlu0 %v534
        %v536 = vpop.xlane.xlu0 %535
        %v537 = vsub.f32 %v531, %v536
        %v538 = vmul.f32 %v537, %v491
        %v539 = vsel %vm482, %v538, 0.0
        %v540 = vadd.f32 %v533, %v539
        %s541 = scalar_lea.vmem %s112, 24 [#allocation1]
        %542 = vst [vmem:[%s541] sm:$0xff] %v540
        %vm543 = vcmask 64568
        %s544 = scalar_lea.vmem %s112, 7 [#allocation1]
        %v545 = vld [vmem:[%s544] ss:$0 sm:$0xff]
        %s546 = scalar_lea.vmem %s104, 7 [#allocation0]
        %v547 = vld [vmem:[%s546] ss:$0 sm:$0xff]
        %v548 = vmul.f32 %v545, %v545
        %549 = vadd.xlane.f32.xlu0 %v548
        %v550 = vpop.xlane.xlu0 %549
        %v551 = vsub.f32 %v547, %v550
        %v552 = vrsqrt.pop %v551
        %v553 = vld [vmem:[%s104] sm:$0xff]
        %v554 = vld [vmem:[%s112] sm:$0xff]
        %v555 = vmul.f32 %v554, %v545
        %556 = vadd.xlane.f32.xlu0 %v555
        %v557 = vpop.xlane.xlu0 %556
        %v558 = vsub.f32 %v553, %v557
        %v559 = vmul.f32 %v558, %v552
        %vm560 = vcmask 1047559
        %vm561 = vmand %vm543, %vm560
        %v562 = vsel %vm561, %v559, 0.0
        %v563 = vadd.f32 %v554, %v562
        %564 = vst [vmem:[%s112] sm:$0xff] %v563
        %s565 = scalar_lea.vmem %s104, 8 [#allocation0]
        %v566 = vld [vmem:[%s565] sm:$0xff]
        %s567 = scalar_lea.vmem %s112, 8 [#allocation1]
        %v568 = vld [vmem:[%s567] sm:$0xff]
        %v569 = vmul.f32 %v568, %v545
        %570 = vadd.xlane.f32.xlu0 %v569
        %v571 = vpop.xlane.xlu0 %570
        %v572 = vsub.f32 %v566, %v571
        %v573 = vmul.f32 %v572, %v552
        %v574 = vsel %vm543, %v573, 0.0
        %v575 = vadd.f32 %v568, %v574
        %s576 = scalar_lea.vmem %s112, 8 [#allocation1]
        %577 = vst [vmem:[%s576] sm:$0xff] %v575
        %s578 = scalar_lea.vmem %s104, 16 [#allocation0]
        %v579 = vld [vmem:[%s578] sm:$0xff]
        %s580 = scalar_lea.vmem %s112, 16 [#allocation1]
        %v581 = vld [vmem:[%s580] sm:$0xff]
        %v582 = vmul.f32 %v581, %v545
        %583 = vadd.xlane.f32.xlu0 %v582
        %v584 = vpop.xlane.xlu0 %583
        %v585 = vsub.f32 %v579, %v584
        %v586 = vmul.f32 %v585, %v552
        %v587 = vsel %vm543, %v586, 0.0
        %v588 = vadd.f32 %v581, %v587
        %s589 = scalar_lea.vmem %s112, 16 [#allocation1]
        %590 = vst [vmem:[%s589] sm:$0xff] %v588
        %s591 = scalar_lea.vmem %s104, 24 [#allocation0]
        %v592 = vld [vmem:[%s591] sm:$0xff]
        %s593 = scalar_lea.vmem %s112, 24 [#allocation1]
        %v594 = vld [vmem:[%s593] sm:$0xff]
        %v595 = vmul.f32 %v594, %v545
        %596 = vadd.xlane.f32.xlu0 %v595
        %v597 = vpop.xlane.xlu0 %596
        %v598 = vsub.f32 %v592, %v597
        %v599 = vmul.f32 %v598, %v552
        %v600 = vsel %vm543, %v599, 0.0
        %v601 = vadd.f32 %v594, %v600
        %s602 = scalar_lea.vmem %s112, 24 [#allocation1]
        %603 = vst [vmem:[%s602] sm:$0xff] %v601
        %vm604 = vcmask 72768
        %s605 = scalar_lea.vmem %s112, 8 [#allocation1]
        %v606 = vld [vmem:[%s605] ss:$0 sm:$0xff]
        %s607 = scalar_lea.vmem %s104, 8 [#allocation0]
        %v608 = vld [vmem:[%s607] ss:$0 sm:$0xff]
        %v609 = vmul.f32 %v606, %v606
        %610 = vadd.xlane.f32.xlu0 %v609
        %v611 = vpop.xlane.xlu0 %610
        %v612 = vsub.f32 %v608, %v611
        %v613 = vrsqrt.pop %v612
        %s614 = scalar_lea.vmem %s104, 8 [#allocation0]
        %v615 = vld [vmem:[%s614] sm:$0xff]
        %s616 = scalar_lea.vmem %s112, 8 [#allocation1]
        %v617 = vld [vmem:[%s616] sm:$0xff]
        %v618 = vmul.f32 %v617, %v606
        %619 = vadd.xlane.f32.xlu0 %v618
        %v620 = vpop.xlane.xlu0 %619
        %v621 = vsub.f32 %v615, %v620
        %v622 = vmul.f32 %v621, %v613
        %v623 = vsel %vm604, %v622, 0.0
        %v624 = vadd.f32 %v617, %v623
        %s625 = scalar_lea.vmem %s112, 8 [#allocation1]
        %626 = vst [vmem:[%s625] sm:$0xff] %v624
        %s627 = scalar_lea.vmem %s104, 16 [#allocation0]
        %v628 = vld [vmem:[%s627] sm:$0xff]
        %s629 = scalar_lea.vmem %s112, 16 [#allocation1]
        %v630 = vld [vmem:[%s629] sm:$0xff]
        %v631 = vmul.f32 %v630, %v606
        %632 = vadd.xlane.f32.xlu0 %v631
        %v633 = vpop.xlane.xlu0 %632
        %v634 = vsub.f32 %v628, %v633
        %v635 = vmul.f32 %v634, %v613
        %v636 = vsel %vm604, %v635, 0.0
        %v637 = vadd.f32 %v630, %v636
        %s638 = scalar_lea.vmem %s112, 16 [#allocation1]
        %639 = vst [vmem:[%s638] sm:$0xff] %v637
        %s640 = scalar_lea.vmem %s104, 24 [#allocation0]
        %v641 = vld [vmem:[%s640] sm:$0xff]
        %s642 = scalar_lea.vmem %s112, 24 [#allocation1]
        %v643 = vld [vmem:[%s642] sm:$0xff]
        %v644 = vmul.f32 %v643, %v606
        %645 = vadd.xlane.f32.xlu0 %v644
        %v646 = vpop.xlane.xlu0 %645
        %v647 = vsub.f32 %v641, %v646
        %v648 = vmul.f32 %v647, %v613
        %v649 = vsel %vm604, %v648, 0.0
        %v650 = vadd.f32 %v643, %v649
        %s651 = scalar_lea.vmem %s112, 24 [#allocation1]
        %652 = vst [vmem:[%s651] sm:$0xff] %v650
        %vm653 = vcmask 80968
        %s654 = scalar_lea.vmem %s112, 9 [#allocation1]
        %v655 = vld [vmem:[%s654] ss:$0 sm:$0xff]
        %s656 = scalar_lea.vmem %s104, 9 [#allocation0]
        %v657 = vld [vmem:[%s656] ss:$0 sm:$0xff]
        %v658 = vmul.f32 %v655, %v655
        %659 = vadd.xlane.f32.xlu0 %v658
        %v660 = vpop.xlane.xlu0 %659
        %v661 = vsub.f32 %v657, %v660
        %v662 = vrsqrt.pop %v661
        %s663 = scalar_lea.vmem %s104, 8 [#allocation0]
        %v664 = vld [vmem:[%s663] sm:$0xff]
        %s665 = scalar_lea.vmem %s112, 8 [#allocation1]
        %v666 = vld [vmem:[%s665] sm:$0xff]
        %v667 = vmul.f32 %v666, %v655
        %668 = vadd.xlane.f32.xlu0 %v667
        %v669 = vpop.xlane.xlu0 %668
        %v670 = vsub.f32 %v664, %v669
        %v671 = vmul.f32 %v670, %v662
        %vm672 = vcmask 1047553
        %vm673 = vmand %vm653, %vm672
        %v674 = vsel %vm673, %v671, 0.0
        %v675 = vadd.f32 %v666, %v674
        %s676 = scalar_lea.vmem %s112, 8 [#allocation1]
        %677 = vst [vmem:[%s676] sm:$0xff] %v675
        %s678 = scalar_lea.vmem %s104, 16 [#allocation0]
        %v679 = vld [vmem:[%s678] sm:$0xff]
        %s680 = scalar_lea.vmem %s112, 16 [#allocation1]
        %v681 = vld [vmem:[%s680] sm:$0xff]
        %v682 = vmul.f32 %v681, %v655
        %683 = vadd.xlane.f32.xlu0 %v682
        %v684 = vpop.xlane.xlu0 %683
        %v685 = vsub.f32 %v679, %v684
        %v686 = vmul.f32 %v685, %v662
        %v687 = vsel %vm653, %v686, 0.0
        %v688 = vadd.f32 %v681, %v687
        %s689 = scalar_lea.vmem %s112, 16 [#allocation1]
        %690 = vst [vmem:[%s689] sm:$0xff] %v688
        %s691 = scalar_lea.vmem %s104, 24 [#allocation0]
        %v692 = vld [vmem:[%s691] sm:$0xff]
        %s693 = scalar_lea.vmem %s112, 24 [#allocation1]
        %v694 = vld [vmem:[%s693] sm:$0xff]
        %v695 = vmul.f32 %v694, %v655
        %696 = vadd.xlane.f32.xlu0 %v695
        %v697 = vpop.xlane.xlu0 %696
        %v698 = vsub.f32 %v692, %v697
        %v699 = vmul.f32 %v698, %v662
        %v700 = vsel %vm653, %v699, 0.0
        %v701 = vadd.f32 %v694, %v700
        %s702 = scalar_lea.vmem %s112, 24 [#allocation1]
        %703 = vst [vmem:[%s702] sm:$0xff] %v701
        %vm704 = vcmask 89168
        %s705 = scalar_lea.vmem %s112, 10 [#allocation1]
        %v706 = vld [vmem:[%s705] ss:$0 sm:$0xff]
        %s707 = scalar_lea.vmem %s104, 10 [#allocation0]
        %v708 = vld [vmem:[%s707] ss:$0 sm:$0xff]
        %v709 = vmul.f32 %v706, %v706
        %710 = vadd.xlane.f32.xlu0 %v709
        %v711 = vpop.xlane.xlu0 %710
        %v712 = vsub.f32 %v708, %v711
        %v713 = vrsqrt.pop %v712
        %s714 = scalar_lea.vmem %s104, 8 [#allocation0]
        %v715 = vld [vmem:[%s714] sm:$0xff]
        %s716 = scalar_lea.vmem %s112, 8 [#allocation1]
        %v717 = vld [vmem:[%s716] sm:$0xff]
        %v718 = vmul.f32 %v717, %v706
        %719 = vadd.xlane.f32.xlu0 %v718
        %v720 = vpop.xlane.xlu0 %719
        %v721 = vsub.f32 %v715, %v720
        %v722 = vmul.f32 %v721, %v713
        %vm723 = vcmask 1047554
        %vm724 = vmand %vm704, %vm723
        %v725 = vsel %vm724, %v722, 0.0
        %v726 = vadd.f32 %v717, %v725
        %s727 = scalar_lea.vmem %s112, 8 [#allocation1]
        %728 = vst [vmem:[%s727] sm:$0xff] %v726
        %s729 = scalar_lea.vmem %s104, 16 [#allocation0]
        %v730 = vld [vmem:[%s729] sm:$0xff]
        %s731 = scalar_lea.vmem %s112, 16 [#allocation1]
        %v732 = vld [vmem:[%s731] sm:$0xff]
        %v733 = vmul.f32 %v732, %v706
        %734 = vadd.xlane.f32.xlu0 %v733
        %v735 = vpop.xlane.xlu0 %734
        %v736 = vsub.f32 %v730, %v735
        %v737 = vmul.f32 %v736, %v713
        %v738 = vsel %vm704, %v737, 0.0
        %v739 = vadd.f32 %v732, %v738
        %s740 = scalar_lea.vmem %s112, 16 [#allocation1]
        %741 = vst [vmem:[%s740] sm:$0xff] %v739
        %s742 = scalar_lea.vmem %s104, 24 [#allocation0]
        %v743 = vld [vmem:[%s742] sm:$0xff]
        %s744 = scalar_lea.vmem %s112, 24 [#allocation1]
        %v745 = vld [vmem:[%s744] sm:$0xff]
        %v746 = vmul.f32 %v745, %v706
        %747 = vadd.xlane.f32.xlu0 %v746
        %v748 = vpop.xlane.xlu0 %747
        %v749 = vsub.f32 %v743, %v748
        %v750 = vmul.f32 %v749, %v713
        %v751 = vsel %vm704, %v750, 0.0
        %v752 = vadd.f32 %v745, %v751
        %s753 = scalar_lea.vmem %s112, 24 [#allocation1]
        %754 = vst [vmem:[%s753] sm:$0xff] %v752
        %vm755 = vcmask 97368
        %s756 = scalar_lea.vmem %s112, 11 [#allocation1]
        %v757 = vld [vmem:[%s756] ss:$0 sm:$0xff]
        %s758 = scalar_lea.vmem %s104, 11 [#allocation0]
        %v759 = vld [vmem:[%s758] ss:$0 sm:$0xff]
        %v760 = vmul.f32 %v757, %v757
        %761 = vadd.xlane.f32.xlu0 %v760
        %v762 = vpop.xlane.xlu0 %761
        %v763 = vsub.f32 %v759, %v762
        %v764 = vrsqrt.pop %v763
        %s765 = scalar_lea.vmem %s104, 8 [#allocation0]
        %v766 = vld [vmem:[%s765] sm:$0xff]
        %s767 = scalar_lea.vmem %s112, 8 [#allocation1]
        %v768 = vld [vmem:[%s767] sm:$0xff]
        %v769 = vmul.f32 %v768, %v757
        %770 = vadd.xlane.f32.xlu0 %v769
        %v771 = vpop.xlane.xlu0 %770
        %v772 = vsub.f32 %v766, %v771
        %v773 = vmul.f32 %v772, %v764
        %vm774 = vcmask 1047555
        %vm775 = vmand %vm755, %vm774
        %v776 = vsel %vm775, %v773, 0.0
        %v777 = vadd.f32 %v768, %v776
        %s778 = scalar_lea.vmem %s112, 8 [#allocation1]
        %779 = vst [vmem:[%s778] sm:$0xff] %v777
        %s780 = scalar_lea.vmem %s104, 16 [#allocation0]
        %v781 = vld [vmem:[%s780] sm:$0xff]
        %s782 = scalar_lea.vmem %s112, 16 [#allocation1]
        %v783 = vld [vmem:[%s782] sm:$0xff]
        %v784 = vmul.f32 %v783, %v757
        %785 = vadd.xlane.f32.xlu0 %v784
        %v786 = vpop.xlane.xlu0 %785
        %v787 = vsub.f32 %v781, %v786
        %v788 = vmul.f32 %v787, %v764
        %v789 = vsel %vm755, %v788, 0.0
        %v790 = vadd.f32 %v783, %v789
        %s791 = scalar_lea.vmem %s112, 16 [#allocation1]
        %792 = vst [vmem:[%s791] sm:$0xff] %v790
        %s793 = scalar_lea.vmem %s104, 24 [#allocation0]
        %v794 = vld [vmem:[%s793] sm:$0xff]
        %s795 = scalar_lea.vmem %s112, 24 [#allocation1]
        %v796 = vld [vmem:[%s795] sm:$0xff]
        %v797 = vmul.f32 %v796, %v757
        %798 = vadd.xlane.f32.xlu0 %v797
        %v799 = vpop.xlane.xlu0 %798
        %v800 = vsub.f32 %v794, %v799
        %v801 = vmul.f32 %v800, %v764
        %v802 = vsel %vm755, %v801, 0.0
        %v803 = vadd.f32 %v796, %v802
        %s804 = scalar_lea.vmem %s112, 24 [#allocation1]
        %805 = vst [vmem:[%s804] sm:$0xff] %v803
        %vm806 = vcmask 105568
        %s807 = scalar_lea.vmem %s112, 12 [#allocation1]
        %v808 = vld [vmem:[%s807] ss:$0 sm:$0xff]
        %s809 = scalar_lea.vmem %s104, 12 [#allocation0]
        %v810 = vld [vmem:[%s809] ss:$0 sm:$0xff]
        %v811 = vmul.f32 %v808, %v808
        %812 = vadd.xlane.f32.xlu0 %v811
        %v813 = vpop.xlane.xlu0 %812
        %v814 = vsub.f32 %v810, %v813
        %v815 = vrsqrt.pop %v814
        %s816 = scalar_lea.vmem %s104, 8 [#allocation0]
        %v817 = vld [vmem:[%s816] sm:$0xff]
        %s818 = scalar_lea.vmem %s112, 8 [#allocation1]
        %v819 = vld [vmem:[%s818] sm:$0xff]
        %v820 = vmul.f32 %v819, %v808
        %821 = vadd.xlane.f32.xlu0 %v820
        %v822 = vpop.xlane.xlu0 %821
        %v823 = vsub.f32 %v817, %v822
        %v824 = vmul.f32 %v823, %v815
        %vm825 = vcmask 1047556
        %vm826 = vmand %vm806, %vm825
        %v827 = vsel %vm826, %v824, 0.0
        %v828 = vadd.f32 %v819, %v827
        %s829 = scalar_lea.vmem %s112, 8 [#allocation1]
        %830 = vst [vmem:[%s829] sm:$0xff] %v828
        %s831 = scalar_lea.vmem %s104, 16 [#allocation0]
        %v832 = vld [vmem:[%s831] sm:$0xff]
        %s833 = scalar_lea.vmem %s112, 16 [#allocation1]
        %v834 = vld [vmem:[%s833] sm:$0xff]
        %v835 = vmul.f32 %v834, %v808
        %836 = vadd.xlane.f32.xlu0 %v835
        %v837 = vpop.xlane.xlu0 %836
        %v838 = vsub.f32 %v832, %v837
        %v839 = vmul.f32 %v838, %v815
        %v840 = vsel %vm806, %v839, 0.0
        %v841 = vadd.f32 %v834, %v840
        %s842 = scalar_lea.vmem %s112, 16 [#allocation1]
        %843 = vst [vmem:[%s842] sm:$0xff] %v841
        %s844 = scalar_lea.vmem %s104, 24 [#allocation0]
        %v845 = vld [vmem:[%s844] sm:$0xff]
        %s846 = scalar_lea.vmem %s112, 24 [#allocation1]
        %v847 = vld [vmem:[%s846] sm:$0xff]
        %v848 = vmul.f32 %v847, %v808
        %849 = vadd.xlane.f32.xlu0 %v848
        %v850 = vpop.xlane.xlu0 %849
        %v851 = vsub.f32 %v845, %v850
        %v852 = vmul.f32 %v851, %v815
        %v853 = vsel %vm806, %v852, 0.0
        %v854 = vadd.f32 %v847, %v853
        %s855 = scalar_lea.vmem %s112, 24 [#allocation1]
        %856 = vst [vmem:[%s855] sm:$0xff] %v854
        %vm857 = vcmask 113768
        %s858 = scalar_lea.vmem %s112, 13 [#allocation1]
        %v859 = vld [vmem:[%s858] ss:$0 sm:$0xff]
        %s860 = scalar_lea.vmem %s104, 13 [#allocation0]
        %v861 = vld [vmem:[%s860] ss:$0 sm:$0xff]
        %v862 = vmul.f32 %v859, %v859
        %863 = vadd.xlane.f32.xlu0 %v862
        %v864 = vpop.xlane.xlu0 %863
        %v865 = vsub.f32 %v861, %v864
        %v866 = vrsqrt.pop %v865
        %s867 = scalar_lea.vmem %s104, 8 [#allocation0]
        %v868 = vld [vmem:[%s867] sm:$0xff]
        %s869 = scalar_lea.vmem %s112, 8 [#allocation1]
        %v870 = vld [vmem:[%s869] sm:$0xff]
        %v871 = vmul.f32 %v870, %v859
        %872 = vadd.xlane.f32.xlu0 %v871
        %v873 = vpop.xlane.xlu0 %872
        %v874 = vsub.f32 %v868, %v873
        %v875 = vmul.f32 %v874, %v866
        %vm876 = vcmask 1047557
        %vm877 = vmand %vm857, %vm876
        %v878 = vsel %vm877, %v875, 0.0
        %v879 = vadd.f32 %v870, %v878
        %s880 = scalar_lea.vmem %s112, 8 [#allocation1]
        %881 = vst [vmem:[%s880] sm:$0xff] %v879
        %s882 = scalar_lea.vmem %s104, 16 [#allocation0]
        %v883 = vld [vmem:[%s882] sm:$0xff]
        %s884 = scalar_lea.vmem %s112, 16 [#allocation1]
        %v885 = vld [vmem:[%s884] sm:$0xff]
        %v886 = vmul.f32 %v885, %v859
        %887 = vadd.xlane.f32.xlu0 %v886
        %v888 = vpop.xlane.xlu0 %887
        %v889 = vsub.f32 %v883, %v888
        %v890 = vmul.f32 %v889, %v866
        %v891 = vsel %vm857, %v890, 0.0
        %v892 = vadd.f32 %v885, %v891
        %s893 = scalar_lea.vmem %s112, 16 [#allocation1]
        %894 = vst [vmem:[%s893] sm:$0xff] %v892
        %s895 = scalar_lea.vmem %s104, 24 [#allocation0]
        %v896 = vld [vmem:[%s895] sm:$0xff]
        %s897 = scalar_lea.vmem %s112, 24 [#allocation1]
        %v898 = vld [vmem:[%s897] sm:$0xff]
        %v899 = vmul.f32 %v898, %v859
        %900 = vadd.xlane.f32.xlu0 %v899
        %v901 = vpop.xlane.xlu0 %900
        %v902 = vsub.f32 %v896, %v901
        %v903 = vmul.f32 %v902, %v866
        %v904 = vsel %vm857, %v903, 0.0
        %v905 = vadd.f32 %v898, %v904
        %s906 = scalar_lea.vmem %s112, 24 [#allocation1]
        %907 = vst [vmem:[%s906] sm:$0xff] %v905
        %vm908 = vcmask 121968
        %s909 = scalar_lea.vmem %s112, 14 [#allocation1]
        %v910 = vld [vmem:[%s909] ss:$0 sm:$0xff]
        %s911 = scalar_lea.vmem %s104, 14 [#allocation0]
        %v912 = vld [vmem:[%s911] ss:$0 sm:$0xff]
        %v913 = vmul.f32 %v910, %v910
        %914 = vadd.xlane.f32.xlu0 %v913
        %v915 = vpop.xlane.xlu0 %914
        %v916 = vsub.f32 %v912, %v915
        %v917 = vrsqrt.pop %v916
        %s918 = scalar_lea.vmem %s104, 8 [#allocation0]
        %v919 = vld [vmem:[%s918] sm:$0xff]
        %s920 = scalar_lea.vmem %s112, 8 [#allocation1]
        %v921 = vld [vmem:[%s920] sm:$0xff]
        %v922 = vmul.f32 %v921, %v910
        %923 = vadd.xlane.f32.xlu0 %v922
        %v924 = vpop.xlane.xlu0 %923
        %v925 = vsub.f32 %v919, %v924
        %v926 = vmul.f32 %v925, %v917
        %vm927 = vcmask 1047558
        %vm928 = vmand %vm908, %vm927
        %v929 = vsel %vm928, %v926, 0.0
        %v930 = vadd.f32 %v921, %v929
        %s931 = scalar_lea.vmem %s112, 8 [#allocation1]
        %932 = vst [vmem:[%s931] sm:$0xff] %v930
        %s933 = scalar_lea.vmem %s104, 16 [#allocation0]
        %v934 = vld [vmem:[%s933] sm:$0xff]
        %s935 = scalar_lea.vmem %s112, 16 [#allocation1]
        %v936 = vld [vmem:[%s935] sm:$0xff]
        %v937 = vmul.f32 %v936, %v910
        %938 = vadd.xlane.f32.xlu0 %v937
        %v939 = vpop.xlane.xlu0 %938
        %v940 = vsub.f32 %v934, %v939
        %v941 = vmul.f32 %v940, %v917
        %v942 = vsel %vm908, %v941, 0.0
        %v943 = vadd.f32 %v936, %v942
        %s944 = scalar_lea.vmem %s112, 16 [#allocation1]
        %945 = vst [vmem:[%s944] sm:$0xff] %v943
        %s946 = scalar_lea.vmem %s104, 24 [#allocation0]
        %v947 = vld [vmem:[%s946] sm:$0xff]
        %s948 = scalar_lea.vmem %s112, 24 [#allocation1]
        %v949 = vld [vmem:[%s948] sm:$0xff]
        %v950 = vmul.f32 %v949, %v910
        %951 = vadd.xlane.f32.xlu0 %v950
        %v952 = vpop.xlane.xlu0 %951
        %v953 = vsub.f32 %v947, %v952
        %v954 = vmul.f32 %v953, %v917
        %v955 = vsel %vm908, %v954, 0.0
        %v956 = vadd.f32 %v949, %v955
        %s957 = scalar_lea.vmem %s112, 24 [#allocation1]
        %958 = vst [vmem:[%s957] sm:$0xff] %v956
        %vm959 = vcmask 130168
        %s960 = scalar_lea.vmem %s112, 15 [#allocation1]
        %v961 = vld [vmem:[%s960] ss:$0 sm:$0xff]
        %s962 = scalar_lea.vmem %s104, 15 [#allocation0]
        %v963 = vld [vmem:[%s962] ss:$0 sm:$0xff]
        %v964 = vmul.f32 %v961, %v961
        %965 = vadd.xlane.f32.xlu0 %v964
        %v966 = vpop.xlane.xlu0 %965
        %v967 = vsub.f32 %v963, %v966
        %v968 = vrsqrt.pop %v967
        %s969 = scalar_lea.vmem %s104, 8 [#allocation0]
        %v970 = vld [vmem:[%s969] sm:$0xff]
        %s971 = scalar_lea.vmem %s112, 8 [#allocation1]
        %v972 = vld [vmem:[%s971] sm:$0xff]
        %v973 = vmul.f32 %v972, %v961
        %974 = vadd.xlane.f32.xlu0 %v973
        %v975 = vpop.xlane.xlu0 %974
        %v976 = vsub.f32 %v970, %v975
        %v977 = vmul.f32 %v976, %v968
        %vm978 = vcmask 1047559
        %vm979 = vmand %vm959, %vm978
        %v980 = vsel %vm979, %v977, 0.0
        %v981 = vadd.f32 %v972, %v980
        %s982 = scalar_lea.vmem %s112, 8 [#allocation1]
        %983 = vst [vmem:[%s982] sm:$0xff] %v981
        %s984 = scalar_lea.vmem %s104, 16 [#allocation0]
        %v985 = vld [vmem:[%s984] sm:$0xff]
        %s986 = scalar_lea.vmem %s112, 16 [#allocation1]
        %v987 = vld [vmem:[%s986] sm:$0xff]
        %v988 = vmul.f32 %v987, %v961
        %989 = vadd.xlane.f32.xlu0 %v988
        %v990 = vpop.xlane.xlu0 %989
        %v991 = vsub.f32 %v985, %v990
        %v992 = vmul.f32 %v991, %v968
        %v993 = vsel %vm959, %v992, 0.0
        %v994 = vadd.f32 %v987, %v993
        %s995 = scalar_lea.vmem %s112, 16 [#allocation1]
        %996 = vst [vmem:[%s995] sm:$0xff] %v994
        %s997 = scalar_lea.vmem %s104, 24 [#allocation0]
        %v998 = vld [vmem:[%s997] sm:$0xff]
        %s999 = scalar_lea.vmem %s112, 24 [#allocation1]
        %v1000 = vld [vmem:[%s999] sm:$0xff]
        %v1001 = vmul.f32 %v1000, %v961
        %1002 = vadd.xlane.f32.xlu0 %v1001
        %v1003 = vpop.xlane.xlu0 %1002
        %v1004 = vsub.f32 %v998, %v1003
        %v1005 = vmul.f32 %v1004, %v968
        %v1006 = vsel %vm959, %v1005, 0.0
        %v1007 = vadd.f32 %v1000, %v1006
        %s1008 = scalar_lea.vmem %s112, 24 [#allocation1]
        %1009 = vst [vmem:[%s1008] sm:$0xff] %v1007
        %vm1010 = vcmask 138368
        %s1011 = scalar_lea.vmem %s112, 16 [#allocation1]
        %v1012 = vld [vmem:[%s1011] ss:$0 sm:$0xff]
        %s1013 = scalar_lea.vmem %s104, 16 [#allocation0]
        %v1014 = vld [vmem:[%s1013] ss:$0 sm:$0xff]
        %v1015 = vmul.f32 %v1012, %v1012
        %1016 = vadd.xlane.f32.xlu0 %v1015
        %v1017 = vpop.xlane.xlu0 %1016
        %v1018 = vsub.f32 %v1014, %v1017
        %v1019 = vrsqrt.pop %v1018
        %s1020 = scalar_lea.vmem %s104, 16 [#allocation0]
        %v1021 = vld [vmem:[%s1020] sm:$0xff]
        %s1022 = scalar_lea.vmem %s112, 16 [#allocation1]
        %v1023 = vld [vmem:[%s1022] sm:$0xff]
        %v1024 = vmul.f32 %v1023, %v1012
        %1025 = vadd.xlane.f32.xlu0 %v1024
        %v1026 = vpop.xlane.xlu0 %1025
        %v1027 = vsub.f32 %v1021, %v1026
        %v1028 = vmul.f32 %v1027, %v1019
        %v1029 = vsel %vm1010, %v1028, 0.0
        %v1030 = vadd.f32 %v1023, %v1029
        %s1031 = scalar_lea.vmem %s112, 16 [#allocation1]
        %1032 = vst [vmem:[%s1031] sm:$0xff] %v1030
        %s1033 = scalar_lea.vmem %s104, 24 [#allocation0]
        %v1034 = vld [vmem:[%s1033] sm:$0xff]
        %s1035 = scalar_lea.vmem %s112, 24 [#allocation1]
        %v1036 = vld [vmem:[%s1035] sm:$0xff]
        %v1037 = vmul.f32 %v1036, %v1012
        %1038 = vadd.xlane.f32.xlu0 %v1037
        %v1039 = vpop.xlane.xlu0 %1038
        %v1040 = vsub.f32 %v1034, %v1039
        %v1041 = vmul.f32 %v1040, %v1019
        %v1042 = vsel %vm1010, %v1041, 0.0
        %v1043 = vadd.f32 %v1036, %v1042
        %s1044 = scalar_lea.vmem %s112, 24 [#allocation1]
        %1045 = vst [vmem:[%s1044] sm:$0xff] %v1043
        %vm1046 = vcmask 146568
        %s1047 = scalar_lea.vmem %s112, 17 [#allocation1]
        %v1048 = vld [vmem:[%s1047] ss:$0 sm:$0xff]
        %s1049 = scalar_lea.vmem %s104, 17 [#allocation0]
        %v1050 = vld [vmem:[%s1049] ss:$0 sm:$0xff]
        %v1051 = vmul.f32 %v1048, %v1048
        %1052 = vadd.xlane.f32.xlu0 %v1051
        %v1053 = vpop.xlane.xlu0 %1052
        %v1054 = vsub.f32 %v1050, %v1053
        %v1055 = vrsqrt.pop %v1054
        %s1056 = scalar_lea.vmem %s104, 16 [#allocation0]
        %v1057 = vld [vmem:[%s1056] sm:$0xff]
        %s1058 = scalar_lea.vmem %s112, 16 [#allocation1]
        %v1059 = vld [vmem:[%s1058] sm:$0xff]
        %v1060 = vmul.f32 %v1059, %v1048
        %1061 = vadd.xlane.f32.xlu0 %v1060
        %v1062 = vpop.xlane.xlu0 %1061
        %v1063 = vsub.f32 %v1057, %v1062
        %v1064 = vmul.f32 %v1063, %v1055
        %vm1065 = vcmask 1047553
        %vm1066 = vmand %vm1046, %vm1065
        %v1067 = vsel %vm1066, %v1064, 0.0
        %v1068 = vadd.f32 %v1059, %v1067
        %s1069 = scalar_lea.vmem %s112, 16 [#allocation1]
        %1070 = vst [vmem:[%s1069] sm:$0xff] %v1068
        %s1071 = scalar_lea.vmem %s104, 24 [#allocation0]
        %v1072 = vld [vmem:[%s1071] sm:$0xff]
        %s1073 = scalar_lea.vmem %s112, 24 [#allocation1]
        %v1074 = vld [vmem:[%s1073] sm:$0xff]
        %v1075 = vmul.f32 %v1074, %v1048
        %1076 = vadd.xlane.f32.xlu0 %v1075
        %v1077 = vpop.xlane.xlu0 %1076
        %v1078 = vsub.f32 %v1072, %v1077
        %v1079 = vmul.f32 %v1078, %v1055
        %v1080 = vsel %vm1046, %v1079, 0.0
        %v1081 = vadd.f32 %v1074, %v1080
        %s1082 = scalar_lea.vmem %s112, 24 [#allocation1]
        %1083 = vst [vmem:[%s1082] sm:$0xff] %v1081
        %vm1084 = vcmask 154768
        %s1085 = scalar_lea.vmem %s112, 18 [#allocation1]
        %v1086 = vld [vmem:[%s1085] ss:$0 sm:$0xff]
        %s1087 = scalar_lea.vmem %s104, 18 [#allocation0]
        %v1088 = vld [vmem:[%s1087] ss:$0 sm:$0xff]
        %v1089 = vmul.f32 %v1086, %v1086
        %1090 = vadd.xlane.f32.xlu0 %v1089
        %v1091 = vpop.xlane.xlu0 %1090
        %v1092 = vsub.f32 %v1088, %v1091
        %v1093 = vrsqrt.pop %v1092
        %s1094 = scalar_lea.vmem %s104, 16 [#allocation0]
        %v1095 = vld [vmem:[%s1094] sm:$0xff]
        %s1096 = scalar_lea.vmem %s112, 16 [#allocation1]
        %v1097 = vld [vmem:[%s1096] sm:$0xff]
        %v1098 = vmul.f32 %v1097, %v1086
        %1099 = vadd.xlane.f32.xlu0 %v1098
        %v1100 = vpop.xlane.xlu0 %1099
        %v1101 = vsub.f32 %v1095, %v1100
        %v1102 = vmul.f32 %v1101, %v1093
        %vm1103 = vcmask 1047554
        %vm1104 = vmand %vm1084, %vm1103
        %v1105 = vsel %vm1104, %v1102, 0.0
        %v1106 = vadd.f32 %v1097, %v1105
        %s1107 = scalar_lea.vmem %s112, 16 [#allocation1]
        %1108 = vst [vmem:[%s1107] sm:$0xff] %v1106
        %s1109 = scalar_lea.vmem %s104, 24 [#allocation0]
        %v1110 = vld [vmem:[%s1109] sm:$0xff]
        %s1111 = scalar_lea.vmem %s112, 24 [#allocation1]
        %v1112 = vld [vmem:[%s1111] sm:$0xff]
        %v1113 = vmul.f32 %v1112, %v1086
        %1114 = vadd.xlane.f32.xlu0 %v1113
        %v1115 = vpop.xlane.xlu0 %1114
        %v1116 = vsub.f32 %v1110, %v1115
        %v1117 = vmul.f32 %v1116, %v1093
        %v1118 = vsel %vm1084, %v1117, 0.0
        %v1119 = vadd.f32 %v1112, %v1118
        %s1120 = scalar_lea.vmem %s112, 24 [#allocation1]
        %1121 = vst [vmem:[%s1120] sm:$0xff] %v1119
        %vm1122 = vcmask 162968
        %s1123 = scalar_lea.vmem %s112, 19 [#allocation1]
        %v1124 = vld [vmem:[%s1123] ss:$0 sm:$0xff]
        %s1125 = scalar_lea.vmem %s104, 19 [#allocation0]
        %v1126 = vld [vmem:[%s1125] ss:$0 sm:$0xff]
        %v1127 = vmul.f32 %v1124, %v1124
        %1128 = vadd.xlane.f32.xlu0 %v1127
        %v1129 = vpop.xlane.xlu0 %1128
        %v1130 = vsub.f32 %v1126, %v1129
        %v1131 = vrsqrt.pop %v1130
        %s1132 = scalar_lea.vmem %s104, 16 [#allocation0]
        %v1133 = vld [vmem:[%s1132] sm:$0xff]
        %s1134 = scalar_lea.vmem %s112, 16 [#allocation1]
        %v1135 = vld [vmem:[%s1134] sm:$0xff]
        %v1136 = vmul.f32 %v1135, %v1124
        %1137 = vadd.xlane.f32.xlu0 %v1136
        %v1138 = vpop.xlane.xlu0 %1137
        %v1139 = vsub.f32 %v1133, %v1138
        %v1140 = vmul.f32 %v1139, %v1131
        %vm1141 = vcmask 1047555
        %vm1142 = vmand %vm1122, %vm1141
        %v1143 = vsel %vm1142, %v1140, 0.0
        %v1144 = vadd.f32 %v1135, %v1143
        %s1145 = scalar_lea.vmem %s112, 16 [#allocation1]
        %1146 = vst [vmem:[%s1145] sm:$0xff] %v1144
        %s1147 = scalar_lea.vmem %s104, 24 [#allocation0]
        %v1148 = vld [vmem:[%s1147] sm:$0xff]
        %s1149 = scalar_lea.vmem %s112, 24 [#allocation1]
        %v1150 = vld [vmem:[%s1149] sm:$0xff]
        %v1151 = vmul.f32 %v1150, %v1124
        %1152 = vadd.xlane.f32.xlu0 %v1151
        %v1153 = vpop.xlane.xlu0 %1152
        %v1154 = vsub.f32 %v1148, %v1153
        %v1155 = vmul.f32 %v1154, %v1131
        %v1156 = vsel %vm1122, %v1155, 0.0
        %v1157 = vadd.f32 %v1150, %v1156
        %s1158 = scalar_lea.vmem %s112, 24 [#allocation1]
        %1159 = vst [vmem:[%s1158] sm:$0xff] %v1157
        %vm1160 = vcmask 171168
        %s1161 = scalar_lea.vmem %s112, 20 [#allocation1]
        %v1162 = vld [vmem:[%s1161] ss:$0 sm:$0xff]
        %s1163 = scalar_lea.vmem %s104, 20 [#allocation0]
        %v1164 = vld [vmem:[%s1163] ss:$0 sm:$0xff]
        %v1165 = vmul.f32 %v1162, %v1162
        %1166 = vadd.xlane.f32.xlu0 %v1165
        %v1167 = vpop.xlane.xlu0 %1166
        %v1168 = vsub.f32 %v1164, %v1167
        %v1169 = vrsqrt.pop %v1168
        %s1170 = scalar_lea.vmem %s104, 16 [#allocation0]
        %v1171 = vld [vmem:[%s1170] sm:$0xff]
        %s1172 = scalar_lea.vmem %s112, 16 [#allocation1]
        %v1173 = vld [vmem:[%s1172] sm:$0xff]
        %v1174 = vmul.f32 %v1173, %v1162
        %1175 = vadd.xlane.f32.xlu0 %v1174
        %v1176 = vpop.xlane.xlu0 %1175
        %v1177 = vsub.f32 %v1171, %v1176
        %v1178 = vmul.f32 %v1177, %v1169
        %vm1179 = vcmask 1047556
        %vm1180 = vmand %vm1160, %vm1179
        %v1181 = vsel %vm1180, %v1178, 0.0
        %v1182 = vadd.f32 %v1173, %v1181
        %s1183 = scalar_lea.vmem %s112, 16 [#allocation1]
        %1184 = vst [vmem:[%s1183] sm:$0xff] %v1182
        %s1185 = scalar_lea.vmem %s104, 24 [#allocation0]
        %v1186 = vld [vmem:[%s1185] sm:$0xff]
        %s1187 = scalar_lea.vmem %s112, 24 [#allocation1]
        %v1188 = vld [vmem:[%s1187] sm:$0xff]
        %v1189 = vmul.f32 %v1188, %v1162
        %1190 = vadd.xlane.f32.xlu0 %v1189
        %v1191 = vpop.xlane.xlu0 %1190
        %v1192 = vsub.f32 %v1186, %v1191
        %v1193 = vmul.f32 %v1192, %v1169
        %v1194 = vsel %vm1160, %v1193, 0.0
        %v1195 = vadd.f32 %v1188, %v1194
        %s1196 = scalar_lea.vmem %s112, 24 [#allocation1]
        %1197 = vst [vmem:[%s1196] sm:$0xff] %v1195
        %vm1198 = vcmask 179368
        %s1199 = scalar_lea.vmem %s112, 21 [#allocation1]
        %v1200 = vld [vmem:[%s1199] ss:$0 sm:$0xff]
        %s1201 = scalar_lea.vmem %s104, 21 [#allocation0]
        %v1202 = vld [vmem:[%s1201] ss:$0 sm:$0xff]
        %v1203 = vmul.f32 %v1200, %v1200
        %1204 = vadd.xlane.f32.xlu0 %v1203
        %v1205 = vpop.xlane.xlu0 %1204
        %v1206 = vsub.f32 %v1202, %v1205
        %v1207 = vrsqrt.pop %v1206
        %s1208 = scalar_lea.vmem %s104, 16 [#allocation0]
        %v1209 = vld [vmem:[%s1208] sm:$0xff]
        %s1210 = scalar_lea.vmem %s112, 16 [#allocation1]
        %v1211 = vld [vmem:[%s1210] sm:$0xff]
        %v1212 = vmul.f32 %v1211, %v1200
        %1213 = vadd.xlane.f32.xlu0 %v1212
        %v1214 = vpop.xlane.xlu0 %1213
        %v1215 = vsub.f32 %v1209, %v1214
        %v1216 = vmul.f32 %v1215, %v1207
        %vm1217 = vcmask 1047557
        %vm1218 = vmand %vm1198, %vm1217
        %v1219 = vsel %vm1218, %v1216, 0.0
        %v1220 = vadd.f32 %v1211, %v1219
        %s1221 = scalar_lea.vmem %s112, 16 [#allocation1]
        %1222 = vst [vmem:[%s1221] sm:$0xff] %v1220
        %s1223 = scalar_lea.vmem %s104, 24 [#allocation0]
        %v1224 = vld [vmem:[%s1223] sm:$0xff]
        %s1225 = scalar_lea.vmem %s112, 24 [#allocation1]
        %v1226 = vld [vmem:[%s1225] sm:$0xff]
        %v1227 = vmul.f32 %v1226, %v1200
        %1228 = vadd.xlane.f32.xlu0 %v1227
        %v1229 = vpop.xlane.xlu0 %1228
        %v1230 = vsub.f32 %v1224, %v1229
        %v1231 = vmul.f32 %v1230, %v1207
        %v1232 = vsel %vm1198, %v1231, 0.0
        %v1233 = vadd.f32 %v1226, %v1232
        %s1234 = scalar_lea.vmem %s112, 24 [#allocation1]
        %1235 = vst [vmem:[%s1234] sm:$0xff] %v1233
        %vm1236 = vcmask 187568
        %s1237 = scalar_lea.vmem %s112, 22 [#allocation1]
        %v1238 = vld [vmem:[%s1237] ss:$0 sm:$0xff]
        %s1239 = scalar_lea.vmem %s104, 22 [#allocation0]
        %v1240 = vld [vmem:[%s1239] ss:$0 sm:$0xff]
        %v1241 = vmul.f32 %v1238, %v1238
        %1242 = vadd.xlane.f32.xlu0 %v1241
        %v1243 = vpop.xlane.xlu0 %1242
        %v1244 = vsub.f32 %v1240, %v1243
        %v1245 = vrsqrt.pop %v1244
        %s1246 = scalar_lea.vmem %s104, 16 [#allocation0]
        %v1247 = vld [vmem:[%s1246] sm:$0xff]
        %s1248 = scalar_lea.vmem %s112, 16 [#allocation1]
        %v1249 = vld [vmem:[%s1248] sm:$0xff]
        %v1250 = vmul.f32 %v1249, %v1238
        %1251 = vadd.xlane.f32.xlu0 %v1250
        %v1252 = vpop.xlane.xlu0 %1251
        %v1253 = vsub.f32 %v1247, %v1252
        %v1254 = vmul.f32 %v1253, %v1245
        %vm1255 = vcmask 1047558
        %vm1256 = vmand %vm1236, %vm1255
        %v1257 = vsel %vm1256, %v1254, 0.0
        %v1258 = vadd.f32 %v1249, %v1257
        %s1259 = scalar_lea.vmem %s112, 16 [#allocation1]
        %1260 = vst [vmem:[%s1259] sm:$0xff] %v1258
        %s1261 = scalar_lea.vmem %s104, 24 [#allocation0]
        %v1262 = vld [vmem:[%s1261] sm:$0xff]
        %s1263 = scalar_lea.vmem %s112, 24 [#allocation1]
        %v1264 = vld [vmem:[%s1263] sm:$0xff]
        %v1265 = vmul.f32 %v1264, %v1238
        %1266 = vadd.xlane.f32.xlu0 %v1265
        %v1267 = vpop.xlane.xlu0 %1266
        %v1268 = vsub.f32 %v1262, %v1267
        %v1269 = vmul.f32 %v1268, %v1245
        %v1270 = vsel %vm1236, %v1269, 0.0
        %v1271 = vadd.f32 %v1264, %v1270
        %s1272 = scalar_lea.vmem %s112, 24 [#allocation1]
        %1273 = vst [vmem:[%s1272] sm:$0xff] %v1271
        %vm1274 = vcmask 195768
        %s1275 = scalar_lea.vmem %s112, 23 [#allocation1]
        %v1276 = vld [vmem:[%s1275] ss:$0 sm:$0xff]
        %s1277 = scalar_lea.vmem %s104, 23 [#allocation0]
        %v1278 = vld [vmem:[%s1277] ss:$0 sm:$0xff]
        %v1279 = vmul.f32 %v1276, %v1276
        %1280 = vadd.xlane.f32.xlu0 %v1279
        %v1281 = vpop.xlane.xlu0 %1280
        %v1282 = vsub.f32 %v1278, %v1281
        %v1283 = vrsqrt.pop %v1282
        %s1284 = scalar_lea.vmem %s104, 16 [#allocation0]
        %v1285 = vld [vmem:[%s1284] sm:$0xff]
        %s1286 = scalar_lea.vmem %s112, 16 [#allocation1]
        %v1287 = vld [vmem:[%s1286] sm:$0xff]
        %v1288 = vmul.f32 %v1287, %v1276
        %1289 = vadd.xlane.f32.xlu0 %v1288
        %v1290 = vpop.xlane.xlu0 %1289
        %v1291 = vsub.f32 %v1285, %v1290
        %v1292 = vmul.f32 %v1291, %v1283
        %vm1293 = vcmask 1047559
        %vm1294 = vmand %vm1274, %vm1293
        %v1295 = vsel %vm1294, %v1292, 0.0
        %v1296 = vadd.f32 %v1287, %v1295
        %s1297 = scalar_lea.vmem %s112, 16 [#allocation1]
        %1298 = vst [vmem:[%s1297] sm:$0xff] %v1296
        %s1299 = scalar_lea.vmem %s104, 24 [#allocation0]
        %v1300 = vld [vmem:[%s1299] sm:$0xff]
        %s1301 = scalar_lea.vmem %s112, 24 [#allocation1]
        %v1302 = vld [vmem:[%s1301] sm:$0xff]
        %v1303 = vmul.f32 %v1302, %v1276
        %1304 = vadd.xlane.f32.xlu0 %v1303
        %v1305 = vpop.xlane.xlu0 %1304
        %v1306 = vsub.f32 %v1300, %v1305
        %v1307 = vmul.f32 %v1306, %v1283
        %v1308 = vsel %vm1274, %v1307, 0.0
        %v1309 = vadd.f32 %v1302, %v1308
        %s1310 = scalar_lea.vmem %s112, 24 [#allocation1]
        %1311 = vst [vmem:[%s1310] sm:$0xff] %v1309
        %vm1312 = vcmask 203968
        %s1313 = scalar_lea.vmem %s112, 24 [#allocation1]
        %v1314 = vld [vmem:[%s1313] ss:$0 sm:$0xff]
        %s1315 = scalar_lea.vmem %s104, 24 [#allocation0]
        %v1316 = vld [vmem:[%s1315] ss:$0 sm:$0xff]
        %v1317 = vmul.f32 %v1314, %v1314
        %1318 = vadd.xlane.f32.xlu0 %v1317
        %v1319 = vpop.xlane.xlu0 %1318
        %v1320 = vsub.f32 %v1316, %v1319
        %v1321 = vrsqrt.pop %v1320
        %s1322 = scalar_lea.vmem %s104, 24 [#allocation0]
        %v1323 = vld [vmem:[%s1322] sm:$0xff]
        %s1324 = scalar_lea.vmem %s112, 24 [#allocation1]
        %v1325 = vld [vmem:[%s1324] sm:$0xff]
        %v1326 = vmul.f32 %v1325, %v1314
        %1327 = vadd.xlane.f32.xlu0 %v1326
        %v1328 = vpop.xlane.xlu0 %1327
        %v1329 = vsub.f32 %v1323, %v1328
        %v1330 = vmul.f32 %v1329, %v1321
        %v1331 = vsel %vm1312, %v1330, 0.0
        %v1332 = vadd.f32 %v1325, %v1331
        %s1333 = scalar_lea.vmem %s112, 24 [#allocation1]
        %1334 = vst [vmem:[%s1333] sm:$0xff] %v1332
        %vm1335 = vcmask 212168
        %s1336 = scalar_lea.vmem %s112, 25 [#allocation1]
        %v1337 = vld [vmem:[%s1336] ss:$0 sm:$0xff]
        %s1338 = scalar_lea.vmem %s104, 25 [#allocation0]
        %v1339 = vld [vmem:[%s1338] ss:$0 sm:$0xff]
        %v1340 = vmul.f32 %v1337, %v1337
        %1341 = vadd.xlane.f32.xlu0 %v1340
        %v1342 = vpop.xlane.xlu0 %1341
        %v1343 = vsub.f32 %v1339, %v1342
        %v1344 = vrsqrt.pop %v1343
        %s1345 = scalar_lea.vmem %s104, 24 [#allocation0]
        %v1346 = vld [vmem:[%s1345] sm:$0xff]
        %s1347 = scalar_lea.vmem %s112, 24 [#allocation1]
        %v1348 = vld [vmem:[%s1347] sm:$0xff]
        %v1349 = vmul.f32 %v1348, %v1337
        %1350 = vadd.xlane.f32.xlu0 %v1349
        %v1351 = vpop.xlane.xlu0 %1350
        %v1352 = vsub.f32 %v1346, %v1351
        %v1353 = vmul.f32 %v1352, %v1344
        %vm1354 = vcmask 1047553
        %vm1355 = vmand %vm1335, %vm1354
        %v1356 = vsel %vm1355, %v1353, 0.0
        %v1357 = vadd.f32 %v1348, %v1356
        %s1358 = scalar_lea.vmem %s112, 24 [#allocation1]
        %1359 = vst [vmem:[%s1358] sm:$0xff] %v1357
        %vm1360 = vcmask 220368
        %s1361 = scalar_lea.vmem %s112, 26 [#allocation1]
        %v1362 = vld [vmem:[%s1361] ss:$0 sm:$0xff]
        %s1363 = scalar_lea.vmem %s104, 26 [#allocation0]
        %v1364 = vld [vmem:[%s1363] ss:$0 sm:$0xff]
        %v1365 = vmul.f32 %v1362, %v1362
        %1366 = vadd.xlane.f32.xlu0 %v1365
        %v1367 = vpop.xlane.xlu0 %1366
        %v1368 = vsub.f32 %v1364, %v1367
        %v1369 = vrsqrt.pop %v1368
        %s1370 = scalar_lea.vmem %s104, 24 [#allocation0]
        %v1371 = vld [vmem:[%s1370] sm:$0xff]
        %s1372 = scalar_lea.vmem %s112, 24 [#allocation1]
        %v1373 = vld [vmem:[%s1372] sm:$0xff]
        %v1374 = vmul.f32 %v1373, %v1362
        %1375 = vadd.xlane.f32.xlu0 %v1374
        %v1376 = vpop.xlane.xlu0 %1375
        %v1377 = vsub.f32 %v1371, %v1376
        %v1378 = vmul.f32 %v1377, %v1369
        %vm1379 = vcmask 1047554
        %vm1380 = vmand %vm1360, %vm1379
        %v1381 = vsel %vm1380, %v1378, 0.0
        %v1382 = vadd.f32 %v1373, %v1381
        %s1383 = scalar_lea.vmem %s112, 24 [#allocation1]
        %1384 = vst [vmem:[%s1383] sm:$0xff] %v1382
        %vm1385 = vcmask 228568
        %s1386 = scalar_lea.vmem %s112, 27 [#allocation1]
        %v1387 = vld [vmem:[%s1386] ss:$0 sm:$0xff]
        %s1388 = scalar_lea.vmem %s104, 27 [#allocation0]
        %v1389 = vld [vmem:[%s1388] ss:$0 sm:$0xff]
        %v1390 = vmul.f32 %v1387, %v1387
        %1391 = vadd.xlane.f32.xlu0 %v1390
        %v1392 = vpop.xlane.xlu0 %1391
        %v1393 = vsub.f32 %v1389, %v1392
        %v1394 = vrsqrt.pop %v1393
        %s1395 = scalar_lea.vmem %s104, 24 [#allocation0]
        %v1396 = vld [vmem:[%s1395] sm:$0xff]
        %s1397 = scalar_lea.vmem %s112, 24 [#allocation1]
        %v1398 = vld [vmem:[%s1397] sm:$0xff]
        %v1399 = vmul.f32 %v1398, %v1387
        %1400 = vadd.xlane.f32.xlu0 %v1399
        %v1401 = vpop.xlane.xlu0 %1400
        %v1402 = vsub.f32 %v1396, %v1401
        %v1403 = vmul.f32 %v1402, %v1394
        %vm1404 = vcmask 1047555
        %vm1405 = vmand %vm1385, %vm1404
        %v1406 = vsel %vm1405, %v1403, 0.0
        %v1407 = vadd.f32 %v1398, %v1406
        %s1408 = scalar_lea.vmem %s112, 24 [#allocation1]
        %1409 = vst [vmem:[%s1408] sm:$0xff] %v1407
        %vm1410 = vcmask 236768
        %s1411 = scalar_lea.vmem %s112, 28 [#allocation1]
        %v1412 = vld [vmem:[%s1411] ss:$0 sm:$0xff]
        %s1413 = scalar_lea.vmem %s104, 28 [#allocation0]
        %v1414 = vld [vmem:[%s1413] ss:$0 sm:$0xff]
        %v1415 = vmul.f32 %v1412, %v1412
        %1416 = vadd.xlane.f32.xlu0 %v1415
        %v1417 = vpop.xlane.xlu0 %1416
        %v1418 = vsub.f32 %v1414, %v1417
        %v1419 = vrsqrt.pop %v1418
        %s1420 = scalar_lea.vmem %s104, 24 [#allocation0]
        %v1421 = vld [vmem:[%s1420] sm:$0xff]
        %s1422 = scalar_lea.vmem %s112, 24 [#allocation1]
        %v1423 = vld [vmem:[%s1422] sm:$0xff]
        %v1424 = vmul.f32 %v1423, %v1412
        %1425 = vadd.xlane.f32.xlu0 %v1424
        %v1426 = vpop.xlane.xlu0 %1425
        %v1427 = vsub.f32 %v1421, %v1426
        %v1428 = vmul.f32 %v1427, %v1419
        %vm1429 = vcmask 1047556
        %vm1430 = vmand %vm1410, %vm1429
        %v1431 = vsel %vm1430, %v1428, 0.0
        %v1432 = vadd.f32 %v1423, %v1431
        %s1433 = scalar_lea.vmem %s112, 24 [#allocation1]
        %1434 = vst [vmem:[%s1433] sm:$0xff] %v1432
        %vm1435 = vcmask 244968
        %s1436 = scalar_lea.vmem %s112, 29 [#allocation1]
        %v1437 = vld [vmem:[%s1436] ss:$0 sm:$0xff]
        %s1438 = scalar_lea.vmem %s104, 29 [#allocation0]
        %v1439 = vld [vmem:[%s1438] ss:$0 sm:$0xff]
        %v1440 = vmul.f32 %v1437, %v1437
        %1441 = vadd.xlane.f32.xlu0 %v1440
        %v1442 = vpop.xlane.xlu0 %1441
        %v1443 = vsub.f32 %v1439, %v1442
        %v1444 = vrsqrt.pop %v1443
        %s1445 = scalar_lea.vmem %s104, 24 [#allocation0]
        %v1446 = vld [vmem:[%s1445] sm:$0xff]
        %s1447 = scalar_lea.vmem %s112, 24 [#allocation1]
        %v1448 = vld [vmem:[%s1447] sm:$0xff]
        %v1449 = vmul.f32 %v1448, %v1437
        %1450 = vadd.xlane.f32.xlu0 %v1449
        %v1451 = vpop.xlane.xlu0 %1450
        %v1452 = vsub.f32 %v1446, %v1451
        %v1453 = vmul.f32 %v1452, %v1444
        %vm1454 = vcmask 1047557
        %vm1455 = vmand %vm1435, %vm1454
        %v1456 = vsel %vm1455, %v1453, 0.0
        %v1457 = vadd.f32 %v1448, %v1456
        %s1458 = scalar_lea.vmem %s112, 24 [#allocation1]
        %1459 = vst [vmem:[%s1458] sm:$0xff] %v1457
        %vm1460 = vcmask 253168
        %s1461 = scalar_lea.vmem %s112, 30 [#allocation1]
        %v1462 = vld [vmem:[%s1461] ss:$0 sm:$0xff]
        %s1463 = scalar_lea.vmem %s104, 30 [#allocation0]
        %v1464 = vld [vmem:[%s1463] ss:$0 sm:$0xff]
        %v1465 = vmul.f32 %v1462, %v1462
        %1466 = vadd.xlane.f32.xlu0 %v1465
        %v1467 = vpop.xlane.xlu0 %1466
        %v1468 = vsub.f32 %v1464, %v1467
        %v1469 = vrsqrt.pop %v1468
        %s1470 = scalar_lea.vmem %s104, 24 [#allocation0]
        %v1471 = vld [vmem:[%s1470] sm:$0xff]
        %s1472 = scalar_lea.vmem %s112, 24 [#allocation1]
        %v1473 = vld [vmem:[%s1472] sm:$0xff]
        %v1474 = vmul.f32 %v1473, %v1462
        %1475 = vadd.xlane.f32.xlu0 %v1474
        %v1476 = vpop.xlane.xlu0 %1475
        %v1477 = vsub.f32 %v1471, %v1476
        %v1478 = vmul.f32 %v1477, %v1469
        %vm1479 = vcmask 1047558
        %vm1480 = vmand %vm1460, %vm1479
        %v1481 = vsel %vm1480, %v1478, 0.0
        %v1482 = vadd.f32 %v1473, %v1481
        %s1483 = scalar_lea.vmem %s112, 24 [#allocation1]
        %1484 = vst [vmem:[%s1483] sm:$0xff] %v1482
        %vm1485 = vcmask 261368
        %s1486 = scalar_lea.vmem %s112, 31 [#allocation1]
        %v1487 = vld [vmem:[%s1486] ss:$0 sm:$0xff]
        %s1488 = scalar_lea.vmem %s104, 31 [#allocation0]
        %v1489 = vld [vmem:[%s1488] ss:$0 sm:$0xff]
        %v1490 = vmul.f32 %v1487, %v1487
        %1491 = vadd.xlane.f32.xlu0 %v1490
        %v1492 = vpop.xlane.xlu0 %1491
        %v1493 = vsub.f32 %v1489, %v1492
        %v1494 = vrsqrt.pop %v1493
        %s1495 = scalar_lea.vmem %s104, 24 [#allocation0]
        %v1496 = vld [vmem:[%s1495] sm:$0xff]
        %s1497 = scalar_lea.vmem %s112, 24 [#allocation1]
        %v1498 = vld [vmem:[%s1497] sm:$0xff]
        %v1499 = vmul.f32 %v1498, %v1487
        %1500 = vadd.xlane.f32.xlu0 %v1499
        %v1501 = vpop.xlane.xlu0 %1500
        %v1502 = vsub.f32 %v1496, %v1501
        %v1503 = vmul.f32 %v1502, %v1494
        %vm1504 = vcmask 1047559
        %vm1505 = vmand %vm1485, %vm1504
        %v1506 = vsel %vm1505, %v1503, 0.0
        %v1507 = vadd.f32 %v1498, %v1506
        %s1508 = scalar_lea.vmem %s112, 24 [#allocation1]
        %1509 = vst [vmem:[%s1508] sm:$0xff] %v1507
        %s1510 = sand.u32 %s8, 1
        %s1511 = sand.u32 %s8, 1
        %s1512 = smul.addr %s1511, 32
        %s1513 = scalar_lea.vmem [#allocation1], %s1512
        %s1514 = sadd.s32 %s15, %s14
        %s1515 = smul.addr %s13, 4
        %s1516 = sadd.s32 %s1514, %s1515
        %s1517 = smul.addr %s1516, 8
        %s1518 = scalar_lea.vmem %s1, %s1517
        // Predicated region
        $region55: #{custom-call.11} parent=53 // pred_check
          _
        $region56: #{custom-call.11} parent=53 // pred_check_branch
          %1520 = sbr.rel (0) target = $region58
        $region57: #{custom-call.11} parent=53 // pred_region
          // Predicated region
          $region59: #{custom-call.11} parent=57 // pred_check
            _
          $region60: #{custom-call.11} parent=57 // pred_check_branch
            %1522 = sbr.rel (0) target = $region62
          $region61: #{custom-call.11} parent=57 // pred_region
            // Predicated region
            $region74: #{custom-call.11} parent=61 // pred_check
              _
            $region75: #{custom-call.11} parent=61 // pred_check_branch
              %1543 = sbr.rel (0) target = $region77
            $region76: #{custom-call.11} parent=61 // pred_region
              loop: start=0, step=1, limit=1
              $region78: #{custom-call.11} parent=76 // loop_pre_header
                _
              $region79: #{custom-call.11} parent=76 // loop_header
                %s1545 = sphi 0, %s1549
                %p1546 = scmp.ge.s32.totalorder %s1545, 1
                %s1550 = sphi %s1513, %s1513
                %s1551 = sphi %s1518, %s1518
              $region80: #{custom-call.11} parent=76 // loop_header_branch
                %1548 = sbr.rel (%p1546) target = $region84
              $region81: #{custom-call.11} parent=76 // loop_body
                %v1552 = vld [vmem:[%s1550] sm:$0xff]
                %1553 = vst [vmem:[%s1551] sm:$0xff] %v1552
                %v1554 = vld [vmem:[%s1550 + $0x8] sm:$0xff]
                %1555 = vst [vmem:[%s1551 + $0x8] sm:$0xff] %v1554
                %v1556 = vld [vmem:[%s1550 + $0x10] sm:$0xff]
                %1557 = vst [vmem:[%s1551 + $0x10] sm:$0xff] %v1556
                %v1558 = vld [vmem:[%s1550 + $0x18] sm:$0xff]
                %1559 = vst [vmem:[%s1551 + $0x18] sm:$0xff] %v1558
              $region82: #{custom-call.11} parent=76 // loop_footer
                %s1549 = sadd.s32 1, %s1545
              $region83: #{custom-call.11} parent=76 // loop_footer_branch
                %1544 = sbr.rel target = $region79
              $region84: #{custom-call.11} parent=76 // loop_exit
                _
            $region77: #{custom-call.11} parent=61 // pred_fallthru
              _
            // Predicated region
            $region85: #{custom-call.11} parent=61 // pred_check
              _
            $region86: #{custom-call.11} parent=61 // pred_check_branch
              %1561 = sbr.rel target = $region88
            $region87: #{custom-call.11} parent=61 // pred_region
              _
            $region88: #{custom-call.11} parent=61 // pred_fallthru
              _
          $region62: #{custom-call.11} parent=57 // pred_fallthru
            _
          // Predicated region
          $region63: #{custom-call.11} parent=57 // pred_check
            _
          $region64: #{custom-call.11} parent=57 // pred_check_branch
            %1524 = sbr.rel target = $region66
          $region65: #{custom-call.11} parent=57 // pred_region
            loop: start=0, step=1, limit=1
            $region67: #{custom-call.11} parent=65 // loop_pre_header
              _
            $region68: #{custom-call.11} parent=65 // loop_header
              %s1527 = sphi 0, %s1531
              %p1528 = scmp.ge.s32.totalorder %s1527, 1
              %s1532 = sphi %s1513, %s1513
              %s1533 = sphi %s1518, %s1518
            $region69: #{custom-call.11} parent=65 // loop_header_branch
              %1530 = sbr.rel (%p1528) target = $region73
            $region70: #{custom-call.11} parent=65 // loop_body
              %v1534 = vld [vmem:[%s1532] sm:$0xff]
              %1535 = vst [vmem:[%s1533] sm:$0xff] %v1534
              %v1536 = vld [vmem:[%s1532 + $0x8] sm:$0xff]
              %1537 = vst [vmem:[%s1533 + $0x8] sm:$0xff] %v1536
              %v1538 = vld [vmem:[%s1532 + $0x10] sm:$0xff]
              %1539 = vst [vmem:[%s1533 + $0x10] sm:$0xff] %v1538
              %v1540 = vld [vmem:[%s1532 + $0x18] sm:$0xff]
              %1541 = vst [vmem:[%s1533 + $0x18] sm:$0xff] %v1540
            $region71: #{custom-call.11} parent=65 // loop_footer
              %s1531 = sadd.s32 1, %s1527
            $region72: #{custom-call.11} parent=65 // loop_footer_branch
              %1526 = sbr.rel target = $region68
            $region73: #{custom-call.11} parent=65 // loop_exit
              _
          $region66: #{custom-call.11} parent=57 // pred_fallthru
            _
        $region58: #{custom-call.11} parent=53 // pred_fallthru
          _
        %1562 = vnop
      $region54: #{custom-call.11} parent=5 // pred_fallthru
        _
      %p1563 = scmp.le.s32.totalorder 2, %s3
      // Predicated region
      $region89: #{custom-call.11} parent=5 // pred_check
        %p1564 = pneg %p1563
      $region90: #{custom-call.11} parent=5 // pred_check_branch
        %1566 = sbr.rel (%p1564) target = $region92
      $region91: #{custom-call.11} parent=5 // pred_region
        %s1567 = ssub.s32 %s3, 2
        %s1568 = sand.u32 %s9, 1
        %s1569 = sand.u32 %s9, 1
        %s1570 = smul.addr %s1569, 32
        %s1571 = scalar_lea.vmem [#allocation1], %s1570
      $region92: #{custom-call.11} parent=5 // pred_fallthru
        _
    $region6: #{custom-call.11} parent=1 // loop_footer
      %s7 = sadd.s32 1, %s3
    $region7: #{custom-call.11} parent=1 // loop_footer_branch
      %2 = sbr.rel target = $region3
    $region8: #{custom-call.11} parent=1 // loop_exit
      _

// kernel: mcr2_binary_classwise_forward.1
$region0: #{mcr2_binary_classwise_forward.1}
  #allocation0 [shape = 'u32[]', space=smem, size = 0x4, offset = 0x4, fixed_abs, tag = 'smem constant byte address 0x4 - core index']
  #allocation1 [shape = 'u32[144,128]{1,0:T(1,128)}', space=vmem, size = 0x12000, scoped, tag = 'internal scratch']
  #allocation2 [shape = 'f32[2,128,128]{2,1,0:T(8,128)}', space=vmem, size = 0x20000, scoped, tag = 'scratch operand']
  #allocation3 [shape = 'f32[2,128,128]{2,1,0:T(8,128)}', space=vmem, size = 0x20000, scoped, tag = 'scratch operand']
  %s0 = inlined_call_operand.vmem [shape: bf16[1024,128], index: 0, kind: input, shape index: {}]
  %s1 = inlined_call_operand.vmem [shape: bf16[1024,128], index: 1, kind: input, shape index: {}]
  %s2 = inlined_call_operand.vmem [shape: f32[1024,2], index: 2, kind: input, shape index: {}]
  %s3 = inlined_call_operand.vmem [shape: f32[2,2,128,128], index: 3, kind: output, shape index: {0}]
  %s4 = inlined_call_operand.vmem [shape: f32[2,2,128,128], index: 4, kind: output, shape index: {1}]
  %5 = xla_tuple %s3, %s4
  %s6 = sld [smem:[#allocation0]]
  $region61: #{mcr2_binary_classwise_forward.1} parent=0
    _
  %s8 = ssub.s32 1, %s6
  %s9 = scalar_select 0, %s8, %s6
  loop: start=0, step=1, limit=4
  $region2: #{mcr2_binary_classwise_forward.1} parent=0 // loop_pre_header
    _
  $region3: #{mcr2_binary_classwise_forward.1} parent=0 // loop_header
    %s11 = sphi 0, %s15
    %p12 = scmp.ge.s32.totalorder %s11, 4
    %s18 = sphi 0, %s30
    %s19 = sphi 0, %s26
    %s20 = sphi 0, %s18
    %s21 = sphi 0, %s19
    %s22 = sphi 0, %s20
    %s23 = sphi 0, %s21
    %s35 = sphi 0, %s37
    %s38 = sphi 0, %s35
    %s39 = sphi 0, %s38
    %s55 = sphi 0, %s39
    %s63 = sphi 0, %s65
    %s66 = sphi 0, %s63
    %s67 = sphi 0, %s66
    %s83 = sphi 0, %s67
    %s91 = sphi 0, %s93
    %s94 = sphi 0, %s91
    %s95 = sphi 0, %s94
    %s111 = sphi 0, %s95
    %s117 = sphi 0, %s119
    %s120 = sphi 0, %s117
    %s121 = sphi 0, %s120
    %s137 = sphi 0, %s121
    %s143 = sphi 0, %s145
    %s146 = sphi 0, %s143
    %s147 = sphi 0, %s146
    %s163 = sphi 0, %s147
  $region4: #{mcr2_binary_classwise_forward.1} parent=0 // loop_header_branch
    %14 = sbr.rel (%p12) target = $region8
  $region5: #{mcr2_binary_classwise_forward.1} parent=0 // loop_body
    %s16 = ssub.s32 %s11, 1
    %s17 = ssub.s32 %s11, 2
    %s24 = sadd.s32 1, %s19
    %p25 = scmp.ge.s32.totalorder %s24, 1
    %s26 = scalar_select %p25, 0, %s24
    %s27 = sadd.s32 1, %s18
    %s28 = scalar_select %p25, %s27, %s18
    %p29 = scmp.ge.s32.totalorder %s28, 2
    %s30 = scalar_select %p29, 0, %s28
    %s31 = sadd.s32 %s18, %s19
    %s32 = sadd.s32 %s30, %s26
    %s33 = ssub.s32 %s31, %s32
    %p34 = scmp.eq.s32.totalorder %s33, 0
    %s36 = sadd.s32 %s35, 1
    %s37 = scalar_select %p34, %s35, %s36
    %p40 = pneg %p34
    %p41 = scmp.eq.s32.totalorder %s11, 1
    %p42 = por %p40, %p41
    %p43 = scmp.ne.s32.totalorder %s35, %s38
    %p44 = scmp.eq.s32.totalorder %s11, 0
    %p45 = por %p43, %p44
    %p46 = scmp.ne.s32.totalorder %s35, %s38
    %p47 = scmp.eq.s32.totalorder %s16, 1
    %p48 = por %p46, %p47
    %p49 = scmp.ne.s32.totalorder %s38, %s39
    %p50 = scmp.eq.s32.totalorder %s16, 0
    %p51 = por %p49, %p50
    %p52 = scmp.ne.s32.totalorder %s38, %s39
    %p53 = scmp.eq.s32.totalorder %s17, 1
    %p54 = por %p52, %p53
    %p56 = scmp.ne.s32.totalorder %s39, %s55
    %p57 = scmp.eq.s32.totalorder %s17, 0
    %p58 = por %p56, %p57
    %s59 = sadd.s32 %s18, %s19
    %s60 = sadd.s32 %s30, %s26
    %s61 = ssub.s32 %s59, %s60
    %p62 = scmp.eq.s32.totalorder %s61, 0
    %s64 = sadd.s32 %s63, 1
    %s65 = scalar_select %p62, %s63, %s64
    %p68 = pneg %p62
    %p69 = scmp.eq.s32.totalorder %s11, 1
    %p70 = por %p68, %p69
    %p71 = scmp.ne.s32.totalorder %s63, %s66
    %p72 = scmp.eq.s32.totalorder %s11, 0
    %p73 = por %p71, %p72
    %p74 = scmp.ne.s32.totalorder %s63, %s66
    %p75 = scmp.eq.s32.totalorder %s16, 1
    %p76 = por %p74, %p75
    %p77 = scmp.ne.s32.totalorder %s66, %s67
    %p78 = scmp.eq.s32.totalorder %s16, 0
    %p79 = por %p77, %p78
    %p80 = scmp.ne.s32.totalorder %s66, %s67
    %p81 = scmp.eq.s32.totalorder %s17, 1
    %p82 = por %p80, %p81
    %p84 = scmp.ne.s32.totalorder %s67, %s83
    %p85 = scmp.eq.s32.totalorder %s17, 0
    %p86 = por %p84, %p85
    %s87 = sadd.s32 %s18, %s19
    %s88 = sadd.s32 %s30, %s26
    %s89 = ssub.s32 %s87, %s88
    %p90 = scmp.eq.s32.totalorder %s89, 0
    %s92 = sadd.s32 %s91, 1
    %s93 = scalar_select %p90, %s91, %s92
    %p96 = pneg %p90
    %p97 = scmp.eq.s32.totalorder %s11, 1
    %p98 = por %p96, %p97
    %p99 = scmp.ne.s32.totalorder %s91, %s94
    %p100 = scmp.eq.s32.totalorder %s11, 0
    %p101 = por %p99, %p100
    %p102 = scmp.ne.s32.totalorder %s91, %s94
    %p103 = scmp.eq.s32.totalorder %s16, 1
    %p104 = por %p102, %p103
    %p105 = scmp.ne.s32.totalorder %s94, %s95
    %p106 = scmp.eq.s32.totalorder %s16, 0
    %p107 = por %p105, %p106
    %p108 = scmp.ne.s32.totalorder %s94, %s95
    %p109 = scmp.eq.s32.totalorder %s17, 1
    %p110 = por %p108, %p109
    %p112 = scmp.ne.s32.totalorder %s95, %s111
    %p113 = scmp.eq.s32.totalorder %s17, 0
    %p114 = por %p112, %p113
    %s115 = ssub.s32 %s18, %s30
    %p116 = scmp.eq.s32.totalorder %s115, 0
    %s118 = sadd.s32 %s117, 1
    %s119 = scalar_select %p116, %s117, %s118
    %p122 = pneg %p116
    %p123 = scmp.eq.s32.totalorder %s11, 1
    %p124 = por %p122, %p123
    %p125 = scmp.ne.s32.totalorder %s117, %s120
    %p126 = scmp.eq.s32.totalorder %s11, 0
    %p127 = por %p125, %p126
    %p128 = scmp.ne.s32.totalorder %s117, %s120
    %p129 = scmp.eq.s32.totalorder %s16, 1
    %p130 = por %p128, %p129
    %p131 = scmp.ne.s32.totalorder %s120, %s121
    %p132 = scmp.eq.s32.totalorder %s16, 0
    %p133 = por %p131, %p132
    %p134 = scmp.ne.s32.totalorder %s120, %s121
    %p135 = scmp.eq.s32.totalorder %s17, 1
    %p136 = por %p134, %p135
    %p138 = scmp.ne.s32.totalorder %s121, %s137
    %p139 = scmp.eq.s32.totalorder %s17, 0
    %p140 = por %p138, %p139
    %s141 = ssub.s32 %s18, %s30
    %p142 = scmp.eq.s32.totalorder %s141, 0
    %s144 = sadd.s32 %s143, 1
    %s145 = scalar_select %p142, %s143, %s144
    %p148 = pneg %p142
    %p149 = scmp.eq.s32.totalorder %s11, 1
    %p150 = por %p148, %p149
    %p151 = scmp.ne.s32.totalorder %s143, %s146
    %p152 = scmp.eq.s32.totalorder %s11, 0
    %p153 = por %p151, %p152
    %p154 = scmp.ne.s32.totalorder %s143, %s146
    %p155 = scmp.eq.s32.totalorder %s16, 1
    %p156 = por %p154, %p155
    %p157 = scmp.ne.s32.totalorder %s146, %s147
    %p158 = scmp.eq.s32.totalorder %s16, 0
    %p159 = por %p157, %p158
    %p160 = scmp.ne.s32.totalorder %s146, %s147
    %p161 = scmp.eq.s32.totalorder %s17, 1
    %p162 = por %p160, %p161
    %p164 = scmp.ne.s32.totalorder %s147, %s163
    %p165 = scmp.eq.s32.totalorder %s17, 0
    %p166 = por %p164, %p165
    %p167 = scmp.le.s32.totalorder 1, %s11
    %p168 = scmp.lt.s32.totalorder %s11, 3
    %p169 = pnand %p167, %p168
    %p170 = pneg %p169
    // Predicated region
    $region9: #{mcr2_binary_classwise_forward.1} parent=5 // pred_check
      _
    $region10: #{mcr2_binary_classwise_forward.1} parent=5 // pred_check_branch
      %172 = sbr.rel (%p169) target = $region12
    $region11: #{mcr2_binary_classwise_forward.1} parent=5 // pred_region
      %s173 = ssub.s32 %s11, 1
    $region12: #{mcr2_binary_classwise_forward.1} parent=5 // pred_fallthru
      _
    %p174 = scmp.lt.s32.totalorder %s11, 2
    // Predicated region
    $region13: #{mcr2_binary_classwise_forward.1} parent=5 // pred_check
      %p175 = pneg %p174
    $region14: #{mcr2_binary_classwise_forward.1} parent=5 // pred_check_branch
      %177 = sbr.rel (%p175) target = $region16
    $region15: #{mcr2_binary_classwise_forward.1} parent=5 // pred_region
      // Predicated region
      $region17: #{mcr2_binary_classwise_forward.1} parent=15 // pred_check
        %p178 = pneg %p45
      $region18: #{mcr2_binary_classwise_forward.1} parent=15 // pred_check_branch
        %180 = sbr.rel (%p178) target = $region20
      $region19: #{mcr2_binary_classwise_forward.1} parent=15 // pred_region
        %s181 = sadd.s32 %s18, %s19
        %s182 = smul.u32 64, %s181
        %p183 = scmp.lt.s32.totalorder %s182, 127
        %s184 = scalar_select %p183, %s182, 127
        %s185 = smul.addr %s184, 4
        %s186 = scalar_lea.vmem %s0, %s185
        %s187 = sadd.s32 %s18, %s19
        %s188 = smul.u32 64, %s187
      $region20: #{mcr2_binary_classwise_forward.1} parent=15 // pred_fallthru
        _
      // Predicated region
      $region21: #{mcr2_binary_classwise_forward.1} parent=15 // pred_check
        %p189 = pneg %p73
      $region22: #{mcr2_binary_classwise_forward.1} parent=15 // pred_check_branch
        %191 = sbr.rel (%p189) target = $region24
      $region23: #{mcr2_binary_classwise_forward.1} parent=15 // pred_region
        %s192 = sadd.s32 %s18, %s19
        %s193 = smul.u32 64, %s192
        %p194 = scmp.lt.s32.totalorder %s193, 127
        %s195 = scalar_select %p194, %s193, 127
        %s196 = smul.addr %s195, 4
        %s197 = scalar_lea.vmem %s1, %s196
        %s198 = sadd.s32 %s18, %s19
        %s199 = smul.u32 64, %s198
      $region24: #{mcr2_binary_classwise_forward.1} parent=15 // pred_fallthru
        _
      // Predicated region
      $region25: #{mcr2_binary_classwise_forward.1} parent=15 // pred_check
        %p200 = pneg %p101
      $region26: #{mcr2_binary_classwise_forward.1} parent=15 // pred_check_branch
        %202 = sbr.rel (%p200) target = $region28
      $region27: #{mcr2_binary_classwise_forward.1} parent=15 // pred_region
        %s203 = sadd.s32 %s18, %s19
        %s204 = smul.u32 64, %s203
        %p205 = scmp.lt.s32.totalorder %s204, 127
        %s206 = scalar_select %p205, %s204, 127
        %s207 = smul.addr %s206, 8
        %s208 = scalar_lea.vmem %s2, %s207
        %s209 = sadd.s32 %s18, %s19
        %s210 = smul.u32 64, %s209
      $region28: #{mcr2_binary_classwise_forward.1} parent=15 // pred_fallthru
        _
    $region16: #{mcr2_binary_classwise_forward.1} parent=5 // pred_fallthru
      _
    %p211 = scmp.le.s32.totalorder 1, %s11
    %p212 = scmp.lt.s32.totalorder %s11, 3
    %p213 = pnand %p211, %p212
    %p214 = pneg %p213
    // Predicated region
    $region29: #{mcr2_binary_classwise_forward.1} parent=5 // pred_check
      _
    $region30: #{mcr2_binary_classwise_forward.1} parent=5 // pred_check_branch
      %216 = sbr.rel (%p213) target = $region32
    $region31: #{mcr2_binary_classwise_forward.1} parent=5 // pred_region
      %s217 = ssub.s32 %s11, 1
      %s218 = sadd.s32 %s20, %s21
      %s219 = smul.u32 64, %s218
      %p220 = scmp.lt.s32.totalorder %s219, 127
      %s221 = scalar_select %p220, %s219, 127
      %s222 = smul.addr %s221, 4
      %s223 = scalar_lea.vmem %s0, %s222
      %p224 = pneg %p51
      %p225 = pneg %p48
      %s226 = sadd.s32 %s20, %s21
      %s227 = smul.u32 64, %s226
      %p228 = scmp.lt.s32.totalorder %s227, 127
      %s229 = scalar_select %p228, %s227, 127
      %s230 = smul.addr %s229, 4
      %s231 = scalar_lea.vmem %s1, %s230
      %p232 = pneg %p79
      %p233 = pneg %p76
      %s234 = sadd.s32 %s20, %s21
      %s235 = smul.u32 64, %s234
      %p236 = scmp.lt.s32.totalorder %s235, 127
      %s237 = scalar_select %p236, %s235, 127
      %s238 = smul.addr %s237, 8
      %s239 = scalar_lea.vmem %s2, %s238
      %p240 = pneg %p107
      %p241 = pneg %p104
      %p242 = pneg %p133
      %p243 = pneg %p130
      %p244 = scmp.lt.s32.totalorder %s20, 1
      %s245 = scalar_select %p244, %s20, 1
      %s246 = smul.addr %s245, 32
      %s247 = smul.addr %s246, 8
      %s248 = scalar_lea.vmem %s3, %s247
      %p249 = pneg %p159
      %p250 = pneg %p156
      %p251 = scmp.lt.s32.totalorder %s20, 1
      %s252 = scalar_select %p251, %s20, 1
      %s253 = smul.addr %s252, 32
      %s254 = smul.addr %s253, 8
      %s255 = scalar_lea.vmem %s4, %s254
      %s256 = sadd.s32 %s20, %s21
      %s257 = smul.u32 64, %s256
      %p258 = scmp.lt.s32.totalorder %s257, 127
      %s259 = scalar_select %p258, %s257, 127
      %s260 = smul.addr %s259, 4
      %s261 = scalar_lea.vmem %s0, %s260
      %s262 = sadd.s32 %s20, %s21
      %s263 = smul.u32 64, %s262
      %s264 = sadd.s32 %s20, %s21
      %s265 = smul.u32 64, %s264
      %p266 = scmp.lt.s32.totalorder %s265, 127
      %s267 = scalar_select %p266, %s265, 127
      %s268 = smul.addr %s267, 4
      %s269 = scalar_lea.vmem %s1, %s268
      %s270 = sadd.s32 %s20, %s21
      %s271 = smul.u32 64, %s270
      %s272 = sadd.s32 %s20, %s21
      %s273 = smul.u32 64, %s272
      %p274 = scmp.lt.s32.totalorder %s273, 127
      %s275 = scalar_select %p274, %s273, 127
      %s276 = smul.addr %s275, 8
      %s277 = scalar_lea.vmem %s2, %s276
      %s278 = sadd.s32 %s20, %s21
      %s279 = smul.u32 64, %s278
      %p280 = scmp.lt.s32.totalorder %s20, 1
      %s281 = scalar_select %p280, %s20, 1
      %s282 = smul.addr %s281, 32
      %s283 = smul.addr %s282, 8
      %s284 = scalar_lea.vmem %s3, %s283
      %p285 = scmp.lt.s32.totalorder %s20, 1
      %s286 = scalar_select %p285, %s20, 1
      %s287 = smul.addr %s286, 32
      %s288 = smul.addr %s287, 8
      %s289 = scalar_lea.vmem %s4, %s288
      %p291 = scmp.eq.s32.totalorder %s21, 0
      // Predicated region
      $region33: #{mcr2_binary_classwise_forward.1} parent=31 // pred_check
        %p292 = pneg %p291
      $region34: #{mcr2_binary_classwise_forward.1} parent=31 // pred_check_branch
        %294 = sbr.rel (%p292) target = $region36
      $region35: #{mcr2_binary_classwise_forward.1} parent=31 // pred_region
        %295 = vst [vmem:[#allocation2] sm:$0xff] 0.0
        %296 = vst [vmem:[#allocation2 + $0x8] sm:$0xff] 0.0
        %297 = vst [vmem:[#allocation2 + $0x10] sm:$0xff] 0.0
        %298 = vst [vmem:[#allocation2 + $0x18] sm:$0xff] 0.0
        %299 = vst [vmem:[#allocation2 + $0x20] sm:$0xff] 0.0
        %300 = vst [vmem:[#allocation2 + $0x28] sm:$0xff] 0.0
        %301 = vst [vmem:[#allocation2 + $0x30] sm:$0xff] 0.0
        %302 = vst [vmem:[#allocation2 + $0x38] sm:$0xff] 0.0
        %303 = vst [vmem:[#allocation2 + $0x40] sm:$0xff] 0.0
        %304 = vst [vmem:[#allocation2 + $0x48] sm:$0xff] 0.0
        %305 = vst [vmem:[#allocation2 + $0x50] sm:$0xff] 0.0
        %306 = vst [vmem:[#allocation2 + $0x58] sm:$0xff] 0.0
        %307 = vst [vmem:[#allocation2 + $0x60] sm:$0xff] 0.0
        %308 = vst [vmem:[#allocation2 + $0x68] sm:$0xff] 0.0
        %309 = vst [vmem:[#allocation2 + $0x70] sm:$0xff] 0.0
        %310 = vst [vmem:[#allocation2 + $0x78] sm:$0xff] 0.0
        %311 = vst [vmem:[#allocation2 + $0x80] sm:$0xff] 0.0
        %312 = vst [vmem:[#allocation2 + $0x88] sm:$0xff] 0.0
        %313 = vst [vmem:[#allocation2 + $0x90] sm:$0xff] 0.0
        %314 = vst [vmem:[#allocation2 + $0x98] sm:$0xff] 0.0
        %315 = vst [vmem:[#allocation2 + $0xa0] sm:$0xff] 0.0
        %316 = vst [vmem:[#allocation2 + $0xa8] sm:$0xff] 0.0
        %317 = vst [vmem:[#allocation2 + $0xb0] sm:$0xff] 0.0
        %318 = vst [vmem:[#allocation2 + $0xb8] sm:$0xff] 0.0
        %319 = vst [vmem:[#allocation2 + $0xc0] sm:$0xff] 0.0
        %320 = vst [vmem:[#allocation2 + $0xc8] sm:$0xff] 0.0
        %321 = vst [vmem:[#allocation2 + $0xd0] sm:$0xff] 0.0
        %322 = vst [vmem:[#allocation2 + $0xd8] sm:$0xff] 0.0
        %323 = vst [vmem:[#allocation2 + $0xe0] sm:$0xff] 0.0
        %324 = vst [vmem:[#allocation2 + $0xe8] sm:$0xff] 0.0
        %325 = vst [vmem:[#allocation2 + $0xf0] sm:$0xff] 0.0
        %326 = vst [vmem:[#allocation2 + $0xf8] sm:$0xff] 0.0
        %327 = vst [vmem:[#allocation3] sm:$0xff] 0.0
        %328 = vst [vmem:[#allocation3 + $0x8] sm:$0xff] 0.0
        %329 = vst [vmem:[#allocation3 + $0x10] sm:$0xff] 0.0
        %330 = vst [vmem:[#allocation3 + $0x18] sm:$0xff] 0.0
        %331 = vst [vmem:[#allocation3 + $0x20] sm:$0xff] 0.0
        %332 = vst [vmem:[#allocation3 + $0x28] sm:$0xff] 0.0
        %333 = vst [vmem:[#allocation3 + $0x30] sm:$0xff] 0.0
        %334 = vst [vmem:[#allocation3 + $0x38] sm:$0xff] 0.0
        %335 = vst [vmem:[#allocation3 + $0x40] sm:$0xff] 0.0
        %336 = vst [vmem:[#allocation3 + $0x48] sm:$0xff] 0.0
        %337 = vst [vmem:[#allocation3 + $0x50] sm:$0xff] 0.0
        %338 = vst [vmem:[#allocation3 + $0x58] sm:$0xff] 0.0
        %339 = vst [vmem:[#allocation3 + $0x60] sm:$0xff] 0.0
        %340 = vst [vmem:[#allocation3 + $0x68] sm:$0xff] 0.0
        %341 = vst [vmem:[#allocation3 + $0x70] sm:$0xff] 0.0
        %342 = vst [vmem:[#allocation3 + $0x78] sm:$0xff] 0.0
        %343 = vst [vmem:[#allocation3 + $0x80] sm:$0xff] 0.0
        %344 = vst [vmem:[#allocation3 + $0x88] sm:$0xff] 0.0
        %345 = vst [vmem:[#allocation3 + $0x90] sm:$0xff] 0.0
        %346 = vst [vmem:[#allocation3 + $0x98] sm:$0xff] 0.0
        %347 = vst [vmem:[#allocation3 + $0xa0] sm:$0xff] 0.0
        %348 = vst [vmem:[#allocation3 + $0xa8] sm:$0xff] 0.0
        %349 = vst [vmem:[#allocation3 + $0xb0] sm:$0xff] 0.0
        %350 = vst [vmem:[#allocation3 + $0xb8] sm:$0xff] 0.0
        %351 = vst [vmem:[#allocation3 + $0xc0] sm:$0xff] 0.0
        %352 = vst [vmem:[#allocation3 + $0xc8] sm:$0xff] 0.0
        %353 = vst [vmem:[#allocation3 + $0xd0] sm:$0xff] 0.0
        %354 = vst [vmem:[#allocation3 + $0xd8] sm:$0xff] 0.0
        %355 = vst [vmem:[#allocation3 + $0xe0] sm:$0xff] 0.0
        %356 = vst [vmem:[#allocation3 + $0xe8] sm:$0xff] 0.0
        %357 = vst [vmem:[#allocation3 + $0xf0] sm:$0xff] 0.0
        %358 = vst [vmem:[#allocation3 + $0xf8] sm:$0xff] 0.0
      $region36: #{mcr2_binary_classwise_forward.1} parent=31 // pred_fallthru
        _
      %v359 = vld [vmem:[%s261] sm:$0xf]
      %v360 = vld [vmem:[%s261 + $0x4] sm:$0xf]
      %v361 = vld [vmem:[%s261 + $0x8] sm:$0xf]
      %v362 = vld [vmem:[%s261 + $0xc] sm:$0xf]
      %v363 = vld [vmem:[%s261 + $0x10] sm:$0xf]
      %v364 = vld [vmem:[%s261 + $0x14] sm:$0xf]
      %v365 = vld [vmem:[%s261 + $0x18] sm:$0xf]
      %v366 = vld [vmem:[%s261 + $0x1c] sm:$0xf]
      %v367 = vld [vmem:[%s261 + $0x20] sm:$0xf]
      %v368 = vld [vmem:[%s261 + $0x24] sm:$0xf]
      %v369 = vld [vmem:[%s261 + $0x28] sm:$0xf]
      %v370 = vld [vmem:[%s261 + $0x2c] sm:$0xf]
      %v371 = vld [vmem:[%s261 + $0x30] sm:$0xf]
      %v372 = vld [vmem:[%s261 + $0x34] sm:$0xf]
      %v373 = vld [vmem:[%s261 + $0x38] sm:$0xf]
      %v374 = vld [vmem:[%s261 + $0x3c] sm:$0xf]
      %v375 = vld [vmem:[%s261 + $0x40] sm:$0xf]
      %v376 = vld [vmem:[%s261 + $0x44] sm:$0xf]
      %v377 = vld [vmem:[%s261 + $0x48] sm:$0xf]
      %v378 = vld [vmem:[%s261 + $0x4c] sm:$0xf]
      %v379 = vld [vmem:[%s261 + $0x50] sm:$0xf]
      %v380 = vld [vmem:[%s261 + $0x54] sm:$0xf]
      %v381 = vld [vmem:[%s261 + $0x58] sm:$0xf]
      %v382 = vld [vmem:[%s261 + $0x5c] sm:$0xf]
      %v383 = vld [vmem:[%s261 + $0x60] sm:$0xf]
      %v384 = vld [vmem:[%s261 + $0x64] sm:$0xf]
      %v385 = vld [vmem:[%s261 + $0x68] sm:$0xf]
      %v386 = vld [vmem:[%s261 + $0x6c] sm:$0xf]
      %v387 = vld [vmem:[%s261 + $0x70] sm:$0xf]
      %v388 = vld [vmem:[%s261 + $0x74] sm:$0xf]
      %v389 = vld [vmem:[%s261 + $0x78] sm:$0xf]
      %v390 = vld [vmem:[%s261 + $0x7c] sm:$0xf]
      %v391 = vld [vmem:[%s261 + $0x80] sm:$0xf]
      %v392 = vld [vmem:[%s261 + $0x84] sm:$0xf]
      %v393 = vld [vmem:[%s261 + $0x88] sm:$0xf]
      %v394 = vld [vmem:[%s261 + $0x8c] sm:$0xf]
      %v395 = vld [vmem:[%s261 + $0x90] sm:$0xf]
      %v396 = vld [vmem:[%s261 + $0x94] sm:$0xf]
      %v397 = vld [vmem:[%s261 + $0x98] sm:$0xf]
      %v398 = vld [vmem:[%s261 + $0x9c] sm:$0xf]
      %v399 = vld [vmem:[%s261 + $0xa0] sm:$0xf]
      %v400 = vld [vmem:[%s261 + $0xa4] sm:$0xf]
      %v401 = vld [vmem:[%s261 + $0xa8] sm:$0xf]
      %v402 = vld [vmem:[%s261 + $0xac] sm:$0xf]
      %v403 = vld [vmem:[%s261 + $0xb0] sm:$0xf]
      %v404 = vld [vmem:[%s261 + $0xb4] sm:$0xf]
      %v405 = vld [vmem:[%s261 + $0xb8] sm:$0xf]
      %v406 = vld [vmem:[%s261 + $0xbc] sm:$0xf]
      %v407 = vld [vmem:[%s261 + $0xc0] sm:$0xf]
      %v408 = vld [vmem:[%s261 + $0xc4] sm:$0xf]
      %v409 = vld [vmem:[%s261 + $0xc8] sm:$0xf]
      %v410 = vld [vmem:[%s261 + $0xcc] sm:$0xf]
      %v411 = vld [vmem:[%s261 + $0xd0] sm:$0xf]
      %v412 = vld [vmem:[%s261 + $0xd4] sm:$0xf]
      %v413 = vld [vmem:[%s261 + $0xd8] sm:$0xf]
      %v414 = vld [vmem:[%s261 + $0xdc] sm:$0xf]
      %v415 = vld [vmem:[%s261 + $0xe0] sm:$0xf]
      %v416 = vld [vmem:[%s261 + $0xe4] sm:$0xf]
      %v417 = vld [vmem:[%s261 + $0xe8] sm:$0xf]
      %v418 = vld [vmem:[%s261 + $0xec] sm:$0xf]
      %v419 = vld [vmem:[%s261 + $0xf0] sm:$0xf]
      %v420 = vld [vmem:[%s261 + $0xf4] sm:$0xf]
      %v421 = vld [vmem:[%s261 + $0xf8] sm:$0xf]
      %v422 = vld [vmem:[%s261 + $0xfc] sm:$0xf]
      %v423 = vld [vmem:[%s269] sm:$0xf]
      %v424 = vld [vmem:[%s269 + $0x4] sm:$0xf]
      %v425 = vld [vmem:[%s269 + $0x8] sm:$0xf]
      %v426 = vld [vmem:[%s269 + $0xc] sm:$0xf]
      %v427 = vld [vmem:[%s269 + $0x10] sm:$0xf]
      %v428 = vld [vmem:[%s269 + $0x14] sm:$0xf]
      %v429 = vld [vmem:[%s269 + $0x18] sm:$0xf]
      %v430 = vld [vmem:[%s269 + $0x1c] sm:$0xf]
      %v431 = vld [vmem:[%s269 + $0x20] sm:$0xf]
      %v432 = vld [vmem:[%s269 + $0x24] sm:$0xf]
      %v433 = vld [vmem:[%s269 + $0x28] sm:$0xf]
      %v434 = vld [vmem:[%s269 + $0x2c] sm:$0xf]
      %v435 = vld [vmem:[%s269 + $0x30] sm:$0xf]
      %v436 = vld [vmem:[%s269 + $0x34] sm:$0xf]
      %v437 = vld [vmem:[%s269 + $0x38] sm:$0xf]
      %v438 = vld [vmem:[%s269 + $0x3c] sm:$0xf]
      %v439 = vld [vmem:[%s269 + $0x40] sm:$0xf]
      %v440 = vld [vmem:[%s269 + $0x44] sm:$0xf]
      %v441 = vld [vmem:[%s269 + $0x48] sm:$0xf]
      %v442 = vld [vmem:[%s269 + $0x4c] sm:$0xf]
      %v443 = vld [vmem:[%s269 + $0x50] sm:$0xf]
      %v444 = vld [vmem:[%s269 + $0x54] sm:$0xf]
      %v445 = vld [vmem:[%s269 + $0x58] sm:$0xf]
      %v446 = vld [vmem:[%s269 + $0x5c] sm:$0xf]
      %v447 = vld [vmem:[%s269 + $0x60] sm:$0xf]
      %v448 = vld [vmem:[%s269 + $0x64] sm:$0xf]
      %v449 = vld [vmem:[%s269 + $0x68] sm:$0xf]
      %v450 = vld [vmem:[%s269 + $0x6c] sm:$0xf]
      %v451 = vld [vmem:[%s269 + $0x70] sm:$0xf]
      %v452 = vld [vmem:[%s269 + $0x74] sm:$0xf]
      %v453 = vld [vmem:[%s269 + $0x78] sm:$0xf]
      %v454 = vld [vmem:[%s269 + $0x7c] sm:$0xf]
      %v455 = vld [vmem:[%s269 + $0x80] sm:$0xf]
      %v456 = vld [vmem:[%s269 + $0x84] sm:$0xf]
      %v457 = vld [vmem:[%s269 + $0x88] sm:$0xf]
      %v458 = vld [vmem:[%s269 + $0x8c] sm:$0xf]
      %v459 = vld [vmem:[%s269 + $0x90] sm:$0xf]
      %v460 = vld [vmem:[%s269 + $0x94] sm:$0xf]
      %v461 = vld [vmem:[%s269 + $0x98] sm:$0xf]
      %v462 = vld [vmem:[%s269 + $0x9c] sm:$0xf]
      %v463 = vld [vmem:[%s269 + $0xa0] sm:$0xf]
      %v464 = vld [vmem:[%s269 + $0xa4] sm:$0xf]
      %v465 = vld [vmem:[%s269 + $0xa8] sm:$0xf]
      %v466 = vld [vmem:[%s269 + $0xac] sm:$0xf]
      %v467 = vld [vmem:[%s269 + $0xb0] sm:$0xf]
      %v468 = vld [vmem:[%s269 + $0xb4] sm:$0xf]
      %v469 = vld [vmem:[%s269 + $0xb8] sm:$0xf]
      %v470 = vld [vmem:[%s269 + $0xbc] sm:$0xf]
      %v471 = vld [vmem:[%s269 + $0xc0] sm:$0xf]
      %v472 = vld [vmem:[%s269 + $0xc4] sm:$0xf]
      %v473 = vld [vmem:[%s269 + $0xc8] sm:$0xf]
      %v474 = vld [vmem:[%s269 + $0xcc] sm:$0xf]
      %v475 = vld [vmem:[%s269 + $0xd0] sm:$0xf]
      %v476 = vld [vmem:[%s269 + $0xd4] sm:$0xf]
      %v477 = vld [vmem:[%s269 + $0xd8] sm:$0xf]
      %v478 = vld [vmem:[%s269 + $0xdc] sm:$0xf]
      %v479 = vld [vmem:[%s269 + $0xe0] sm:$0xf]
      %v480 = vld [vmem:[%s269 + $0xe4] sm:$0xf]
      %v481 = vld [vmem:[%s269 + $0xe8] sm:$0xf]
      %v482 = vld [vmem:[%s269 + $0xec] sm:$0xf]
      %v483 = vld [vmem:[%s269 + $0xf0] sm:$0xf]
      %v484 = vld [vmem:[%s269 + $0xf4] sm:$0xf]
      %v485 = vld [vmem:[%s269 + $0xf8] sm:$0xf]
      %v486 = vld [vmem:[%s269 + $0xfc] sm:$0xf]
      %v487 = vld [vmem:[%s277] sm:$0xff]
      %v488 = vld [vmem:[%s277 + $0x8] sm:$0xff]
      %v489 = vld [vmem:[%s277 + $0x10] sm:$0xff]
      %v490 = vld [vmem:[%s277 + $0x18] sm:$0xff]
      %v491 = vld [vmem:[%s277 + $0x20] sm:$0xff]
      %v492 = vld [vmem:[%s277 + $0x28] sm:$0xff]
      %v493 = vld [vmem:[%s277 + $0x30] sm:$0xff]
      %v494 = vld [vmem:[%s277 + $0x38] sm:$0xff]
      %v495 = vld [vmem:[%s277 + $0x40] sm:$0xff]
      %v496 = vld [vmem:[%s277 + $0x48] sm:$0xff]
      %v497 = vld [vmem:[%s277 + $0x50] sm:$0xff]
      %v498 = vld [vmem:[%s277 + $0x58] sm:$0xff]
      %v499 = vld [vmem:[%s277 + $0x60] sm:$0xff]
      %v500 = vld [vmem:[%s277 + $0x68] sm:$0xff]
      %v501 = vld [vmem:[%s277 + $0x70] sm:$0xff]
      %v502 = vld [vmem:[%s277 + $0x78] sm:$0xff]
      %v503 = vld [vmem:[%s277 + $0x80] sm:$0xff]
      %v504 = vld [vmem:[%s277 + $0x88] sm:$0xff]
      %v505 = vld [vmem:[%s277 + $0x90] sm:$0xff]
      %v506 = vld [vmem:[%s277 + $0x98] sm:$0xff]
      %v507 = vld [vmem:[%s277 + $0xa0] sm:$0xff]
      %v508 = vld [vmem:[%s277 + $0xa8] sm:$0xff]
      %v509 = vld [vmem:[%s277 + $0xb0] sm:$0xff]
      %v510 = vld [vmem:[%s277 + $0xb8] sm:$0xff]
      %v511 = vld [vmem:[%s277 + $0xc0] sm:$0xff]
      %v512 = vld [vmem:[%s277 + $0xc8] sm:$0xff]
      %v513 = vld [vmem:[%s277 + $0xd0] sm:$0xff]
      %v514 = vld [vmem:[%s277 + $0xd8] sm:$0xff]
      %v515 = vld [vmem:[%s277 + $0xe0] sm:$0xff]
      %v516 = vld [vmem:[%s277 + $0xe8] sm:$0xff]
      %v517 = vld [vmem:[%s277 + $0xf0] sm:$0xff]
      %v518 = vld [vmem:[%s277 + $0xf8] sm:$0xff]
      %v519 = vld [vmem:[%s277 + $0x100] sm:$0xff]
      %v520 = vld [vmem:[%s277 + $0x108] sm:$0xff]
      %v521 = vld [vmem:[%s277 + $0x110] sm:$0xff]
      %v522 = vld [vmem:[%s277 + $0x118] sm:$0xff]
      %v523 = vld [vmem:[%s277 + $0x120] sm:$0xff]
      %v524 = vld [vmem:[%s277 + $0x128] sm:$0xff]
      %v525 = vld [vmem:[%s277 + $0x130] sm:$0xff]
      %v526 = vld [vmem:[%s277 + $0x138] sm:$0xff]
      %v527 = vld [vmem:[%s277 + $0x140] sm:$0xff]
      %v528 = vld [vmem:[%s277 + $0x148] sm:$0xff]
      %v529 = vld [vmem:[%s277 + $0x150] sm:$0xff]
      %v530 = vld [vmem:[%s277 + $0x158] sm:$0xff]
      %v531 = vld [vmem:[%s277 + $0x160] sm:$0xff]
      %v532 = vld [vmem:[%s277 + $0x168] sm:$0xff]
      %v533 = vld [vmem:[%s277 + $0x170] sm:$0xff]
      %v534 = vld [vmem:[%s277 + $0x178] sm:$0xff]
      %v535 = vld [vmem:[%s277 + $0x180] sm:$0xff]
      %v536 = vld [vmem:[%s277 + $0x188] sm:$0xff]
      %v537 = vld [vmem:[%s277 + $0x190] sm:$0xff]
      %v538 = vld [vmem:[%s277 + $0x198] sm:$0xff]
      %v539 = vld [vmem:[%s277 + $0x1a0] sm:$0xff]
      %v540 = vld [vmem:[%s277 + $0x1a8] sm:$0xff]
      %v541 = vld [vmem:[%s277 + $0x1b0] sm:$0xff]
      %v542 = vld [vmem:[%s277 + $0x1b8] sm:$0xff]
      %v543 = vld [vmem:[%s277 + $0x1c0] sm:$0xff]
      %v544 = vld [vmem:[%s277 + $0x1c8] sm:$0xff]
      %v545 = vld [vmem:[%s277 + $0x1d0] sm:$0xff]
      %v546 = vld [vmem:[%s277 + $0x1d8] sm:$0xff]
      %v547 = vld [vmem:[%s277 + $0x1e0] sm:$0xff]
      %v548 = vld [vmem:[%s277 + $0x1e8] sm:$0xff]
      %v549 = vld [vmem:[%s277 + $0x1f0] sm:$0xff]
      %v550 = vld [vmem:[%s277 + $0x1f8] sm:$0xff]
      %v551 = vpack.c.bf16 %v488, %v487
      %v552 = vpack.c.bf16 %v490, %v489
      %v553 = vpack.c.bf16 %v492, %v491
      %v554 = vpack.c.bf16 %v494, %v493
      %v555 = vpack.c.bf16 %v496, %v495
      %v556 = vpack.c.bf16 %v498, %v497
      %v557 = vpack.c.bf16 %v500, %v499
      %v558 = vpack.c.bf16 %v502, %v501
      %v559 = vpack.c.bf16 %v504, %v503
      %v560 = vpack.c.bf16 %v506, %v505
      %v561 = vpack.c.bf16 %v508, %v507
      %v562 = vpack.c.bf16 %v510, %v509
      %v563 = vpack.c.bf16 %v512, %v511
      %v564 = vpack.c.bf16 %v514, %v513
      %v565 = vpack.c.bf16 %v516, %v515
      %v566 = vpack.c.bf16 %v518, %v517
      %v567 = vpack.c.bf16 %v520, %v519
      %v568 = vpack.c.bf16 %v522, %v521
      %v569 = vpack.c.bf16 %v524, %v523
      %v570 = vpack.c.bf16 %v526, %v525
      %v571 = vpack.c.bf16 %v528, %v527
      %v572 = vpack.c.bf16 %v530, %v529
      %v573 = vpack.c.bf16 %v532, %v531
      %v574 = vpack.c.bf16 %v534, %v533
      %v575 = vpack.c.bf16 %v536, %v535
      %v576 = vpack.c.bf16 %v538, %v537
      %v577 = vpack.c.bf16 %v540, %v539
      %v578 = vpack.c.bf16 %v542, %v541
      %v579 = vpack.c.bf16 %v544, %v543
      %v580 = vpack.c.bf16 %v546, %v545
      %v581 = vpack.c.bf16 %v548, %v547
      %v582 = vpack.c.bf16 %v550, %v549
      %v583 = vld [vmem:[#allocation2] sm:$0xff]
      %v584 = vld [vmem:[#allocation2 + $0x8] sm:$0xff]
      %v585 = vld [vmem:[#allocation2 + $0x10] sm:$0xff]
      %v586 = vld [vmem:[#allocation2 + $0x18] sm:$0xff]
      %v587 = vld [vmem:[#allocation2 + $0x20] sm:$0xff]
      %v588 = vld [vmem:[#allocation2 + $0x28] sm:$0xff]
      %v589 = vld [vmem:[#allocation2 + $0x30] sm:$0xff]
      %v590 = vld [vmem:[#allocation2 + $0x38] sm:$0xff]
      %v591 = vld [vmem:[#allocation2 + $0x40] sm:$0xff]
      %v592 = vld [vmem:[#allocation2 + $0x48] sm:$0xff]
      %v593 = vld [vmem:[#allocation2 + $0x50] sm:$0xff]
      %v594 = vld [vmem:[#allocation2 + $0x58] sm:$0xff]
      %v595 = vld [vmem:[#allocation2 + $0x60] sm:$0xff]
      %v596 = vld [vmem:[#allocation2 + $0x68] sm:$0xff]
      %v597 = vld [vmem:[#allocation2 + $0x70] sm:$0xff]
      %v598 = vld [vmem:[#allocation2 + $0x78] sm:$0xff]
      %600 = vset.pattern.permute.xlu0 0
      %601 = vperm.xlu0 %600, %v551
      %v602 = vpop.permute.xlu0 %601
      %604 = vset.pattern.permute.xlu0 0
      %605 = vperm.xlu0 %604, %v552
      %v606 = vpop.permute.xlu0 %605
      %608 = vset.pattern.permute.xlu0 0
      %609 = vperm.xlu0 %608, %v553
      %v610 = vpop.permute.xlu0 %609
      %612 = vset.pattern.permute.xlu0 0
      %613 = vperm.xlu0 %612, %v554
      %v614 = vpop.permute.xlu0 %613
      %616 = vset.pattern.permute.xlu0 0
      %617 = vperm.xlu0 %616, %v555
      %v618 = vpop.permute.xlu0 %617
      %620 = vset.pattern.permute.xlu0 0
      %621 = vperm.xlu0 %620, %v556
      %v622 = vpop.permute.xlu0 %621
      %624 = vset.pattern.permute.xlu0 0
      %625 = vperm.xlu0 %624, %v557
      %v626 = vpop.permute.xlu0 %625
      %628 = vset.pattern.permute.xlu0 0
      %629 = vperm.xlu0 %628, %v558
      %v630 = vpop.permute.xlu0 %629
      %632 = vset.pattern.permute.xlu0 0
      %633 = vperm.xlu0 %632, %v559
      %v634 = vpop.permute.xlu0 %633
      %636 = vset.pattern.permute.xlu0 0
      %637 = vperm.xlu0 %636, %v560
      %v638 = vpop.permute.xlu0 %637
      %640 = vset.pattern.permute.xlu0 0
      %641 = vperm.xlu0 %640, %v561
      %v642 = vpop.permute.xlu0 %641
      %644 = vset.pattern.permute.xlu0 0
      %645 = vperm.xlu0 %644, %v562
      %v646 = vpop.permute.xlu0 %645
      %648 = vset.pattern.permute.xlu0 0
      %649 = vperm.xlu0 %648, %v563
      %v650 = vpop.permute.xlu0 %649
      %652 = vset.pattern.permute.xlu0 0
      %653 = vperm.xlu0 %652, %v564
      %v654 = vpop.permute.xlu0 %653
      %656 = vset.pattern.permute.xlu0 0
      %657 = vperm.xlu0 %656, %v565
      %v658 = vpop.permute.xlu0 %657
      %660 = vset.pattern.permute.xlu0 0
      %661 = vperm.xlu0 %660, %v566
      %v662 = vpop.permute.xlu0 %661
      %664 = vset.pattern.permute.xlu0 0
      %665 = vperm.xlu0 %664, %v567
      %v666 = vpop.permute.xlu0 %665
      %668 = vset.pattern.permute.xlu0 0
      %669 = vperm.xlu0 %668, %v568
      %v670 = vpop.permute.xlu0 %669
      %672 = vset.pattern.permute.xlu0 0
      %673 = vperm.xlu0 %672, %v569
      %v674 = vpop.permute.xlu0 %673
      %676 = vset.pattern.permute.xlu0 0
      %677 = vperm.xlu0 %676, %v570
      %v678 = vpop.permute.xlu0 %677
      %680 = vset.pattern.permute.xlu0 0
      %681 = vperm.xlu0 %680, %v571
      %v682 = vpop.permute.xlu0 %681
      %684 = vset.pattern.permute.xlu0 0
      %685 = vperm.xlu0 %684, %v572
      %v686 = vpop.permute.xlu0 %685
      %688 = vset.pattern.permute.xlu0 0
      %689 = vperm.xlu0 %688, %v573
      %v690 = vpop.permute.xlu0 %689
      %692 = vset.pattern.permute.xlu0 0
      %693 = vperm.xlu0 %692, %v574
      %v694 = vpop.permute.xlu0 %693
      %696 = vset.pattern.permute.xlu0 0
      %697 = vperm.xlu0 %696, %v575
      %v698 = vpop.permute.xlu0 %697
      %700 = vset.pattern.permute.xlu0 0
      %701 = vperm.xlu0 %700, %v576
      %v702 = vpop.permute.xlu0 %701
      %704 = vset.pattern.permute.xlu0 0
      %705 = vperm.xlu0 %704, %v577
      %v706 = vpop.permute.xlu0 %705
      %708 = vset.pattern.permute.xlu0 0
      %709 = vperm.xlu0 %708, %v578
      %v710 = vpop.permute.xlu0 %709
      %712 = vset.pattern.permute.xlu0 0
      %713 = vperm.xlu0 %712, %v579
      %v714 = vpop.permute.xlu0 %713
      %716 = vset.pattern.permute.xlu0 0
      %717 = vperm.xlu0 %716, %v580
      %v718 = vpop.permute.xlu0 %717
      %720 = vset.pattern.permute.xlu0 0
      %721 = vperm.xlu0 %720, %v581
      %v722 = vpop.permute.xlu0 %721
      %724 = vset.pattern.permute.xlu0 0
      %725 = vperm.xlu0 %724, %v582
      %v726 = vpop.permute.xlu0 %725
      %v760 = vunpack.c.l.s4 839922192
      %v761 = vunpack.c.0.s8 %v760
      %v762 = vlaneseq
      %v763 = vshrl.u32 %v762, 7
      %v764 = vsub.s32 %v761, %v763
      %v765 = vrot.slane %v602, %v764
      %v767 = vunpack.c.l.s4 1985246804
      %v768 = vunpack.c.0.s8 %v767
      %v769 = vlaneseq
      %v770 = vshrl.u32 %v769, 7
      %v771 = vsub.s32 %v768, %v770
      %v772 = vrot.slane %v602, %v771
      %v774 = vunpack.c.l.s4 839922192
      %v775 = vunpack.c.0.s8 %v774
      %v776 = vlaneseq
      %v777 = vshrl.u32 %v776, 7
      %v778 = vsub.s32 %v775, %v777
      %v779 = vrot.slane %v606, %v778
      %v781 = vunpack.c.l.s4 1985246804
      %v782 = vunpack.c.0.s8 %v781
      %v783 = vlaneseq
      %v784 = vshrl.u32 %v783, 7
      %v785 = vsub.s32 %v782, %v784
      %v786 = vrot.slane %v606, %v785
      %v788 = vunpack.c.l.s4 839922192
      %v789 = vunpack.c.0.s8 %v788
      %v790 = vlaneseq
      %v791 = vshrl.u32 %v790, 7
      %v792 = vsub.s32 %v789, %v791
      %v793 = vrot.slane %v610, %v792
      %v795 = vunpack.c.l.s4 1985246804
      %v796 = vunpack.c.0.s8 %v795
      %v797 = vlaneseq
      %v798 = vshrl.u32 %v797, 7
      %v799 = vsub.s32 %v796, %v798
      %v800 = vrot.slane %v610, %v799
      %v802 = vunpack.c.l.s4 839922192
      %v803 = vunpack.c.0.s8 %v802
      %v804 = vlaneseq
      %v805 = vshrl.u32 %v804, 7
      %v806 = vsub.s32 %v803, %v805
      %v807 = vrot.slane %v614, %v806
      %v809 = vunpack.c.l.s4 1985246804
      %v810 = vunpack.c.0.s8 %v809
      %v811 = vlaneseq
      %v812 = vshrl.u32 %v811, 7
      %v813 = vsub.s32 %v810, %v812
      %v814 = vrot.slane %v614, %v813
      %v816 = vunpack.c.l.s4 839922192
      %v817 = vunpack.c.0.s8 %v816
      %v818 = vlaneseq
      %v819 = vshrl.u32 %v818, 7
      %v820 = vsub.s32 %v817, %v819
      %v821 = vrot.slane %v618, %v820
      %v823 = vunpack.c.l.s4 1985246804
      %v824 = vunpack.c.0.s8 %v823
      %v825 = vlaneseq
      %v826 = vshrl.u32 %v825, 7
      %v827 = vsub.s32 %v824, %v826
      %v828 = vrot.slane %v618, %v827
      %v830 = vunpack.c.l.s4 839922192
      %v831 = vunpack.c.0.s8 %v830
      %v832 = vlaneseq
      %v833 = vshrl.u32 %v832, 7
      %v834 = vsub.s32 %v831, %v833
      %v835 = vrot.slane %v622, %v834
      %v837 = vunpack.c.l.s4 1985246804
      %v838 = vunpack.c.0.s8 %v837
      %v839 = vlaneseq
      %v840 = vshrl.u32 %v839, 7
      %v841 = vsub.s32 %v838, %v840
      %v842 = vrot.slane %v622, %v841
      %v844 = vunpack.c.l.s4 839922192
      %v845 = vunpack.c.0.s8 %v844
      %v846 = vlaneseq
      %v847 = vshrl.u32 %v846, 7
      %v848 = vsub.s32 %v845, %v847
      %v849 = vrot.slane %v626, %v848
      %v851 = vunpack.c.l.s4 1985246804
      %v852 = vunpack.c.0.s8 %v851
      %v853 = vlaneseq
      %v854 = vshrl.u32 %v853, 7
      %v855 = vsub.s32 %v852, %v854
      %v856 = vrot.slane %v626, %v855
      %v858 = vunpack.c.l.s4 839922192
      %v859 = vunpack.c.0.s8 %v858
      %v860 = vlaneseq
      %v861 = vshrl.u32 %v860, 7
      %v862 = vsub.s32 %v859, %v861
      %v863 = vrot.slane %v630, %v862
      %v865 = vunpack.c.l.s4 1985246804
      %v866 = vunpack.c.0.s8 %v865
      %v867 = vlaneseq
      %v868 = vshrl.u32 %v867, 7
      %v869 = vsub.s32 %v866, %v868
      %v870 = vrot.slane %v630, %v869
      %v872 = vunpack.c.l.s4 839922192
      %v873 = vunpack.c.0.s8 %v872
      %v874 = vlaneseq
      %v875 = vshrl.u32 %v874, 7
      %v876 = vsub.s32 %v873, %v875
      %v877 = vrot.slane %v634, %v876
      %v879 = vunpack.c.l.s4 1985246804
      %v880 = vunpack.c.0.s8 %v879
      %v881 = vlaneseq
      %v882 = vshrl.u32 %v881, 7
      %v883 = vsub.s32 %v880, %v882
      %v884 = vrot.slane %v634, %v883
      %v886 = vunpack.c.l.s4 839922192
      %v887 = vunpack.c.0.s8 %v886
      %v888 = vlaneseq
      %v889 = vshrl.u32 %v888, 7
      %v890 = vsub.s32 %v887, %v889
      %v891 = vrot.slane %v638, %v890
      %v893 = vunpack.c.l.s4 1985246804
      %v894 = vunpack.c.0.s8 %v893
      %v895 = vlaneseq
      %v896 = vshrl.u32 %v895, 7
      %v897 = vsub.s32 %v894, %v896
      %v898 = vrot.slane %v638, %v897
      %v900 = vunpack.c.l.s4 839922192
      %v901 = vunpack.c.0.s8 %v900
      %v902 = vlaneseq
      %v903 = vshrl.u32 %v902, 7
      %v904 = vsub.s32 %v901, %v903
      %v905 = vrot.slane %v642, %v904
      %v907 = vunpack.c.l.s4 1985246804
      %v908 = vunpack.c.0.s8 %v907
      %v909 = vlaneseq
      %v910 = vshrl.u32 %v909, 7
      %v911 = vsub.s32 %v908, %v910
      %v912 = vrot.slane %v642, %v911
      %v914 = vunpack.c.l.s4 839922192
      %v915 = vunpack.c.0.s8 %v914
      %v916 = vlaneseq
      %v917 = vshrl.u32 %v916, 7
      %v918 = vsub.s32 %v915, %v917
      %v919 = vrot.slane %v646, %v918
      %v921 = vunpack.c.l.s4 1985246804
      %v922 = vunpack.c.0.s8 %v921
      %v923 = vlaneseq
      %v924 = vshrl.u32 %v923, 7
      %v925 = vsub.s32 %v922, %v924
      %v926 = vrot.slane %v646, %v925
      %v928 = vunpack.c.l.s4 839922192
      %v929 = vunpack.c.0.s8 %v928
      %v930 = vlaneseq
      %v931 = vshrl.u32 %v930, 7
      %v932 = vsub.s32 %v929, %v931
      %v933 = vrot.slane %v650, %v932
      %v935 = vunpack.c.l.s4 1985246804
      %v936 = vunpack.c.0.s8 %v935
      %v937 = vlaneseq
      %v938 = vshrl.u32 %v937, 7
      %v939 = vsub.s32 %v936, %v938
      %v940 = vrot.slane %v650, %v939
      %v942 = vunpack.c.l.s4 839922192
      %v943 = vunpack.c.0.s8 %v942
      %v944 = vlaneseq
      %v945 = vshrl.u32 %v944, 7
      %v946 = vsub.s32 %v943, %v945
      %v947 = vrot.slane %v654, %v946
      %v949 = vunpack.c.l.s4 1985246804
      %v950 = vunpack.c.0.s8 %v949
      %v951 = vlaneseq
      %v952 = vshrl.u32 %v951, 7
      %v953 = vsub.s32 %v950, %v952
      %v954 = vrot.slane %v654, %v953
      %v956 = vunpack.c.l.s4 839922192
      %v957 = vunpack.c.0.s8 %v956
      %v958 = vlaneseq
      %v959 = vshrl.u32 %v958, 7
      %v960 = vsub.s32 %v957, %v959
      %v961 = vrot.slane %v658, %v960
      %v963 = vunpack.c.l.s4 1985246804
      %v964 = vunpack.c.0.s8 %v963
      %v965 = vlaneseq
      %v966 = vshrl.u32 %v965, 7
      %v967 = vsub.s32 %v964, %v966
      %v968 = vrot.slane %v658, %v967
      %v970 = vunpack.c.l.s4 839922192
      %v971 = vunpack.c.0.s8 %v970
      %v972 = vlaneseq
      %v973 = vshrl.u32 %v972, 7
      %v974 = vsub.s32 %v971, %v973
      %v975 = vrot.slane %v662, %v974
      %v977 = vunpack.c.l.s4 1985246804
      %v978 = vunpack.c.0.s8 %v977
      %v979 = vlaneseq
      %v980 = vshrl.u32 %v979, 7
      %v981 = vsub.s32 %v978, %v980
      %v982 = vrot.slane %v662, %v981
      %v984 = vunpack.c.l.s4 839922192
      %v985 = vunpack.c.0.s8 %v984
      %v986 = vlaneseq
      %v987 = vshrl.u32 %v986, 7
      %v988 = vsub.s32 %v985, %v987
      %v989 = vrot.slane %v666, %v988
      %v991 = vunpack.c.l.s4 1985246804
      %v992 = vunpack.c.0.s8 %v991
      %v993 = vlaneseq
      %v994 = vshrl.u32 %v993, 7
      %v995 = vsub.s32 %v992, %v994
      %v996 = vrot.slane %v666, %v995
      %v998 = vunpack.c.l.s4 839922192
      %v999 = vunpack.c.0.s8 %v998
      %v1000 = vlaneseq
      %v1001 = vshrl.u32 %v1000, 7
      %v1002 = vsub.s32 %v999, %v1001
      %v1003 = vrot.slane %v670, %v1002
      %v1005 = vunpack.c.l.s4 1985246804
      %v1006 = vunpack.c.0.s8 %v1005
      %v1007 = vlaneseq
      %v1008 = vshrl.u32 %v1007, 7
      %v1009 = vsub.s32 %v1006, %v1008
      %v1010 = vrot.slane %v670, %v1009
      %v1012 = vunpack.c.l.s4 839922192
      %v1013 = vunpack.c.0.s8 %v1012
      %v1014 = vlaneseq
      %v1015 = vshrl.u32 %v1014, 7
      %v1016 = vsub.s32 %v1013, %v1015
      %v1017 = vrot.slane %v674, %v1016
      %v1019 = vunpack.c.l.s4 1985246804
      %v1020 = vunpack.c.0.s8 %v1019
      %v1021 = vlaneseq
      %v1022 = vshrl.u32 %v1021, 7
      %v1023 = vsub.s32 %v1020, %v1022
      %v1024 = vrot.slane %v674, %v1023
      %v1026 = vunpack.c.l.s4 839922192
      %v1027 = vunpack.c.0.s8 %v1026
      %v1028 = vlaneseq
      %v1029 = vshrl.u32 %v1028, 7
      %v1030 = vsub.s32 %v1027, %v1029
      %v1031 = vrot.slane %v678, %v1030
      %v1033 = vunpack.c.l.s4 1985246804
      %v1034 = vunpack.c.0.s8 %v1033
      %v1035 = vlaneseq
      %v1036 = vshrl.u32 %v1035, 7
      %v1037 = vsub.s32 %v1034, %v1036
      %v1038 = vrot.slane %v678, %v1037
      %v1040 = vunpack.c.l.s4 839922192
      %v1041 = vunpack.c.0.s8 %v1040
      %v1042 = vlaneseq
      %v1043 = vshrl.u32 %v1042, 7
      %v1044 = vsub.s32 %v1041, %v1043
      %v1045 = vrot.slane %v682, %v1044
      %v1047 = vunpack.c.l.s4 1985246804
      %v1048 = vunpack.c.0.s8 %v1047
      %v1049 = vlaneseq
      %v1050 = vshrl.u32 %v1049, 7
      %v1051 = vsub.s32 %v1048, %v1050
      %v1052 = vrot.slane %v682, %v1051
      %v1054 = vunpack.c.l.s4 839922192
      %v1055 = vunpack.c.0.s8 %v1054
      %v1056 = vlaneseq
      %v1057 = vshrl.u32 %v1056, 7
      %v1058 = vsub.s32 %v1055, %v1057
      %v1059 = vrot.slane %v686, %v1058
      %v1061 = vunpack.c.l.s4 1985246804
      %v1062 = vunpack.c.0.s8 %v1061
      %v1063 = vlaneseq
      %v1064 = vshrl.u32 %v1063, 7
      %v1065 = vsub.s32 %v1062, %v1064
      %v1066 = vrot.slane %v686, %v1065
      %v1068 = vunpack.c.l.s4 839922192
      %v1069 = vunpack.c.0.s8 %v1068
      %v1070 = vlaneseq
      %v1071 = vshrl.u32 %v1070, 7
      %v1072 = vsub.s32 %v1069, %v1071
      %v1073 = vrot.slane %v690, %v1072
      %v1075 = vunpack.c.l.s4 1985246804
      %v1076 = vunpack.c.0.s8 %v1075
      %v1077 = vlaneseq
      %v1078 = vshrl.u32 %v1077, 7
      %v1079 = vsub.s32 %v1076, %v1078
      %v1080 = vrot.slane %v690, %v1079
      %v1082 = vunpack.c.l.s4 839922192
      %v1083 = vunpack.c.0.s8 %v1082
      %v1084 = vlaneseq
      %v1085 = vshrl.u32 %v1084, 7
      %v1086 = vsub.s32 %v1083, %v1085
      %v1087 = vrot.slane %v694, %v1086
      %v1089 = vunpack.c.l.s4 1985246804
      %v1090 = vunpack.c.0.s8 %v1089
      %v1091 = vlaneseq
      %v1092 = vshrl.u32 %v1091, 7
      %v1093 = vsub.s32 %v1090, %v1092
      %v1094 = vrot.slane %v694, %v1093
      %v1096 = vunpack.c.l.s4 839922192
      %v1097 = vunpack.c.0.s8 %v1096
      %v1098 = vlaneseq
      %v1099 = vshrl.u32 %v1098, 7
      %v1100 = vsub.s32 %v1097, %v1099
      %v1101 = vrot.slane %v698, %v1100
      %v1103 = vunpack.c.l.s4 1985246804
      %v1104 = vunpack.c.0.s8 %v1103
      %v1105 = vlaneseq
      %v1106 = vshrl.u32 %v1105, 7
      %v1107 = vsub.s32 %v1104, %v1106
      %v1108 = vrot.slane %v698, %v1107
      %v1110 = vunpack.c.l.s4 839922192
      %v1111 = vunpack.c.0.s8 %v1110
      %v1112 = vlaneseq
      %v1113 = vshrl.u32 %v1112, 7
      %v1114 = vsub.s32 %v1111, %v1113
      %v1115 = vrot.slane %v702, %v1114
      %v1117 = vunpack.c.l.s4 1985246804
      %v1118 = vunpack.c.0.s8 %v1117
      %v1119 = vlaneseq
      %v1120 = vshrl.u32 %v1119, 7
      %v1121 = vsub.s32 %v1118, %v1120
      %v1122 = vrot.slane %v702, %v1121
      %v1124 = vunpack.c.l.s4 839922192
      %v1125 = vunpack.c.0.s8 %v1124
      %v1126 = vlaneseq
      %v1127 = vshrl.u32 %v1126, 7
      %v1128 = vsub.s32 %v1125, %v1127
      %v1129 = vrot.slane %v706, %v1128
      %v1131 = vunpack.c.l.s4 1985246804
      %v1132 = vunpack.c.0.s8 %v1131
      %v1133 = vlaneseq
      %v1134 = vshrl.u32 %v1133, 7
      %v1135 = vsub.s32 %v1132, %v1134
      %v1136 = vrot.slane %v706, %v1135
      %v1138 = vunpack.c.l.s4 839922192
      %v1139 = vunpack.c.0.s8 %v1138
      %v1140 = vlaneseq
      %v1141 = vshrl.u32 %v1140, 7
      %v1142 = vsub.s32 %v1139, %v1141
      %v1143 = vrot.slane %v710, %v1142
      %v1145 = vunpack.c.l.s4 1985246804
      %v1146 = vunpack.c.0.s8 %v1145
      %v1147 = vlaneseq
      %v1148 = vshrl.u32 %v1147, 7
      %v1149 = vsub.s32 %v1146, %v1148
      %v1150 = vrot.slane %v710, %v1149
      %v1152 = vunpack.c.l.s4 839922192
      %v1153 = vunpack.c.0.s8 %v1152
      %v1154 = vlaneseq
      %v1155 = vshrl.u32 %v1154, 7
      %v1156 = vsub.s32 %v1153, %v1155
      %v1157 = vrot.slane %v714, %v1156
      %v1159 = vunpack.c.l.s4 1985246804
      %v1160 = vunpack.c.0.s8 %v1159
      %v1161 = vlaneseq
      %v1162 = vshrl.u32 %v1161, 7
      %v1163 = vsub.s32 %v1160, %v1162
      %v1164 = vrot.slane %v714, %v1163
      %v1166 = vunpack.c.l.s4 839922192
      %v1167 = vunpack.c.0.s8 %v1166
      %v1168 = vlaneseq
      %v1169 = vshrl.u32 %v1168, 7
      %v1170 = vsub.s32 %v1167, %v1169
      %v1171 = vrot.slane %v718, %v1170
      %v1173 = vunpack.c.l.s4 1985246804
      %v1174 = vunpack.c.0.s8 %v1173
      %v1175 = vlaneseq
      %v1176 = vshrl.u32 %v1175, 7
      %v1177 = vsub.s32 %v1174, %v1176
      %v1178 = vrot.slane %v718, %v1177
      %v1180 = vunpack.c.l.s4 839922192
      %v1181 = vunpack.c.0.s8 %v1180
      %v1182 = vlaneseq
      %v1183 = vshrl.u32 %v1182, 7
      %v1184 = vsub.s32 %v1181, %v1183
      %v1185 = vrot.slane %v722, %v1184
      %v1187 = vunpack.c.l.s4 1985246804
      %v1188 = vunpack.c.0.s8 %v1187
      %v1189 = vlaneseq
      %v1190 = vshrl.u32 %v1189, 7
      %v1191 = vsub.s32 %v1188, %v1190
      %v1192 = vrot.slane %v722, %v1191
      %v1194 = vunpack.c.l.s4 839922192
      %v1195 = vunpack.c.0.s8 %v1194
      %v1196 = vlaneseq
      %v1197 = vshrl.u32 %v1196, 7
      %v1198 = vsub.s32 %v1195, %v1197
      %v1199 = vrot.slane %v726, %v1198
      %v1201 = vunpack.c.l.s4 1985246804
      %v1202 = vunpack.c.0.s8 %v1201
      %v1203 = vlaneseq
      %v1204 = vshrl.u32 %v1203, 7
      %v1205 = vsub.s32 %v1202, %v1204
      %v1206 = vrot.slane %v726, %v1205
      %v1271 = vmul.bf16 %v359, %v765
      %v1272 = vmul.bf16 %v360, %v772
      %v1273 = vmul.bf16 %v361, %v779
      %v1274 = vmul.bf16 %v362, %v786
      %v1275 = vmul.bf16 %v363, %v793
      %v1276 = vmul.bf16 %v364, %v800
      %v1277 = vmul.bf16 %v365, %v807
      %v1278 = vmul.bf16 %v366, %v814
      %v1279 = vmul.bf16 %v367, %v821
      %v1280 = vmul.bf16 %v368, %v828
      %v1281 = vmul.bf16 %v369, %v835
      %v1282 = vmul.bf16 %v370, %v842
      %v1283 = vmul.bf16 %v371, %v849
      %v1284 = vmul.bf16 %v372, %v856
      %v1285 = vmul.bf16 %v373, %v863
      %v1286 = vmul.bf16 %v374, %v870
      %v1287 = vmul.bf16 %v375, %v877
      %v1288 = vmul.bf16 %v376, %v884
      %v1289 = vmul.bf16 %v377, %v891
      %v1290 = vmul.bf16 %v378, %v898
      %v1291 = vmul.bf16 %v379, %v905
      %v1292 = vmul.bf16 %v380, %v912
      %v1293 = vmul.bf16 %v381, %v919
      %v1294 = vmul.bf16 %v382, %v926
      %v1295 = vmul.bf16 %v383, %v933
      %v1296 = vmul.bf16 %v384, %v940
      %v1297 = vmul.bf16 %v385, %v947
      %v1298 = vmul.bf16 %v386, %v954
      %v1299 = vmul.bf16 %v387, %v961
      %v1300 = vmul.bf16 %v388, %v968
      %v1301 = vmul.bf16 %v389, %v975
      %v1302 = vmul.bf16 %v390, %v982
      %v1303 = vmul.bf16 %v391, %v989
      %v1304 = vmul.bf16 %v392, %v996
      %v1305 = vmul.bf16 %v393, %v1003
      %v1306 = vmul.bf16 %v394, %v1010
      %v1307 = vmul.bf16 %v395, %v1017
      %v1308 = vmul.bf16 %v396, %v1024
      %v1309 = vmul.bf16 %v397, %v1031
      %v1310 = vmul.bf16 %v398, %v1038
      %v1311 = vmul.bf16 %v399, %v1045
      %v1312 = vmul.bf16 %v400, %v1052
      %v1313 = vmul.bf16 %v401, %v1059
      %v1314 = vmul.bf16 %v402, %v1066
      %v1315 = vmul.bf16 %v403, %v1073
      %v1316 = vmul.bf16 %v404, %v1080
      %v1317 = vmul.bf16 %v405, %v1087
      %v1318 = vmul.bf16 %v406, %v1094
      %v1319 = vmul.bf16 %v407, %v1101
      %v1320 = vmul.bf16 %v408, %v1108
      %v1321 = vmul.bf16 %v409, %v1115
      %v1322 = vmul.bf16 %v410, %v1122
      %v1323 = vmul.bf16 %v411, %v1129
      %v1324 = vmul.bf16 %v412, %v1136
      %v1325 = vmul.bf16 %v413, %v1143
      %v1326 = vmul.bf16 %v414, %v1150
      %v1327 = vmul.bf16 %v415, %v1157
      %v1328 = vmul.bf16 %v416, %v1164
      %v1329 = vmul.bf16 %v417, %v1171
      %v1330 = vmul.bf16 %v418, %v1178
      %v1331 = vmul.bf16 %v419, %v1185
      %v1332 = vmul.bf16 %v420, %v1192
      %v1333 = vmul.bf16 %v421, %v1199
      %v1334 = vmul.bf16 %v422, %v1206
      %v1399 = vunpack.c.l.b16 %v1271
      %v1400 = vunpack.c.l.b16 %v1272
      %v1401 = vunpack.c.l.b16 %v1273
      %v1402 = vunpack.c.l.b16 %v1274
      %v1403 = vunpack.c.l.b16 %v1275
      %v1404 = vunpack.c.l.b16 %v1276
      %v1405 = vunpack.c.l.b16 %v1277
      %v1406 = vunpack.c.l.b16 %v1278
      %v1407 = vunpack.c.l.b16 %v1279
      %v1408 = vunpack.c.l.b16 %v1280
      %v1409 = vunpack.c.l.b16 %v1281
      %v1410 = vunpack.c.l.b16 %v1282
      %v1411 = vunpack.c.l.b16 %v1283
      %v1412 = vunpack.c.l.b16 %v1284
      %v1413 = vunpack.c.l.b16 %v1285
      %v1414 = vunpack.c.l.b16 %v1286
      %v1415 = vunpack.c.l.b16 %v1287
      %v1416 = vunpack.c.l.b16 %v1288
      %v1417 = vunpack.c.l.b16 %v1289
      %v1418 = vunpack.c.l.b16 %v1290
      %v1419 = vunpack.c.l.b16 %v1291
      %v1420 = vunpack.c.l.b16 %v1292
      %v1421 = vunpack.c.l.b16 %v1293
      %v1422 = vunpack.c.l.b16 %v1294
      %v1423 = vunpack.c.l.b16 %v1295
      %v1424 = vunpack.c.l.b16 %v1296
      %v1425 = vunpack.c.l.b16 %v1297
      %v1426 = vunpack.c.l.b16 %v1298
      %v1427 = vunpack.c.l.b16 %v1299
      %v1428 = vunpack.c.l.b16 %v1300
      %v1429 = vunpack.c.l.b16 %v1301
      %v1430 = vunpack.c.l.b16 %v1302
      %v1431 = vunpack.c.l.b16 %v1303
      %v1432 = vunpack.c.l.b16 %v1304
      %v1433 = vunpack.c.l.b16 %v1305
      %v1434 = vunpack.c.l.b16 %v1306
      %v1435 = vunpack.c.l.b16 %v1307
      %v1436 = vunpack.c.l.b16 %v1308
      %v1437 = vunpack.c.l.b16 %v1309
      %v1438 = vunpack.c.l.b16 %v1310
      %v1439 = vunpack.c.l.b16 %v1311
      %v1440 = vunpack.c.l.b16 %v1312
      %v1441 = vunpack.c.l.b16 %v1313
      %v1442 = vunpack.c.l.b16 %v1314
      %v1443 = vunpack.c.l.b16 %v1315
      %v1444 = vunpack.c.l.b16 %v1316
      %v1445 = vunpack.c.l.b16 %v1317
      %v1446 = vunpack.c.l.b16 %v1318
      %v1447 = vunpack.c.l.b16 %v1319
      %v1448 = vunpack.c.l.b16 %v1320
      %v1449 = vunpack.c.l.b16 %v1321
      %v1450 = vunpack.c.l.b16 %v1322
      %v1451 = vunpack.c.l.b16 %v1323
      %v1452 = vunpack.c.l.b16 %v1324
      %v1453 = vunpack.c.l.b16 %v1325
      %v1454 = vunpack.c.l.b16 %v1326
      %v1455 = vunpack.c.l.b16 %v1327
      %v1456 = vunpack.c.l.b16 %v1328
      %v1457 = vunpack.c.l.b16 %v1329
      %v1458 = vunpack.c.l.b16 %v1330
      %v1459 = vunpack.c.l.b16 %v1331
      %v1460 = vunpack.c.l.b16 %v1332
      %v1461 = vunpack.c.l.b16 %v1333
      %v1462 = vunpack.c.l.b16 %v1334
      %v1463 = vpack.c.b16 %v1400, %v1399
      %v1464 = vpack.c.b16 %v1402, %v1401
      %v1465 = vpack.c.b16 %v1404, %v1403
      %v1466 = vpack.c.b16 %v1406, %v1405
      %v1467 = vpack.c.b16 %v1408, %v1407
      %v1468 = vpack.c.b16 %v1410, %v1409
      %v1469 = vpack.c.b16 %v1412, %v1411
      %v1470 = vpack.c.b16 %v1414, %v1413
      %v1471 = vpack.c.b16 %v1416, %v1415
      %v1472 = vpack.c.b16 %v1418, %v1417
      %v1473 = vpack.c.b16 %v1420, %v1419
      %v1474 = vpack.c.b16 %v1422, %v1421
      %v1475 = vpack.c.b16 %v1424, %v1423
      %v1476 = vpack.c.b16 %v1426, %v1425
      %v1477 = vpack.c.b16 %v1428, %v1427
      %v1478 = vpack.c.b16 %v1430, %v1429
      %v1479 = vpack.c.b16 %v1432, %v1431
      %v1480 = vpack.c.b16 %v1434, %v1433
      %v1481 = vpack.c.b16 %v1436, %v1435
      %v1482 = vpack.c.b16 %v1438, %v1437
      %v1483 = vpack.c.b16 %v1440, %v1439
      %v1484 = vpack.c.b16 %v1442, %v1441
      %v1485 = vpack.c.b16 %v1444, %v1443
      %v1486 = vpack.c.b16 %v1446, %v1445
      %v1487 = vpack.c.b16 %v1448, %v1447
      %v1488 = vpack.c.b16 %v1450, %v1449
      %v1489 = vpack.c.b16 %v1452, %v1451
      %v1490 = vpack.c.b16 %v1454, %v1453
      %v1491 = vpack.c.b16 %v1456, %v1455
      %v1492 = vpack.c.b16 %v1458, %v1457
      %v1493 = vpack.c.b16 %v1460, %v1459
      %v1494 = vpack.c.b16 %v1462, %v1461
      %1527 = vxpose.xlu0.c.b16.start [1/8] %v1463, 128
      %1528 = vxpose.xlu0.c.b16.cont [2/8] %v1464, 128
      %1529 = vxpose.xlu0.c.b16.cont [3/8] %v1465, 128
      %1530 = vxpose.xlu0.c.b16.cont [4/8] %v1466, 128
      %1531 = vxpose.xlu0.c.b16.cont [5/8] %v1467, 128
      %1532 = vxpose.xlu0.c.b16.cont [6/8] %v1468, 128
      %1533 = vxpose.xlu0.c.b16.cont [7/8] %v1469, 128
      %1534 = vxpose.xlu0.c.b16.end [8/8] %v1470, 128
      %v1535 = vpop.trf.xlu0
      %v1536 = vpop.trf.xlu0
      %v1537 = vpop.trf.xlu0
      %v1538 = vpop.trf.xlu0
      %v1539 = vpop.trf.xlu0
      %v1540 = vpop.trf.xlu0
      %v1541 = vpop.trf.xlu0
      %v1542 = vpop.trf.xlu0
      %1543 = vxpose.xlu0.c.b16.start [1/8] %v1471, 128
      %1544 = vxpose.xlu0.c.b16.cont [2/8] %v1472, 128
      %1545 = vxpose.xlu0.c.b16.cont [3/8] %v1473, 128
      %1546 = vxpose.xlu0.c.b16.cont [4/8] %v1474, 128
      %1547 = vxpose.xlu0.c.b16.cont [5/8] %v1475, 128
      %1548 = vxpose.xlu0.c.b16.cont [6/8] %v1476, 128
      %1549 = vxpose.xlu0.c.b16.cont [7/8] %v1477, 128
      %1550 = vxpose.xlu0.c.b16.end [8/8] %v1478, 128
      %v1551 = vpop.trf.xlu0
      %v1552 = vpop.trf.xlu0
      %v1553 = vpop.trf.xlu0
      %v1554 = vpop.trf.xlu0
      %v1555 = vpop.trf.xlu0
      %v1556 = vpop.trf.xlu0
      %v1557 = vpop.trf.xlu0
      %v1558 = vpop.trf.xlu0
      %1559 = vxpose.xlu0.c.b16.start [1/8] %v1479, 128
      %1560 = vxpose.xlu0.c.b16.cont [2/8] %v1480, 128
      %1561 = vxpose.xlu0.c.b16.cont [3/8] %v1481, 128
      %1562 = vxpose.xlu0.c.b16.cont [4/8] %v1482, 128
      %1563 = vxpose.xlu0.c.b16.cont [5/8] %v1483, 128
      %1564 = vxpose.xlu0.c.b16.cont [6/8] %v1484, 128
      %1565 = vxpose.xlu0.c.b16.cont [7/8] %v1485, 128
      %1566 = vxpose.xlu0.c.b16.end [8/8] %v1486, 128
      %v1567 = vpop.trf.xlu0
      %v1568 = vpop.trf.xlu0
      %v1569 = vpop.trf.xlu0
      %v1570 = vpop.trf.xlu0
      %v1571 = vpop.trf.xlu0
      %v1572 = vpop.trf.xlu0
      %v1573 = vpop.trf.xlu0
      %v1574 = vpop.trf.xlu0
      %1575 = vxpose.xlu0.c.b16.start [1/8] %v1487, 128
      %1576 = vxpose.xlu0.c.b16.cont [2/8] %v1488, 128
      %1577 = vxpose.xlu0.c.b16.cont [3/8] %v1489, 128
      %1578 = vxpose.xlu0.c.b16.cont [4/8] %v1490, 128
      %1579 = vxpose.xlu0.c.b16.cont [5/8] %v1491, 128
      %1580 = vxpose.xlu0.c.b16.cont [6/8] %v1492, 128
      %1581 = vxpose.xlu0.c.b16.cont [7/8] %v1493, 128
      %1582 = vxpose.xlu0.c.b16.end [8/8] %v1494, 128
      %v1583 = vpop.trf.xlu0
      %v1584 = vpop.trf.xlu0
      %v1585 = vpop.trf.xlu0
      %v1586 = vpop.trf.xlu0
      %v1587 = vpop.trf.xlu0
      %v1588 = vpop.trf.xlu0
      %v1589 = vpop.trf.xlu0
      %v1590 = vpop.trf.xlu0
      %v1655 = vunpack.c.l.b16 %v359
      %v1656 = vunpack.c.l.b16 %v360
      %v1657 = vunpack.c.l.b16 %v361
      %v1658 = vunpack.c.l.b16 %v362
      %v1659 = vunpack.c.l.b16 %v363
      %v1660 = vunpack.c.l.b16 %v364
      %v1661 = vunpack.c.l.b16 %v365
      %v1662 = vunpack.c.l.b16 %v366
      %v1663 = vunpack.c.l.b16 %v367
      %v1664 = vunpack.c.l.b16 %v368
      %v1665 = vunpack.c.l.b16 %v369
      %v1666 = vunpack.c.l.b16 %v370
      %v1667 = vunpack.c.l.b16 %v371
      %v1668 = vunpack.c.l.b16 %v372
      %v1669 = vunpack.c.l.b16 %v373
      %v1670 = vunpack.c.l.b16 %v374
      %v1671 = vunpack.c.l.b16 %v375
      %v1672 = vunpack.c.l.b16 %v376
      %v1673 = vunpack.c.l.b16 %v377
      %v1674 = vunpack.c.l.b16 %v378
      %v1675 = vunpack.c.l.b16 %v379
      %v1676 = vunpack.c.l.b16 %v380
      %v1677 = vunpack.c.l.b16 %v381
      %v1678 = vunpack.c.l.b16 %v382
      %v1679 = vunpack.c.l.b16 %v383
      %v1680 = vunpack.c.l.b16 %v384
      %v1681 = vunpack.c.l.b16 %v385
      %v1682 = vunpack.c.l.b16 %v386
      %v1683 = vunpack.c.l.b16 %v387
      %v1684 = vunpack.c.l.b16 %v388
      %v1685 = vunpack.c.l.b16 %v389
      %v1686 = vunpack.c.l.b16 %v390
      %v1687 = vunpack.c.l.b16 %v391
      %v1688 = vunpack.c.l.b16 %v392
      %v1689 = vunpack.c.l.b16 %v393
      %v1690 = vunpack.c.l.b16 %v394
      %v1691 = vunpack.c.l.b16 %v395
      %v1692 = vunpack.c.l.b16 %v396
      %v1693 = vunpack.c.l.b16 %v397
      %v1694 = vunpack.c.l.b16 %v398
      %v1695 = vunpack.c.l.b16 %v399
      %v1696 = vunpack.c.l.b16 %v400
      %v1697 = vunpack.c.l.b16 %v401
      %v1698 = vunpack.c.l.b16 %v402
      %v1699 = vunpack.c.l.b16 %v403
      %v1700 = vunpack.c.l.b16 %v404
      %v1701 = vunpack.c.l.b16 %v405
      %v1702 = vunpack.c.l.b16 %v406
      %v1703 = vunpack.c.l.b16 %v407
      %v1704 = vunpack.c.l.b16 %v408
      %v1705 = vunpack.c.l.b16 %v409
      %v1706 = vunpack.c.l.b16 %v410
      %v1707 = vunpack.c.l.b16 %v411
      %v1708 = vunpack.c.l.b16 %v412
      %v1709 = vunpack.c.l.b16 %v413
      %v1710 = vunpack.c.l.b16 %v414
      %v1711 = vunpack.c.l.b16 %v415
      %v1712 = vunpack.c.l.b16 %v416
      %v1713 = vunpack.c.l.b16 %v417
      %v1714 = vunpack.c.l.b16 %v418
      %v1715 = vunpack.c.l.b16 %v419
      %v1716 = vunpack.c.l.b16 %v420
      %v1717 = vunpack.c.l.b16 %v421
      %v1718 = vunpack.c.l.b16 %v422
      %v1719 = vpack.c.b16 %v1656, %v1655
      %v1720 = vpack.c.b16 %v1658, %v1657
      %v1721 = vpack.c.b16 %v1660, %v1659
      %v1722 = vpack.c.b16 %v1662, %v1661
      %v1723 = vpack.c.b16 %v1664, %v1663
      %v1724 = vpack.c.b16 %v1666, %v1665
      %v1725 = vpack.c.b16 %v1668, %v1667
      %v1726 = vpack.c.b16 %v1670, %v1669
      %v1727 = vpack.c.b16 %v1672, %v1671
      %v1728 = vpack.c.b16 %v1674, %v1673
      %v1729 = vpack.c.b16 %v1676, %v1675
      %v1730 = vpack.c.b16 %v1678, %v1677
      %v1731 = vpack.c.b16 %v1680, %v1679
      %v1732 = vpack.c.b16 %v1682, %v1681
      %v1733 = vpack.c.b16 %v1684, %v1683
      %v1734 = vpack.c.b16 %v1686, %v1685
      %v1735 = vpack.c.b16 %v1688, %v1687
      %v1736 = vpack.c.b16 %v1690, %v1689
      %v1737 = vpack.c.b16 %v1692, %v1691
      %v1738 = vpack.c.b16 %v1694, %v1693
      %v1739 = vpack.c.b16 %v1696, %v1695
      %v1740 = vpack.c.b16 %v1698, %v1697
      %v1741 = vpack.c.b16 %v1700, %v1699
      %v1742 = vpack.c.b16 %v1702, %v1701
      %v1743 = vpack.c.b16 %v1704, %v1703
      %v1744 = vpack.c.b16 %v1706, %v1705
      %v1745 = vpack.c.b16 %v1708, %v1707
      %v1746 = vpack.c.b16 %v1710, %v1709
      %v1747 = vpack.c.b16 %v1712, %v1711
      %v1748 = vpack.c.b16 %v1714, %v1713
      %v1749 = vpack.c.b16 %v1716, %v1715
      %v1750 = vpack.c.b16 %v1718, %v1717
      %1783 = vmatprep.subr.bf16.mxu0 0
      %1784 = vmatpush1.bf16.msra.mxu0 %v1719
      %1785 = vmatprep.subr.bf16.mxu0 0
      %1786 = vmatpush1.bf16.msra.mxu0 %v1720
      %1787 = vmatprep.subr.bf16.mxu0 0
      %1788 = vmatpush1.bf16.msra.mxu0 %v1721
      %1789 = vmatprep.subr.bf16.mxu0 0
      %1790 = vmatpush1.bf16.msra.mxu0 %v1722
      %1791 = vmatprep.subr.bf16.mxu0 0
      %1792 = vmatpush1.bf16.msra.mxu0 %v1723
      %1793 = vmatprep.subr.bf16.mxu0 0
      %1794 = vmatpush1.bf16.msra.mxu0 %v1724
      %1795 = vmatprep.subr.bf16.mxu0 0
      %1796 = vmatpush1.bf16.msra.mxu0 %v1725
      %1797 = vmatprep.subr.bf16.mxu0 0
      %1798 = vmatpush1.bf16.msra.mxu0 %v1726
      %1799 = vmatprep.subr.bf16.mxu0 0
      %1800 = vmatpush1.bf16.msra.mxu0 %v1727
      %1801 = vmatprep.subr.bf16.mxu0 0
      %1802 = vmatpush1.bf16.msra.mxu0 %v1728
      %1803 = vmatprep.subr.bf16.mxu0 0
      %1804 = vmatpush1.bf16.msra.mxu0 %v1729
      %1805 = vmatprep.subr.bf16.mxu0 0
      %1806 = vmatpush1.bf16.msra.mxu0 %v1730
      %1807 = vmatprep.subr.bf16.mxu0 0
      %1808 = vmatpush1.bf16.msra.mxu0 %v1731
      %1809 = vmatprep.subr.bf16.mxu0 0
      %1810 = vmatpush1.bf16.msra.mxu0 %v1732
      %1811 = vmatprep.subr.bf16.mxu0 0
      %1812 = vmatpush1.bf16.msra.mxu0 %v1733
      %1813 = vmatprep.subr.bf16.mxu0 0
      %1814 = vmatpush1.bf16.msra.mxu0 %v1734
      %1815 = vmatprep.mubr.bf16.mxu0 %v1551
      %1816 = vmatmul.mubr.bf16.gmra.mrb[0].mxu0 %v1535
      %v1817 = vpop.f32.mrb[0].mxu0
      %v1818 = vadd.f32 0.0, %v1817
      %v1819 = vpop.f32.mrb[0].mxu0
      %v1820 = vpop.f32.mrb[0].mxu0
      %v1821 = vadd.f32 0.0, %v1820
      %v1822 = vpop.f32.mrb[0].mxu0
      %1823 = vmatprep.mubr.bf16.mxu0 %v1552
      %1824 = vmatmul.mubr.bf16.gmra.mrb[0].mxu0 %v1536
      %v1825 = vpop.f32.mrb[0].mxu0
      %v1826 = vadd.f32 0.0, %v1825
      %v1827 = vpop.f32.mrb[0].mxu0
      %v1828 = vpop.f32.mrb[0].mxu0
      %v1829 = vadd.f32 0.0, %v1828
      %v1830 = vpop.f32.mrb[0].mxu0
      %1831 = vmatprep.mubr.bf16.mxu0 %v1553
      %1832 = vmatmul.mubr.bf16.gmra.mrb[0].mxu0 %v1537
      %v1833 = vpop.f32.mrb[0].mxu0
      %v1834 = vadd.f32 0.0, %v1833
      %v1835 = vpop.f32.mrb[0].mxu0
      %v1836 = vpop.f32.mrb[0].mxu0
      %v1837 = vadd.f32 0.0, %v1836
      %v1838 = vpop.f32.mrb[0].mxu0
      %1839 = vmatprep.mubr.bf16.mxu0 %v1554
      %1840 = vmatmul.mubr.bf16.gmra.mrb[0].mxu0 %v1538
      %v1841 = vpop.f32.mrb[0].mxu0
      %v1842 = vadd.f32 0.0, %v1841
      %v1843 = vpop.f32.mrb[0].mxu0
      %v1844 = vpop.f32.mrb[0].mxu0
      %v1845 = vadd.f32 0.0, %v1844
      %v1846 = vpop.f32.mrb[0].mxu0
      %1847 = vmatprep.mubr.bf16.mxu0 %v1555
      %1848 = vmatmul.mubr.bf16.gmra.mrb[0].mxu0 %v1539
      %v1849 = vpop.f32.mrb[0].mxu0
      %v1850 = vadd.f32 0.0, %v1849
      %v1851 = vpop.f32.mrb[0].mxu0
      %v1852 = vpop.f32.mrb[0].mxu0
      %v1853 = vadd.f32 0.0, %v1852
      %v1854 = vpop.f32.mrb[0].mxu0
      %1855 = vmatprep.mubr.bf16.mxu0 %v1556
      %1856 = vmatmul.mubr.bf16.gmra.mrb[0].mxu0 %v1540
      %v1857 = vpop.f32.mrb[0].mxu0
      %v1858 = vadd.f32 0.0, %v1857
      %v1859 = vpop.f32.mrb[0].mxu0
      %v1860 = vpop.f32.mrb[0].mxu0
      %v1861 = vadd.f32 0.0, %v1860
      %v1862 = vpop.f32.mrb[0].mxu0
      %1863 = vmatprep.mubr.bf16.mxu0 %v1557
      %1864 = vmatmul.mubr.bf16.gmra.mrb[0].mxu0 %v1541
      %v1865 = vpop.f32.mrb[0].mxu0
      %v1866 = vadd.f32 0.0, %v1865
      %v1867 = vpop.f32.mrb[0].mxu0
      %v1868 = vpop.f32.mrb[0].mxu0
      %v1869 = vadd.f32 0.0, %v1868
      %v1870 = vpop.f32.mrb[0].mxu0
      %1871 = vmatprep.mubr.bf16.mxu0 %v1558
      %1872 = vmatmul.mubr.bf16.gmra.mrb[0].mxu0 %v1542
      %v1873 = vpop.f32.mrb[0].mxu0
      %v1874 = vadd.f32 0.0, %v1873
      %v1875 = vpop.f32.mrb[0].mxu0
      %v1876 = vpop.f32.mrb[0].mxu0
      %v1877 = vadd.f32 0.0, %v1876
      %v1878 = vpop.f32.mrb[0].mxu0
      %1879 = vdwg.mxu0
      %1880 = vmatprep.subr.bf16.mxu0 0
      %1881 = vmatpush1.bf16.msra.mxu0 %v1735
      %1882 = vmatprep.subr.bf16.mxu0 0
      %1883 = vmatpush1.bf16.msra.mxu0 %v1736
      %1884 = vmatprep.subr.bf16.mxu0 0
      %1885 = vmatpush1.bf16.msra.mxu0 %v1737
      %1886 = vmatprep.subr.bf16.mxu0 0
      %1887 = vmatpush1.bf16.msra.mxu0 %v1738
      %1888 = vmatprep.subr.bf16.mxu0 0
      %1889 = vmatpush1.bf16.msra.mxu0 %v1739
      %1890 = vmatprep.subr.bf16.mxu0 0
      %1891 = vmatpush1.bf16.msra.mxu0 %v1740
      %1892 = vmatprep.subr.bf16.mxu0 0
      %1893 = vmatpush1.bf16.msra.mxu0 %v1741
      %1894 = vmatprep.subr.bf16.mxu0 0
      %1895 = vmatpush1.bf16.msra.mxu0 %v1742
      %1896 = vmatprep.subr.bf16.mxu0 0
      %1897 = vmatpush1.bf16.msra.mxu0 %v1743
      %1898 = vmatprep.subr.bf16.mxu0 0
      %1899 = vmatpush1.bf16.msra.mxu0 %v1744
      %1900 = vmatprep.subr.bf16.mxu0 0
      %1901 = vmatpush1.bf16.msra.mxu0 %v1745
      %1902 = vmatprep.subr.bf16.mxu0 0
      %1903 = vmatpush1.bf16.msra.mxu0 %v1746
      %1904 = vmatprep.subr.bf16.mxu0 0
      %1905 = vmatpush1.bf16.msra.mxu0 %v1747
      %1906 = vmatprep.subr.bf16.mxu0 0
      %1907 = vmatpush1.bf16.msra.mxu0 %v1748
      %1908 = vmatprep.subr.bf16.mxu0 0
      %1909 = vmatpush1.bf16.msra.mxu0 %v1749
      %1910 = vmatprep.subr.bf16.mxu0 0
      %1911 = vmatpush1.bf16.msra.mxu0 %v1750
      %1912 = vmatprep.mubr.bf16.mxu0 %v1583
      %1913 = vmatmul.mubr.bf16.gmra.mrb[0].mxu0 %v1567
      %v1914 = vpop.f32.mrb[0].mxu0
      %v1915 = vadd.f32 %v1818, %v1914
      %v1916 = vpop.f32.mrb[0].mxu0
      %v1917 = vpop.f32.mrb[0].mxu0
      %v1918 = vadd.f32 %v1821, %v1917
      %v1919 = vpop.f32.mrb[0].mxu0
      %1920 = vmatprep.mubr.bf16.mxu0 %v1584
      %1921 = vmatmul.mubr.bf16.gmra.mrb[0].mxu0 %v1568
      %v1922 = vpop.f32.mrb[0].mxu0
      %v1923 = vadd.f32 %v1826, %v1922
      %v1924 = vpop.f32.mrb[0].mxu0
      %v1925 = vpop.f32.mrb[0].mxu0
      %v1926 = vadd.f32 %v1829, %v1925
      %v1927 = vpop.f32.mrb[0].mxu0
      %1928 = vmatprep.mubr.bf16.mxu0 %v1585
      %1929 = vmatmul.mubr.bf16.gmra.mrb[0].mxu0 %v1569
      %v1930 = vpop.f32.mrb[0].mxu0
      %v1931 = vadd.f32 %v1834, %v1930
      %v1932 = vpop.f32.mrb[0].mxu0
      %v1933 = vpop.f32.mrb[0].mxu0
      %v1934 = vadd.f32 %v1837, %v1933
      %v1935 = vpop.f32.mrb[0].mxu0
      %1936 = vmatprep.mubr.bf16.mxu0 %v1586
      %1937 = vmatmul.mubr.bf16.gmra.mrb[0].mxu0 %v1570
      %v1938 = vpop.f32.mrb[0].mxu0
      %v1939 = vadd.f32 %v1842, %v1938
      %v1940 = vpop.f32.mrb[0].mxu0
      %v1941 = vpop.f32.mrb[0].mxu0
      %v1942 = vadd.f32 %v1845, %v1941
      %v1943 = vpop.f32.mrb[0].mxu0
      %1944 = vmatprep.mubr.bf16.mxu0 %v1587
      %1945 = vmatmul.mubr.bf16.gmra.mrb[0].mxu0 %v1571
      %v1946 = vpop.f32.mrb[0].mxu0
      %v1947 = vadd.f32 %v1850, %v1946
      %v1948 = vpop.f32.mrb[0].mxu0
      %v1949 = vpop.f32.mrb[0].mxu0
      %v1950 = vadd.f32 %v1853, %v1949
      %v1951 = vpop.f32.mrb[0].mxu0
      %1952 = vmatprep.mubr.bf16.mxu0 %v1588
      %1953 = vmatmul.mubr.bf16.gmra.mrb[0].mxu0 %v1572
      %v1954 = vpop.f32.mrb[0].mxu0
      %v1955 = vadd.f32 %v1858, %v1954
      %v1956 = vpop.f32.mrb[0].mxu0
      %v1957 = vpop.f32.mrb[0].mxu0
      %v1958 = vadd.f32 %v1861, %v1957
      %v1959 = vpop.f32.mrb[0].mxu0
      %1960 = vmatprep.mubr.bf16.mxu0 %v1589
      %1961 = vmatmul.mubr.bf16.gmra.mrb[0].mxu0 %v1573
      %v1962 = vpop.f32.mrb[0].mxu0
      %v1963 = vadd.f32 %v1866, %v1962
      %v1964 = vpop.f32.mrb[0].mxu0
      %v1965 = vpop.f32.mrb[0].mxu0
      %v1966 = vadd.f32 %v1869, %v1965
      %v1967 = vpop.f32.mrb[0].mxu0
      %1968 = vmatprep.mubr.bf16.mxu0 %v1590
      %1969 = vmatmul.mubr.bf16.gmra.mrb[0].mxu0 %v1574
      %v1970 = vpop.f32.mrb[0].mxu0
      %v1971 = vadd.f32 %v1874, %v1970
      %v1972 = vpop.f32.mrb[0].mxu0
      %v1973 = vpop.f32.mrb[0].mxu0
      %v1974 = vadd.f32 %v1877, %v1973
      %v1975 = vpop.f32.mrb[0].mxu0
      %1976 = vdwg.mxu0
      %v1977 = vadd.f32 %v583, %v1915
      %v1978 = vadd.f32 %v584, %v1918
      %v1979 = vadd.f32 %v585, %v1923
      %v1980 = vadd.f32 %v586, %v1926
      %v1981 = vadd.f32 %v587, %v1931
      %v1982 = vadd.f32 %v588, %v1934
      %v1983 = vadd.f32 %v589, %v1939
      %v1984 = vadd.f32 %v590, %v1942
      %v1985 = vadd.f32 %v591, %v1947
      %v1986 = vadd.f32 %v592, %v1950
      %v1987 = vadd.f32 %v593, %v1955
      %v1988 = vadd.f32 %v594, %v1958
      %v1989 = vadd.f32 %v595, %v1963
      %v1990 = vadd.f32 %v596, %v1966
      %v1991 = vadd.f32 %v597, %v1971
      %v1992 = vadd.f32 %v598, %v1974
      %1993 = vst [vmem:[#allocation2] sm:$0xff] %v1977
      %1994 = vst [vmem:[#allocation2 + $0x8] sm:$0xff] %v1978
      %1995 = vst [vmem:[#allocation2 + $0x10] sm:$0xff] %v1979
      %1996 = vst [vmem:[#allocation2 + $0x18] sm:$0xff] %v1980
      %1997 = vst [vmem:[#allocation2 + $0x20] sm:$0xff] %v1981
      %1998 = vst [vmem:[#allocation2 + $0x28] sm:$0xff] %v1982
      %1999 = vst [vmem:[#allocation2 + $0x30] sm:$0xff] %v1983
      %2000 = vst [vmem:[#allocation2 + $0x38] sm:$0xff] %v1984
      %2001 = vst [vmem:[#allocation2 + $0x40] sm:$0xff] %v1985
      %2002 = vst [vmem:[#allocation2 + $0x48] sm:$0xff] %v1986
      %2003 = vst [vmem:[#allocation2 + $0x50] sm:$0xff] %v1987
      %2004 = vst [vmem:[#allocation2 + $0x58] sm:$0xff] %v1988
      %2005 = vst [vmem:[#allocation2 + $0x60] sm:$0xff] %v1989
      %2006 = vst [vmem:[#allocation2 + $0x68] sm:$0xff] %v1990
      %2007 = vst [vmem:[#allocation2 + $0x70] sm:$0xff] %v1991
      %2008 = vst [vmem:[#allocation2 + $0x78] sm:$0xff] %v1992
      %v2009 = vld [vmem:[#allocation3] sm:$0xff]
      %v2010 = vld [vmem:[#allocation3 + $0x8] sm:$0xff]
      %v2011 = vld [vmem:[#allocation3 + $0x10] sm:$0xff]
      %v2012 = vld [vmem:[#allocation3 + $0x18] sm:$0xff]
      %v2013 = vld [vmem:[#allocation3 + $0x20] sm:$0xff]
      %v2014 = vld [vmem:[#allocation3 + $0x28] sm:$0xff]
      %v2015 = vld [vmem:[#allocation3 + $0x30] sm:$0xff]
      %v2016 = vld [vmem:[#allocation3 + $0x38] sm:$0xff]
      %v2017 = vld [vmem:[#allocation3 + $0x40] sm:$0xff]
      %v2018 = vld [vmem:[#allocation3 + $0x48] sm:$0xff]
      %v2019 = vld [vmem:[#allocation3 + $0x50] sm:$0xff]
      %v2020 = vld [vmem:[#allocation3 + $0x58] sm:$0xff]
      %v2021 = vld [vmem:[#allocation3 + $0x60] sm:$0xff]
      %v2022 = vld [vmem:[#allocation3 + $0x68] sm:$0xff]
      %v2023 = vld [vmem:[#allocation3 + $0x70] sm:$0xff]
      %v2024 = vld [vmem:[#allocation3 + $0x78] sm:$0xff]
      %v2025 = vmul.bf16 %v423, %v765
      %v2026 = vmul.bf16 %v424, %v772
      %v2027 = vmul.bf16 %v425, %v779
      %v2028 = vmul.bf16 %v426, %v786
      %v2029 = vmul.bf16 %v427, %v793
      %v2030 = vmul.bf16 %v428, %v800
      %v2031 = vmul.bf16 %v429, %v807
      %v2032 = vmul.bf16 %v430, %v814
      %v2033 = vmul.bf16 %v431, %v821
      %v2034 = vmul.bf16 %v432, %v828
      %v2035 = vmul.bf16 %v433, %v835
      %v2036 = vmul.bf16 %v434, %v842
      %v2037 = vmul.bf16 %v435, %v849
      %v2038 = vmul.bf16 %v436, %v856
      %v2039 = vmul.bf16 %v437, %v863
      %v2040 = vmul.bf16 %v438, %v870
      %v2041 = vmul.bf16 %v439, %v877
      %v2042 = vmul.bf16 %v440, %v884
      %v2043 = vmul.bf16 %v441, %v891
      %v2044 = vmul.bf16 %v442, %v898
      %v2045 = vmul.bf16 %v443, %v905
      %v2046 = vmul.bf16 %v444, %v912
      %v2047 = vmul.bf16 %v445, %v919
      %v2048 = vmul.bf16 %v446, %v926
      %v2049 = vmul.bf16 %v447, %v933
      %v2050 = vmul.bf16 %v448, %v940
      %v2051 = vmul.bf16 %v449, %v947
      %v2052 = vmul.bf16 %v450, %v954
      %v2053 = vmul.bf16 %v451, %v961
      %v2054 = vmul.bf16 %v452, %v968
      %v2055 = vmul.bf16 %v453, %v975
      %v2056 = vmul.bf16 %v454, %v982
      %v2057 = vmul.bf16 %v455, %v989
      %v2058 = vmul.bf16 %v456, %v996
      %v2059 = vmul.bf16 %v457, %v1003
      %v2060 = vmul.bf16 %v458, %v1010
      %v2061 = vmul.bf16 %v459, %v1017
      %v2062 = vmul.bf16 %v460, %v1024
      %v2063 = vmul.bf16 %v461, %v1031
      %v2064 = vmul.bf16 %v462, %v1038
      %v2065 = vmul.bf16 %v463, %v1045
      %v2066 = vmul.bf16 %v464, %v1052
      %v2067 = vmul.bf16 %v465, %v1059
      %v2068 = vmul.bf16 %v466, %v1066
      %v2069 = vmul.bf16 %v467, %v1073
      %v2070 = vmul.bf16 %v468, %v1080
      %v2071 = vmul.bf16 %v469, %v1087
      %v2072 = vmul.bf16 %v470, %v1094
      %v2073 = vmul.bf16 %v471, %v1101
      %v2074 = vmul.bf16 %v472, %v1108
      %v2075 = vmul.bf16 %v473, %v1115
      %v2076 = vmul.bf16 %v474, %v1122
      %v2077 = vmul.bf16 %v475, %v1129
      %v2078 = vmul.bf16 %v476, %v1136
      %v2079 = vmul.bf16 %v477, %v1143
      %v2080 = vmul.bf16 %v478, %v1150
      %v2081 = vmul.bf16 %v479, %v1157
      %v2082 = vmul.bf16 %v480, %v1164
      %v2083 = vmul.bf16 %v481, %v1171
      %v2084 = vmul.bf16 %v482, %v1178
      %v2085 = vmul.bf16 %v483, %v1185
      %v2086 = vmul.bf16 %v484, %v1192
      %v2087 = vmul.bf16 %v485, %v1199
      %v2088 = vmul.bf16 %v486, %v1206
      %v2153 = vunpack.c.l.b16 %v2025
      %v2154 = vunpack.c.l.b16 %v2026
      %v2155 = vunpack.c.l.b16 %v2027
      %v2156 = vunpack.c.l.b16 %v2028
      %v2157 = vunpack.c.l.b16 %v2029
      %v2158 = vunpack.c.l.b16 %v2030
      %v2159 = vunpack.c.l.b16 %v2031
      %v2160 = vunpack.c.l.b16 %v2032
      %v2161 = vunpack.c.l.b16 %v2033
      %v2162 = vunpack.c.l.b16 %v2034
      %v2163 = vunpack.c.l.b16 %v2035
      %v2164 = vunpack.c.l.b16 %v2036
      %v2165 = vunpack.c.l.b16 %v2037
      %v2166 = vunpack.c.l.b16 %v2038
      %v2167 = vunpack.c.l.b16 %v2039
      %v2168 = vunpack.c.l.b16 %v2040
      %v2169 = vunpack.c.l.b16 %v2041
      %v2170 = vunpack.c.l.b16 %v2042
      %v2171 = vunpack.c.l.b16 %v2043
      %v2172 = vunpack.c.l.b16 %v2044
      %v2173 = vunpack.c.l.b16 %v2045
      %v2174 = vunpack.c.l.b16 %v2046
      %v2175 = vunpack.c.l.b16 %v2047
      %v2176 = vunpack.c.l.b16 %v2048
      %v2177 = vunpack.c.l.b16 %v2049
      %v2178 = vunpack.c.l.b16 %v2050
      %v2179 = vunpack.c.l.b16 %v2051
      %v2180 = vunpack.c.l.b16 %v2052
      %v2181 = vunpack.c.l.b16 %v2053
      %v2182 = vunpack.c.l.b16 %v2054
      %v2183 = vunpack.c.l.b16 %v2055
      %v2184 = vunpack.c.l.b16 %v2056
      %v2185 = vunpack.c.l.b16 %v2057
      %v2186 = vunpack.c.l.b16 %v2058
      %v2187 = vunpack.c.l.b16 %v2059
      %v2188 = vunpack.c.l.b16 %v2060
      %v2189 = vunpack.c.l.b16 %v2061
      %v2190 = vunpack.c.l.b16 %v2062
      %v2191 = vunpack.c.l.b16 %v2063
      %v2192 = vunpack.c.l.b16 %v2064
      %v2193 = vunpack.c.l.b16 %v2065
      %v2194 = vunpack.c.l.b16 %v2066
      %v2195 = vunpack.c.l.b16 %v2067
      %v2196 = vunpack.c.l.b16 %v2068
      %v2197 = vunpack.c.l.b16 %v2069
      %v2198 = vunpack.c.l.b16 %v2070
      %v2199 = vunpack.c.l.b16 %v2071
      %v2200 = vunpack.c.l.b16 %v2072
      %v2201 = vunpack.c.l.b16 %v2073
      %v2202 = vunpack.c.l.b16 %v2074
      %v2203 = vunpack.c.l.b16 %v2075
      %v2204 = vunpack.c.l.b16 %v2076
      %v2205 = vunpack.c.l.b16 %v2077
      %v2206 = vunpack.c.l.b16 %v2078
      %v2207 = vunpack.c.l.b16 %v2079
      %v2208 = vunpack.c.l.b16 %v2080
      %v2209 = vunpack.c.l.b16 %v2081
      %v2210 = vunpack.c.l.b16 %v2082
      %v2211 = vunpack.c.l.b16 %v2083
      %v2212 = vunpack.c.l.b16 %v2084
      %v2213 = vunpack.c.l.b16 %v2085
      %v2214 = vunpack.c.l.b16 %v2086
      %v2215 = vunpack.c.l.b16 %v2087
      %v2216 = vunpack.c.l.b16 %v2088
      %v2217 = vpack.c.b16 %v2154, %v2153
      %v2218 = vpack.c.b16 %v2156, %v2155
      %v2219 = vpack.c.b16 %v2158, %v2157
      %v2220 = vpack.c.b16 %v2160, %v2159
      %v2221 = vpack.c.b16 %v2162, %v2161
      %v2222 = vpack.c.b16 %v2164, %v2163
      %v2223 = vpack.c.b16 %v2166, %v2165
      %v2224 = vpack.c.b16 %v2168, %v2167
      %v2225 = vpack.c.b16 %v2170, %v2169
      %v2226 = vpack.c.b16 %v2172, %v2171
      %v2227 = vpack.c.b16 %v2174, %v2173
      %v2228 = vpack.c.b16 %v2176, %v2175
      %v2229 = vpack.c.b16 %v2178, %v2177
      %v2230 = vpack.c.b16 %v2180, %v2179
      %v2231 = vpack.c.b16 %v2182, %v2181
      %v2232 = vpack.c.b16 %v2184, %v2183
      %v2233 = vpack.c.b16 %v2186, %v2185
      %v2234 = vpack.c.b16 %v2188, %v2187
      %v2235 = vpack.c.b16 %v2190, %v2189
      %v2236 = vpack.c.b16 %v2192, %v2191
      %v2237 = vpack.c.b16 %v2194, %v2193
      %v2238 = vpack.c.b16 %v2196, %v2195
      %v2239 = vpack.c.b16 %v2198, %v2197
      %v2240 = vpack.c.b16 %v2200, %v2199
      %v2241 = vpack.c.b16 %v2202, %v2201
      %v2242 = vpack.c.b16 %v2204, %v2203
      %v2243 = vpack.c.b16 %v2206, %v2205
      %v2244 = vpack.c.b16 %v2208, %v2207
      %v2245 = vpack.c.b16 %v2210, %v2209
      %v2246 = vpack.c.b16 %v2212, %v2211
      %v2247 = vpack.c.b16 %v2214, %v2213
      %v2248 = vpack.c.b16 %v2216, %v2215
      %2281 = vxpose.xlu0.c.b16.start [1/8] %v2217, 128
      %2282 = vxpose.xlu0.c.b16.cont [2/8] %v2218, 128
      %2283 = vxpose.xlu0.c.b16.cont [3/8] %v2219, 128
      %2284 = vxpose.xlu0.c.b16.cont [4/8] %v2220, 128
      %2285 = vxpose.xlu0.c.b16.cont [5/8] %v2221, 128
      %2286 = vxpose.xlu0.c.b16.cont [6/8] %v2222, 128
      %2287 = vxpose.xlu0.c.b16.cont [7/8] %v2223, 128
      %2288 = vxpose.xlu0.c.b16.end [8/8] %v2224, 128
      %v2289 = vpop.trf.xlu0
      %v2290 = vpop.trf.xlu0
      %v2291 = vpop.trf.xlu0
      %v2292 = vpop.trf.xlu0
      %v2293 = vpop.trf.xlu0
      %v2294 = vpop.trf.xlu0
      %v2295 = vpop.trf.xlu0
      %v2296 = vpop.trf.xlu0
      %2297 = vxpose.xlu0.c.b16.start [1/8] %v2225, 128
      %2298 = vxpose.xlu0.c.b16.cont [2/8] %v2226, 128
      %2299 = vxpose.xlu0.c.b16.cont [3/8] %v2227, 128
      %2300 = vxpose.xlu0.c.b16.cont [4/8] %v2228, 128
      %2301 = vxpose.xlu0.c.b16.cont [5/8] %v2229, 128
      %2302 = vxpose.xlu0.c.b16.cont [6/8] %v2230, 128
      %2303 = vxpose.xlu0.c.b16.cont [7/8] %v2231, 128
      %2304 = vxpose.xlu0.c.b16.end [8/8] %v2232, 128
      %v2305 = vpop.trf.xlu0
      %v2306 = vpop.trf.xlu0
      %v2307 = vpop.trf.xlu0
      %v2308 = vpop.trf.xlu0
      %v2309 = vpop.trf.xlu0
      %v2310 = vpop.trf.xlu0
      %v2311 = vpop.trf.xlu0
      %v2312 = vpop.trf.xlu0
      %2313 = vxpose.xlu0.c.b16.start [1/8] %v2233, 128
      %2314 = vxpose.xlu0.c.b16.cont [2/8] %v2234, 128
      %2315 = vxpose.xlu0.c.b16.cont [3/8] %v2235, 128
      %2316 = vxpose.xlu0.c.b16.cont [4/8] %v2236, 128
      %2317 = vxpose.xlu0.c.b16.cont [5/8] %v2237, 128
      %2318 = vxpose.xlu0.c.b16.cont [6/8] %v2238, 128
      %2319 = vxpose.xlu0.c.b16.cont [7/8] %v2239, 128
      %2320 = vxpose.xlu0.c.b16.end [8/8] %v2240, 128
      %v2321 = vpop.trf.xlu0
      %v2322 = vpop.trf.xlu0
      %v2323 = vpop.trf.xlu0
      %v2324 = vpop.trf.xlu0
      %v2325 = vpop.trf.xlu0
      %v2326 = vpop.trf.xlu0
      %v2327 = vpop.trf.xlu0
      %v2328 = vpop.trf.xlu0
      %2329 = vxpose.xlu0.c.b16.start [1/8] %v2241, 128
      %2330 = vxpose.xlu0.c.b16.cont [2/8] %v2242, 128
      %2331 = vxpose.xlu0.c.b16.cont [3/8] %v2243, 128
      %2332 = vxpose.xlu0.c.b16.cont [4/8] %v2244, 128
      %2333 = vxpose.xlu0.c.b16.cont [5/8] %v2245, 128
      %2334 = vxpose.xlu0.c.b16.cont [6/8] %v2246, 128
      %2335 = vxpose.xlu0.c.b16.cont [7/8] %v2247, 128
      %2336 = vxpose.xlu0.c.b16.end [8/8] %v2248, 128
      %v2337 = vpop.trf.xlu0
      %v2338 = vpop.trf.xlu0
      %v2339 = vpop.trf.xlu0
      %v2340 = vpop.trf.xlu0
      %v2341 = vpop.trf.xlu0
      %v2342 = vpop.trf.xlu0
      %v2343 = vpop.trf.xlu0
      %v2344 = vpop.trf.xlu0
      %v2409 = vunpack.c.l.b16 %v423
      %v2410 = vunpack.c.l.b16 %v424
      %v2411 = vunpack.c.l.b16 %v425
      %v2412 = vunpack.c.l.b16 %v426
      %v2413 = vunpack.c.l.b16 %v427
      %v2414 = vunpack.c.l.b16 %v428
      %v2415 = vunpack.c.l.b16 %v429
      %v2416 = vunpack.c.l.b16 %v430
      %v2417 = vunpack.c.l.b16 %v431
      %v2418 = vunpack.c.l.b16 %v432
      %v2419 = vunpack.c.l.b16 %v433
      %v2420 = vunpack.c.l.b16 %v434
      %v2421 = vunpack.c.l.b16 %v435
      %v2422 = vunpack.c.l.b16 %v436
      %v2423 = vunpack.c.l.b16 %v437
      %v2424 = vunpack.c.l.b16 %v438
      %v2425 = vunpack.c.l.b16 %v439
      %v2426 = vunpack.c.l.b16 %v440
      %v2427 = vunpack.c.l.b16 %v441
      %v2428 = vunpack.c.l.b16 %v442
      %v2429 = vunpack.c.l.b16 %v443
      %v2430 = vunpack.c.l.b16 %v444
      %v2431 = vunpack.c.l.b16 %v445
      %v2432 = vunpack.c.l.b16 %v446
      %v2433 = vunpack.c.l.b16 %v447
      %v2434 = vunpack.c.l.b16 %v448
      %v2435 = vunpack.c.l.b16 %v449
      %v2436 = vunpack.c.l.b16 %v450
      %v2437 = vunpack.c.l.b16 %v451
      %v2438 = vunpack.c.l.b16 %v452
      %v2439 = vunpack.c.l.b16 %v453
      %v2440 = vunpack.c.l.b16 %v454
      %v2441 = vunpack.c.l.b16 %v455
      %v2442 = vunpack.c.l.b16 %v456
      %v2443 = vunpack.c.l.b16 %v457
      %v2444 = vunpack.c.l.b16 %v458
      %v2445 = vunpack.c.l.b16 %v459
      %v2446 = vunpack.c.l.b16 %v460
      %v2447 = vunpack.c.l.b16 %v461
      %v2448 = vunpack.c.l.b16 %v462
      %v2449 = vunpack.c.l.b16 %v463
      %v2450 = vunpack.c.l.b16 %v464
      %v2451 = vunpack.c.l.b16 %v465
      %v2452 = vunpack.c.l.b16 %v466
      %v2453 = vunpack.c.l.b16 %v467
      %v2454 = vunpack.c.l.b16 %v468
      %v2455 = vunpack.c.l.b16 %v469
      %v2456 = vunpack.c.l.b16 %v470
      %v2457 = vunpack.c.l.b16 %v471
      %v2458 = vunpack.c.l.b16 %v472
      %v2459 = vunpack.c.l.b16 %v473
      %v2460 = vunpack.c.l.b16 %v474
      %v2461 = vunpack.c.l.b16 %v475
      %v2462 = vunpack.c.l.b16 %v476
      %v2463 = vunpack.c.l.b16 %v477
      %v2464 = vunpack.c.l.b16 %v478
      %v2465 = vunpack.c.l.b16 %v479
      %v2466 = vunpack.c.l.b16 %v480
      %v2467 = vunpack.c.l.b16 %v481
      %v2468 = vunpack.c.l.b16 %v482
      %v2469 = vunpack.c.l.b16 %v483
      %v2470 = vunpack.c.l.b16 %v484
      %v2471 = vunpack.c.l.b16 %v485
      %v2472 = vunpack.c.l.b16 %v486
      %v2473 = vpack.c.b16 %v2410, %v2409
      %v2474 = vpack.c.b16 %v2412, %v2411
      %v2475 = vpack.c.b16 %v2414, %v2413
      %v2476 = vpack.c.b16 %v2416, %v2415
      %v2477 = vpack.c.b16 %v2418, %v2417
      %v2478 = vpack.c.b16 %v2420, %v2419
      %v2479 = vpack.c.b16 %v2422, %v2421
      %v2480 = vpack.c.b16 %v2424, %v2423
      %v2481 = vpack.c.b16 %v2426, %v2425
      %v2482 = vpack.c.b16 %v2428, %v2427
      %v2483 = vpack.c.b16 %v2430, %v2429
      %v2484 = vpack.c.b16 %v2432, %v2431
      %v2485 = vpack.c.b16 %v2434, %v2433
      %v2486 = vpack.c.b16 %v2436, %v2435
      %v2487 = vpack.c.b16 %v2438, %v2437
      %v2488 = vpack.c.b16 %v2440, %v2439
      %v2489 = vpack.c.b16 %v2442, %v2441
      %v2490 = vpack.c.b16 %v2444, %v2443
      %v2491 = vpack.c.b16 %v2446, %v2445
      %v2492 = vpack.c.b16 %v2448, %v2447
      %v2493 = vpack.c.b16 %v2450, %v2449
      %v2494 = vpack.c.b16 %v2452, %v2451
      %v2495 = vpack.c.b16 %v2454, %v2453
      %v2496 = vpack.c.b16 %v2456, %v2455
      %v2497 = vpack.c.b16 %v2458, %v2457
      %v2498 = vpack.c.b16 %v2460, %v2459
      %v2499 = vpack.c.b16 %v2462, %v2461
      %v2500 = vpack.c.b16 %v2464, %v2463
      %v2501 = vpack.c.b16 %v2466, %v2465
      %v2502 = vpack.c.b16 %v2468, %v2467
      %v2503 = vpack.c.b16 %v2470, %v2469
      %v2504 = vpack.c.b16 %v2472, %v2471
      %2537 = vmatprep.subr.bf16.mxu0 0
      %2538 = vmatpush1.bf16.msra.mxu0 %v2473
      %2539 = vmatprep.subr.bf16.mxu0 0
      %2540 = vmatpush1.bf16.msra.mxu0 %v2474
      %2541 = vmatprep.subr.bf16.mxu0 0
      %2542 = vmatpush1.bf16.msra.mxu0 %v2475
      %2543 = vmatprep.subr.bf16.mxu0 0
      %2544 = vmatpush1.bf16.msra.mxu0 %v2476
      %2545 = vmatprep.subr.bf16.mxu0 0
      %2546 = vmatpush1.bf16.msra.mxu0 %v2477
      %2547 = vmatprep.subr.bf16.mxu0 0
      %2548 = vmatpush1.bf16.msra.mxu0 %v2478
      %2549 = vmatprep.subr.bf16.mxu0 0
      %2550 = vmatpush1.bf16.msra.mxu0 %v2479
      %2551 = vmatprep.subr.bf16.mxu0 0
      %2552 = vmatpush1.bf16.msra.mxu0 %v2480
      %2553 = vmatprep.subr.bf16.mxu0 0
      %2554 = vmatpush1.bf16.msra.mxu0 %v2481
      %2555 = vmatprep.subr.bf16.mxu0 0
      %2556 = vmatpush1.bf16.msra.mxu0 %v2482
      %2557 = vmatprep.subr.bf16.mxu0 0
      %2558 = vmatpush1.bf16.msra.mxu0 %v2483
      %2559 = vmatprep.subr.bf16.mxu0 0
      %2560 = vmatpush1.bf16.msra.mxu0 %v2484
      %2561 = vmatprep.subr.bf16.mxu0 0
      %2562 = vmatpush1.bf16.msra.mxu0 %v2485
      %2563 = vmatprep.subr.bf16.mxu0 0
      %2564 = vmatpush1.bf16.msra.mxu0 %v2486
      %2565 = vmatprep.subr.bf16.mxu0 0
      %2566 = vmatpush1.bf16.msra.mxu0 %v2487
      %2567 = vmatprep.subr.bf16.mxu0 0
      %2568 = vmatpush1.bf16.msra.mxu0 %v2488
      %2569 = vmatprep.mubr.bf16.mxu0 %v2305
      %2570 = vmatmul.mubr.bf16.gmra.mrb[0].mxu0 %v2289
      %v2571 = vpop.f32.mrb[0].mxu0
      %v2572 = vadd.f32 0.0, %v2571
      %v2573 = vpop.f32.mrb[0].mxu0
      %v2574 = vpop.f32.mrb[0].mxu0
      %v2575 = vadd.f32 0.0, %v2574
      %v2576 = vpop.f32.mrb[0].mxu0
      %2577 = vmatprep.mubr.bf16.mxu0 %v2306
      %2578 = vmatmul.mubr.bf16.gmra.mrb[0].mxu0 %v2290
      %v2579 = vpop.f32.mrb[0].mxu0
      %v2580 = vadd.f32 0.0, %v2579
      %v2581 = vpop.f32.mrb[0].mxu0
      %v2582 = vpop.f32.mrb[0].mxu0
      %v2583 = vadd.f32 0.0, %v2582
      %v2584 = vpop.f32.mrb[0].mxu0
      %2585 = vmatprep.mubr.bf16.mxu0 %v2307
      %2586 = vmatmul.mubr.bf16.gmra.mrb[0].mxu0 %v2291
      %v2587 = vpop.f32.mrb[0].mxu0
      %v2588 = vadd.f32 0.0, %v2587
      %v2589 = vpop.f32.mrb[0].mxu0
      %v2590 = vpop.f32.mrb[0].mxu0
      %v2591 = vadd.f32 0.0, %v2590
      %v2592 = vpop.f32.mrb[0].mxu0
      %2593 = vmatprep.mubr.bf16.mxu0 %v2308
      %2594 = vmatmul.mubr.bf16.gmra.mrb[0].mxu0 %v2292
      %v2595 = vpop.f32.mrb[0].mxu0
      %v2596 = vadd.f32 0.0, %v2595
      %v2597 = vpop.f32.mrb[0].mxu0
      %v2598 = vpop.f32.mrb[0].mxu0
      %v2599 = vadd.f32 0.0, %v2598
      %v2600 = vpop.f32.mrb[0].mxu0
      %2601 = vmatprep.mubr.bf16.mxu0 %v2309
      %2602 = vmatmul.mubr.bf16.gmra.mrb[0].mxu0 %v2293
      %v2603 = vpop.f32.mrb[0].mxu0
      %v2604 = vadd.f32 0.0, %v2603
      %v2605 = vpop.f32.mrb[0].mxu0
      %v2606 = vpop.f32.mrb[0].mxu0
      %v2607 = vadd.f32 0.0, %v2606
      %v2608 = vpop.f32.mrb[0].mxu0
      %2609 = vmatprep.mubr.bf16.mxu0 %v2310
      %2610 = vmatmul.mubr.bf16.gmra.mrb[0].mxu0 %v2294
      %v2611 = vpop.f32.mrb[0].mxu0
      %v2612 = vadd.f32 0.0, %v2611
      %v2613 = vpop.f32.mrb[0].mxu0
      %v2614 = vpop.f32.mrb[0].mxu0
      %v2615 = vadd.f32 0.0, %v2614
      %v2616 = vpop.f32.mrb[0].mxu0
      %2617 = vmatprep.mubr.bf16.mxu0 %v2311
      %2618 = vmatmul.mubr.bf16.gmra.mrb[0].mxu0 %v2295
      %v2619 = vpop.f32.mrb[0].mxu0
      %v2620 = vadd.f32 0.0, %v2619
      %v2621 = vpop.f32.mrb[0].mxu0
      %v2622 = vpop.f32.mrb[0].mxu0
      %v2623 = vadd.f32 0.0, %v2622
      %v2624 = vpop.f32.mrb[0].mxu0
      %2625 = vmatprep.mubr.bf16.mxu0 %v2312
      %2626 = vmatmul.mubr.bf16.gmra.mrb[0].mxu0 %v2296
      %v2627 = vpop.f32.mrb[0].mxu0
      %v2628 = vadd.f32 0.0, %v2627
      %v2629 = vpop.f32.mrb[0].mxu0
      %v2630 = vpop.f32.mrb[0].mxu0
      %v2631 = vadd.f32 0.0, %v2630
      %v2632 = vpop.f32.mrb[0].mxu0
      %2633 = vdwg.mxu0
      %2634 = vmatprep.subr.bf16.mxu0 0
      %2635 = vmatpush1.bf16.msra.mxu0 %v2489
      %2636 = vmatprep.subr.bf16.mxu0 0
      %2637 = vmatpush1.bf16.msra.mxu0 %v2490
      %2638 = vmatprep.subr.bf16.mxu0 0
      %2639 = vmatpush1.bf16.msra.mxu0 %v2491
      %2640 = vmatprep.subr.bf16.mxu0 0
      %2641 = vmatpush1.bf16.msra.mxu0 %v2492
      %2642 = vmatprep.subr.bf16.mxu0 0
      %2643 = vmatpush1.bf16.msra.mxu0 %v2493
      %2644 = vmatprep.subr.bf16.mxu0 0
      %2645 = vmatpush1.bf16.msra.mxu0 %v2494
      %2646 = vmatprep.subr.bf16.mxu0 0
      %2647 = vmatpush1.bf16.msra.mxu0 %v2495
      %2648 = vmatprep.subr.bf16.mxu0 0
      %2649 = vmatpush1.bf16.msra.mxu0 %v2496
      %2650 = vmatprep.subr.bf16.mxu0 0
      %2651 = vmatpush1.bf16.msra.mxu0 %v2497
      %2652 = vmatprep.subr.bf16.mxu0 0
      %2653 = vmatpush1.bf16.msra.mxu0 %v2498
      %2654 = vmatprep.subr.bf16.mxu0 0
      %2655 = vmatpush1.bf16.msra.mxu0 %v2499
      %2656 = vmatprep.subr.bf16.mxu0 0
      %2657 = vmatpush1.bf16.msra.mxu0 %v2500
      %2658 = vmatprep.subr.bf16.mxu0 0
      %2659 = vmatpush1.bf16.msra.mxu0 %v2501
      %2660 = vmatprep.subr.bf16.mxu0 0
      %2661 = vmatpush1.bf16.msra.mxu0 %v2502
      %2662 = vmatprep.subr.bf16.mxu0 0
      %2663 = vmatpush1.bf16.msra.mxu0 %v2503
      %2664 = vmatprep.subr.bf16.mxu0 0
      %2665 = vmatpush1.bf16.msra.mxu0 %v2504
      %2666 = vmatprep.mubr.bf16.mxu0 %v2337
      %2667 = vmatmul.mubr.bf16.gmra.mrb[0].mxu0 %v2321
      %v2668 = vpop.f32.mrb[0].mxu0
      %v2669 = vadd.f32 %v2572, %v2668
      %v2670 = vpop.f32.mrb[0].mxu0
      %v2671 = vpop.f32.mrb[0].mxu0
      %v2672 = vadd.f32 %v2575, %v2671
      %v2673 = vpop.f32.mrb[0].mxu0
      %2674 = vmatprep.mubr.bf16.mxu0 %v2338
      %2675 = vmatmul.mubr.bf16.gmra.mrb[0].mxu0 %v2322
      %v2676 = vpop.f32.mrb[0].mxu0
      %v2677 = vadd.f32 %v2580, %v2676
      %v2678 = vpop.f32.mrb[0].mxu0
      %v2679 = vpop.f32.mrb[0].mxu0
      %v2680 = vadd.f32 %v2583, %v2679
      %v2681 = vpop.f32.mrb[0].mxu0
      %2682 = vmatprep.mubr.bf16.mxu0 %v2339
      %2683 = vmatmul.mubr.bf16.gmra.mrb[0].mxu0 %v2323
      %v2684 = vpop.f32.mrb[0].mxu0
      %v2685 = vadd.f32 %v2588, %v2684
      %v2686 = vpop.f32.mrb[0].mxu0
      %v2687 = vpop.f32.mrb[0].mxu0
      %v2688 = vadd.f32 %v2591, %v2687
      %v2689 = vpop.f32.mrb[0].mxu0
      %2690 = vmatprep.mubr.bf16.mxu0 %v2340
      %2691 = vmatmul.mubr.bf16.gmra.mrb[0].mxu0 %v2324
      %v2692 = vpop.f32.mrb[0].mxu0
      %v2693 = vadd.f32 %v2596, %v2692
      %v2694 = vpop.f32.mrb[0].mxu0
      %v2695 = vpop.f32.mrb[0].mxu0
      %v2696 = vadd.f32 %v2599, %v2695
      %v2697 = vpop.f32.mrb[0].mxu0
      %2698 = vmatprep.mubr.bf16.mxu0 %v2341
      %2699 = vmatmul.mubr.bf16.gmra.mrb[0].mxu0 %v2325
      %v2700 = vpop.f32.mrb[0].mxu0
      %v2701 = vadd.f32 %v2604, %v2700
      %v2702 = vpop.f32.mrb[0].mxu0
      %v2703 = vpop.f32.mrb[0].mxu0
      %v2704 = vadd.f32 %v2607, %v2703
      %v2705 = vpop.f32.mrb[0].mxu0
      %2706 = vmatprep.mubr.bf16.mxu0 %v2342
      %2707 = vmatmul.mubr.bf16.gmra.mrb[0].mxu0 %v2326
      %v2708 = vpop.f32.mrb[0].mxu0
      %v2709 = vadd.f32 %v2612, %v2708
      %v2710 = vpop.f32.mrb[0].mxu0
      %v2711 = vpop.f32.mrb[0].mxu0
      %v2712 = vadd.f32 %v2615, %v2711
      %v2713 = vpop.f32.mrb[0].mxu0
      %2714 = vmatprep.mubr.bf16.mxu0 %v2343
      %2715 = vmatmul.mubr.bf16.gmra.mrb[0].mxu0 %v2327
      %v2716 = vpop.f32.mrb[0].mxu0
      %v2717 = vadd.f32 %v2620, %v2716
      %v2718 = vpop.f32.mrb[0].mxu0
      %v2719 = vpop.f32.mrb[0].mxu0
      %v2720 = vadd.f32 %v2623, %v2719
      %v2721 = vpop.f32.mrb[0].mxu0
      %2722 = vmatprep.mubr.bf16.mxu0 %v2344
      %2723 = vmatmul.mubr.bf16.gmra.mrb[0].mxu0 %v2328
      %v2724 = vpop.f32.mrb[0].mxu0
      %v2725 = vadd.f32 %v2628, %v2724
      %v2726 = vpop.f32.mrb[0].mxu0
      %v2727 = vpop.f32.mrb[0].mxu0
      %v2728 = vadd.f32 %v2631, %v2727
      %v2729 = vpop.f32.mrb[0].mxu0
      %2730 = vdwg.mxu0
      %v2731 = vadd.f32 %v2009, %v2669
      %v2732 = vadd.f32 %v2010, %v2672
      %v2733 = vadd.f32 %v2011, %v2677
      %v2734 = vadd.f32 %v2012, %v2680
      %v2735 = vadd.f32 %v2013, %v2685
      %v2736 = vadd.f32 %v2014, %v2688
      %v2737 = vadd.f32 %v2015, %v2693
      %v2738 = vadd.f32 %v2016, %v2696
      %v2739 = vadd.f32 %v2017, %v2701
      %v2740 = vadd.f32 %v2018, %v2704
      %v2741 = vadd.f32 %v2019, %v2709
      %v2742 = vadd.f32 %v2020, %v2712
      %v2743 = vadd.f32 %v2021, %v2717
      %v2744 = vadd.f32 %v2022, %v2720
      %v2745 = vadd.f32 %v2023, %v2725
      %v2746 = vadd.f32 %v2024, %v2728
      %2747 = vst [vmem:[#allocation3] sm:$0xff] %v2731
      %2748 = vst [vmem:[#allocation3 + $0x8] sm:$0xff] %v2732
      %2749 = vst [vmem:[#allocation3 + $0x10] sm:$0xff] %v2733
      %2750 = vst [vmem:[#allocation3 + $0x18] sm:$0xff] %v2734
      %2751 = vst [vmem:[#allocation3 + $0x20] sm:$0xff] %v2735
      %2752 = vst [vmem:[#allocation3 + $0x28] sm:$0xff] %v2736
      %2753 = vst [vmem:[#allocation3 + $0x30] sm:$0xff] %v2737
      %2754 = vst [vmem:[#allocation3 + $0x38] sm:$0xff] %v2738
      %2755 = vst [vmem:[#allocation3 + $0x40] sm:$0xff] %v2739
      %2756 = vst [vmem:[#allocation3 + $0x48] sm:$0xff] %v2740
      %2757 = vst [vmem:[#allocation3 + $0x50] sm:$0xff] %v2741
      %2758 = vst [vmem:[#allocation3 + $0x58] sm:$0xff] %v2742
      %2759 = vst [vmem:[#allocation3 + $0x60] sm:$0xff] %v2743
      %2760 = vst [vmem:[#allocation3 + $0x68] sm:$0xff] %v2744
      %2761 = vst [vmem:[#allocation3 + $0x70] sm:$0xff] %v2745
      %2762 = vst [vmem:[#allocation3 + $0x78] sm:$0xff] %v2746
      %v2763 = vld [vmem:[%s277] sm:$0xff]
      %v2764 = vld [vmem:[%s277 + $0x8] sm:$0xff]
      %v2765 = vld [vmem:[%s277 + $0x10] sm:$0xff]
      %v2766 = vld [vmem:[%s277 + $0x18] sm:$0xff]
      %v2767 = vld [vmem:[%s277 + $0x20] sm:$0xff]
      %v2768 = vld [vmem:[%s277 + $0x28] sm:$0xff]
      %v2769 = vld [vmem:[%s277 + $0x30] sm:$0xff]
      %v2770 = vld [vmem:[%s277 + $0x38] sm:$0xff]
      %v2771 = vld [vmem:[%s277 + $0x40] sm:$0xff]
      %v2772 = vld [vmem:[%s277 + $0x48] sm:$0xff]
      %v2773 = vld [vmem:[%s277 + $0x50] sm:$0xff]
      %v2774 = vld [vmem:[%s277 + $0x58] sm:$0xff]
      %v2775 = vld [vmem:[%s277 + $0x60] sm:$0xff]
      %v2776 = vld [vmem:[%s277 + $0x68] sm:$0xff]
      %v2777 = vld [vmem:[%s277 + $0x70] sm:$0xff]
      %v2778 = vld [vmem:[%s277 + $0x78] sm:$0xff]
      %v2779 = vld [vmem:[%s277 + $0x80] sm:$0xff]
      %v2780 = vld [vmem:[%s277 + $0x88] sm:$0xff]
      %v2781 = vld [vmem:[%s277 + $0x90] sm:$0xff]
      %v2782 = vld [vmem:[%s277 + $0x98] sm:$0xff]
      %v2783 = vld [vmem:[%s277 + $0xa0] sm:$0xff]
      %v2784 = vld [vmem:[%s277 + $0xa8] sm:$0xff]
      %v2785 = vld [vmem:[%s277 + $0xb0] sm:$0xff]
      %v2786 = vld [vmem:[%s277 + $0xb8] sm:$0xff]
      %v2787 = vld [vmem:[%s277 + $0xc0] sm:$0xff]
      %v2788 = vld [vmem:[%s277 + $0xc8] sm:$0xff]
      %v2789 = vld [vmem:[%s277 + $0xd0] sm:$0xff]
      %v2790 = vld [vmem:[%s277 + $0xd8] sm:$0xff]
      %v2791 = vld [vmem:[%s277 + $0xe0] sm:$0xff]
      %v2792 = vld [vmem:[%s277 + $0xe8] sm:$0xff]
      %v2793 = vld [vmem:[%s277 + $0xf0] sm:$0xff]
      %v2794 = vld [vmem:[%s277 + $0xf8] sm:$0xff]
      %v2795 = vld [vmem:[%s277 + $0x100] sm:$0xff]
      %v2796 = vld [vmem:[%s277 + $0x108] sm:$0xff]
      %v2797 = vld [vmem:[%s277 + $0x110] sm:$0xff]
      %v2798 = vld [vmem:[%s277 + $0x118] sm:$0xff]
      %v2799 = vld [vmem:[%s277 + $0x120] sm:$0xff]
      %v2800 = vld [vmem:[%s277 + $0x128] sm:$0xff]
      %v2801 = vld [vmem:[%s277 + $0x130] sm:$0xff]
      %v2802 = vld [vmem:[%s277 + $0x138] sm:$0xff]
      %v2803 = vld [vmem:[%s277 + $0x140] sm:$0xff]
      %v2804 = vld [vmem:[%s277 + $0x148] sm:$0xff]
      %v2805 = vld [vmem:[%s277 + $0x150] sm:$0xff]
      %v2806 = vld [vmem:[%s277 + $0x158] sm:$0xff]
      %v2807 = vld [vmem:[%s277 + $0x160] sm:$0xff]
      %v2808 = vld [vmem:[%s277 + $0x168] sm:$0xff]
      %v2809 = vld [vmem:[%s277 + $0x170] sm:$0xff]
      %v2810 = vld [vmem:[%s277 + $0x178] sm:$0xff]
      %v2811 = vld [vmem:[%s277 + $0x180] sm:$0xff]
      %v2812 = vld [vmem:[%s277 + $0x188] sm:$0xff]
      %v2813 = vld [vmem:[%s277 + $0x190] sm:$0xff]
      %v2814 = vld [vmem:[%s277 + $0x198] sm:$0xff]
      %v2815 = vld [vmem:[%s277 + $0x1a0] sm:$0xff]
      %v2816 = vld [vmem:[%s277 + $0x1a8] sm:$0xff]
      %v2817 = vld [vmem:[%s277 + $0x1b0] sm:$0xff]
      %v2818 = vld [vmem:[%s277 + $0x1b8] sm:$0xff]
      %v2819 = vld [vmem:[%s277 + $0x1c0] sm:$0xff]
      %v2820 = vld [vmem:[%s277 + $0x1c8] sm:$0xff]
      %v2821 = vld [vmem:[%s277 + $0x1d0] sm:$0xff]
      %v2822 = vld [vmem:[%s277 + $0x1d8] sm:$0xff]
      %v2823 = vld [vmem:[%s277 + $0x1e0] sm:$0xff]
      %v2824 = vld [vmem:[%s277 + $0x1e8] sm:$0xff]
      %v2825 = vld [vmem:[%s277 + $0x1f0] sm:$0xff]
      %v2826 = vld [vmem:[%s277 + $0x1f8] sm:$0xff]
      %v2827 = vpack.c.bf16 %v2764, %v2763
      %v2828 = vpack.c.bf16 %v2766, %v2765
      %v2829 = vpack.c.bf16 %v2768, %v2767
      %v2830 = vpack.c.bf16 %v2770, %v2769
      %v2831 = vpack.c.bf16 %v2772, %v2771
      %v2832 = vpack.c.bf16 %v2774, %v2773
      %v2833 = vpack.c.bf16 %v2776, %v2775
      %v2834 = vpack.c.bf16 %v2778, %v2777
      %v2835 = vpack.c.bf16 %v2780, %v2779
      %v2836 = vpack.c.bf16 %v2782, %v2781
      %v2837 = vpack.c.bf16 %v2784, %v2783
      %v2838 = vpack.c.bf16 %v2786, %v2785
      %v2839 = vpack.c.bf16 %v2788, %v2787
      %v2840 = vpack.c.bf16 %v2790, %v2789
      %v2841 = vpack.c.bf16 %v2792, %v2791
      %v2842 = vpack.c.bf16 %v2794, %v2793
      %v2843 = vpack.c.bf16 %v2796, %v2795
      %v2844 = vpack.c.bf16 %v2798, %v2797
      %v2845 = vpack.c.bf16 %v2800, %v2799
      %v2846 = vpack.c.bf16 %v2802, %v2801
      %v2847 = vpack.c.bf16 %v2804, %v2803
      %v2848 = vpack.c.bf16 %v2806, %v2805
      %v2849 = vpack.c.bf16 %v2808, %v2807
      %v2850 = vpack.c.bf16 %v2810, %v2809
      %v2851 = vpack.c.bf16 %v2812, %v2811
      %v2852 = vpack.c.bf16 %v2814, %v2813
      %v2853 = vpack.c.bf16 %v2816, %v2815
      %v2854 = vpack.c.bf16 %v2818, %v2817
      %v2855 = vpack.c.bf16 %v2820, %v2819
      %v2856 = vpack.c.bf16 %v2822, %v2821
      %v2857 = vpack.c.bf16 %v2824, %v2823
      %v2858 = vpack.c.bf16 %v2826, %v2825
      %s2859 = scalar_lea.vmem [#allocation2], 128
      %v2860 = vld [vmem:[%s2859] sm:$0xff]
      %v2861 = vld [vmem:[%s2859 + $0x8] sm:$0xff]
      %v2862 = vld [vmem:[%s2859 + $0x10] sm:$0xff]
      %v2863 = vld [vmem:[%s2859 + $0x18] sm:$0xff]
      %v2864 = vld [vmem:[%s2859 + $0x20] sm:$0xff]
      %v2865 = vld [vmem:[%s2859 + $0x28] sm:$0xff]
      %v2866 = vld [vmem:[%s2859 + $0x30] sm:$0xff]
      %v2867 = vld [vmem:[%s2859 + $0x38] sm:$0xff]
      %v2868 = vld [vmem:[%s2859 + $0x40] sm:$0xff]
      %v2869 = vld [vmem:[%s2859 + $0x48] sm:$0xff]
      %v2870 = vld [vmem:[%s2859 + $0x50] sm:$0xff]
      %v2871 = vld [vmem:[%s2859 + $0x58] sm:$0xff]
      %v2872 = vld [vmem:[%s2859 + $0x60] sm:$0xff]
      %v2873 = vld [vmem:[%s2859 + $0x68] sm:$0xff]
      %v2874 = vld [vmem:[%s2859 + $0x70] sm:$0xff]
      %v2875 = vld [vmem:[%s2859 + $0x78] sm:$0xff]
      %2877 = vset.pattern.permute.xlu0 1
      %2878 = vperm.xlu0 %2877, %v2827
      %v2879 = vpop.permute.xlu0 %2878
      %2881 = vset.pattern.permute.xlu0 1
      %2882 = vperm.xlu0 %2881, %v2828
      %v2883 = vpop.permute.xlu0 %2882
      %2885 = vset.pattern.permute.xlu0 1
      %2886 = vperm.xlu0 %2885, %v2829
      %v2887 = vpop.permute.xlu0 %2886
      %2889 = vset.pattern.permute.xlu0 1
      %2890 = vperm.xlu0 %2889, %v2830
      %v2891 = vpop.permute.xlu0 %2890
      %2893 = vset.pattern.permute.xlu0 1
      %2894 = vperm.xlu0 %2893, %v2831
      %v2895 = vpop.permute.xlu0 %2894
      %2897 = vset.pattern.permute.xlu0 1
      %2898 = vperm.xlu0 %2897, %v2832
      %v2899 = vpop.permute.xlu0 %2898
      %2901 = vset.pattern.permute.xlu0 1
      %2902 = vperm.xlu0 %2901, %v2833
      %v2903 = vpop.permute.xlu0 %2902
      %2905 = vset.pattern.permute.xlu0 1
      %2906 = vperm.xlu0 %2905, %v2834
      %v2907 = vpop.permute.xlu0 %2906
      %2909 = vset.pattern.permute.xlu0 1
      %2910 = vperm.xlu0 %2909, %v2835
      %v2911 = vpop.permute.xlu0 %2910
      %2913 = vset.pattern.permute.xlu0 1
      %2914 = vperm.xlu0 %2913, %v2836
      %v2915 = vpop.permute.xlu0 %2914
      %2917 = vset.pattern.permute.xlu0 1
      %2918 = vperm.xlu0 %2917, %v2837
      %v2919 = vpop.permute.xlu0 %2918
      %2921 = vset.pattern.permute.xlu0 1
      %2922 = vperm.xlu0 %2921, %v2838
      %v2923 = vpop.permute.xlu0 %2922
      %2925 = vset.pattern.permute.xlu0 1
      %2926 = vperm.xlu0 %2925, %v2839
      %v2927 = vpop.permute.xlu0 %2926
      %2929 = vset.pattern.permute.xlu0 1
      %2930 = vperm.xlu0 %2929, %v2840
      %v2931 = vpop.permute.xlu0 %2930
      %2933 = vset.pattern.permute.xlu0 1
      %2934 = vperm.xlu0 %2933, %v2841
      %v2935 = vpop.permute.xlu0 %2934
      %2937 = vset.pattern.permute.xlu0 1
      %2938 = vperm.xlu0 %2937, %v2842
      %v2939 = vpop.permute.xlu0 %2938
      %2941 = vset.pattern.permute.xlu0 1
      %2942 = vperm.xlu0 %2941, %v2843
      %v2943 = vpop.permute.xlu0 %2942
      %2945 = vset.pattern.permute.xlu0 1
      %2946 = vperm.xlu0 %2945, %v2844
      %v2947 = vpop.permute.xlu0 %2946
      %2949 = vset.pattern.permute.xlu0 1
      %2950 = vperm.xlu0 %2949, %v2845
      %v2951 = vpop.permute.xlu0 %2950
      %2953 = vset.pattern.permute.xlu0 1
      %2954 = vperm.xlu0 %2953, %v2846
      %v2955 = vpop.permute.xlu0 %2954
      %2957 = vset.pattern.permute.xlu0 1
      %2958 = vperm.xlu0 %2957, %v2847
      %v2959 = vpop.permute.xlu0 %2958
      %2961 = vset.pattern.permute.xlu0 1
      %2962 = vperm.xlu0 %2961, %v2848
      %v2963 = vpop.permute.xlu0 %2962
      %2965 = vset.pattern.permute.xlu0 1
      %2966 = vperm.xlu0 %2965, %v2849
      %v2967 = vpop.permute.xlu0 %2966
      %2969 = vset.pattern.permute.xlu0 1
      %2970 = vperm.xlu0 %2969, %v2850
      %v2971 = vpop.permute.xlu0 %2970
      %2973 = vset.pattern.permute.xlu0 1
      %2974 = vperm.xlu0 %2973, %v2851
      %v2975 = vpop.permute.xlu0 %2974
      %2977 = vset.pattern.permute.xlu0 1
      %2978 = vperm.xlu0 %2977, %v2852
      %v2979 = vpop.permute.xlu0 %2978
      %2981 = vset.pattern.permute.xlu0 1
      %2982 = vperm.xlu0 %2981, %v2853
      %v2983 = vpop.permute.xlu0 %2982
      %2985 = vset.pattern.permute.xlu0 1
      %2986 = vperm.xlu0 %2985, %v2854
      %v2987 = vpop.permute.xlu0 %2986
      %2989 = vset.pattern.permute.xlu0 1
      %2990 = vperm.xlu0 %2989, %v2855
      %v2991 = vpop.permute.xlu0 %2990
      %2993 = vset.pattern.permute.xlu0 1
      %2994 = vperm.xlu0 %2993, %v2856
      %v2995 = vpop.permute.xlu0 %2994
      %2997 = vset.pattern.permute.xlu0 1
      %2998 = vperm.xlu0 %2997, %v2857
      %v2999 = vpop.permute.xlu0 %2998
      %3001 = vset.pattern.permute.xlu0 1
      %3002 = vperm.xlu0 %3001, %v2858
      %v3003 = vpop.permute.xlu0 %3002
      %v3037 = vunpack.c.l.s4 839922192
      %v3038 = vunpack.c.0.s8 %v3037
      %v3039 = vlaneseq
      %v3040 = vshrl.u32 %v3039, 7
      %v3041 = vsub.s32 %v3038, %v3040
      %v3042 = vrot.slane %v2879, %v3041
      %v3044 = vunpack.c.l.s4 1985246804
      %v3045 = vunpack.c.0.s8 %v3044
      %v3046 = vlaneseq
      %v3047 = vshrl.u32 %v3046, 7
      %v3048 = vsub.s32 %v3045, %v3047
      %v3049 = vrot.slane %v2879, %v3048
      %v3051 = vunpack.c.l.s4 839922192
      %v3052 = vunpack.c.0.s8 %v3051
      %v3053 = vlaneseq
      %v3054 = vshrl.u32 %v3053, 7
      %v3055 = vsub.s32 %v3052, %v3054
      %v3056 = vrot.slane %v2883, %v3055
      %v3058 = vunpack.c.l.s4 1985246804
      %v3059 = vunpack.c.0.s8 %v3058
      %v3060 = vlaneseq
      %v3061 = vshrl.u32 %v3060, 7
      %v3062 = vsub.s32 %v3059, %v3061
      %v3063 = vrot.slane %v2883, %v3062
      %v3065 = vunpack.c.l.s4 839922192
      %v3066 = vunpack.c.0.s8 %v3065
      %v3067 = vlaneseq
      %v3068 = vshrl.u32 %v3067, 7
      %v3069 = vsub.s32 %v3066, %v3068
      %v3070 = vrot.slane %v2887, %v3069
      %v3072 = vunpack.c.l.s4 1985246804
      %v3073 = vunpack.c.0.s8 %v3072
      %v3074 = vlaneseq
      %v3075 = vshrl.u32 %v3074, 7
      %v3076 = vsub.s32 %v3073, %v3075
      %v3077 = vrot.slane %v2887, %v3076
      %v3079 = vunpack.c.l.s4 839922192
      %v3080 = vunpack.c.0.s8 %v3079
      %v3081 = vlaneseq
      %v3082 = vshrl.u32 %v3081, 7
      %v3083 = vsub.s32 %v3080, %v3082
      %v3084 = vrot.slane %v2891, %v3083
      %v3086 = vunpack.c.l.s4 1985246804
      %v3087 = vunpack.c.0.s8 %v3086
      %v3088 = vlaneseq
      %v3089 = vshrl.u32 %v3088, 7
      %v3090 = vsub.s32 %v3087, %v3089
      %v3091 = vrot.slane %v2891, %v3090
      %v3093 = vunpack.c.l.s4 839922192
      %v3094 = vunpack.c.0.s8 %v3093
      %v3095 = vlaneseq
      %v3096 = vshrl.u32 %v3095, 7
      %v3097 = vsub.s32 %v3094, %v3096
      %v3098 = vrot.slane %v2895, %v3097
      %v3100 = vunpack.c.l.s4 1985246804
      %v3101 = vunpack.c.0.s8 %v3100
      %v3102 = vlaneseq
      %v3103 = vshrl.u32 %v3102, 7
      %v3104 = vsub.s32 %v3101, %v3103
      %v3105 = vrot.slane %v2895, %v3104
      %v3107 = vunpack.c.l.s4 839922192
      %v3108 = vunpack.c.0.s8 %v3107
      %v3109 = vlaneseq
      %v3110 = vshrl.u32 %v3109, 7
      %v3111 = vsub.s32 %v3108, %v3110
      %v3112 = vrot.slane %v2899, %v3111
      %v3114 = vunpack.c.l.s4 1985246804
      %v3115 = vunpack.c.0.s8 %v3114
      %v3116 = vlaneseq
      %v3117 = vshrl.u32 %v3116, 7
      %v3118 = vsub.s32 %v3115, %v3117
      %v3119 = vrot.slane %v2899, %v3118
      %v3121 = vunpack.c.l.s4 839922192
      %v3122 = vunpack.c.0.s8 %v3121
      %v3123 = vlaneseq
      %v3124 = vshrl.u32 %v3123, 7
      %v3125 = vsub.s32 %v3122, %v3124
      %v3126 = vrot.slane %v2903, %v3125
      %v3128 = vunpack.c.l.s4 1985246804
      %v3129 = vunpack.c.0.s8 %v3128
      %v3130 = vlaneseq
      %v3131 = vshrl.u32 %v3130, 7
      %v3132 = vsub.s32 %v3129, %v3131
      %v3133 = vrot.slane %v2903, %v3132
      %v3135 = vunpack.c.l.s4 839922192
      %v3136 = vunpack.c.0.s8 %v3135
      %v3137 = vlaneseq
      %v3138 = vshrl.u32 %v3137, 7
      %v3139 = vsub.s32 %v3136, %v3138
      %v3140 = vrot.slane %v2907, %v3139
      %v3142 = vunpack.c.l.s4 1985246804
      %v3143 = vunpack.c.0.s8 %v3142
      %v3144 = vlaneseq
      %v3145 = vshrl.u32 %v3144, 7
      %v3146 = vsub.s32 %v3143, %v3145
      %v3147 = vrot.slane %v2907, %v3146
      %v3149 = vunpack.c.l.s4 839922192
      %v3150 = vunpack.c.0.s8 %v3149
      %v3151 = vlaneseq
      %v3152 = vshrl.u32 %v3151, 7
      %v3153 = vsub.s32 %v3150, %v3152
      %v3154 = vrot.slane %v2911, %v3153
      %v3156 = vunpack.c.l.s4 1985246804
      %v3157 = vunpack.c.0.s8 %v3156
      %v3158 = vlaneseq
      %v3159 = vshrl.u32 %v3158, 7
      %v3160 = vsub.s32 %v3157, %v3159
      %v3161 = vrot.slane %v2911, %v3160
      %v3163 = vunpack.c.l.s4 839922192
      %v3164 = vunpack.c.0.s8 %v3163
      %v3165 = vlaneseq
      %v3166 = vshrl.u32 %v3165, 7
      %v3167 = vsub.s32 %v3164, %v3166
      %v3168 = vrot.slane %v2915, %v3167
      %v3170 = vunpack.c.l.s4 1985246804
      %v3171 = vunpack.c.0.s8 %v3170
      %v3172 = vlaneseq
      %v3173 = vshrl.u32 %v3172, 7
      %v3174 = vsub.s32 %v3171, %v3173
      %v3175 = vrot.slane %v2915, %v3174
      %v3177 = vunpack.c.l.s4 839922192
      %v3178 = vunpack.c.0.s8 %v3177
      %v3179 = vlaneseq
      %v3180 = vshrl.u32 %v3179, 7
      %v3181 = vsub.s32 %v3178, %v3180
      %v3182 = vrot.slane %v2919, %v3181
      %v3184 = vunpack.c.l.s4 1985246804
      %v3185 = vunpack.c.0.s8 %v3184
      %v3186 = vlaneseq
      %v3187 = vshrl.u32 %v3186, 7
      %v3188 = vsub.s32 %v3185, %v3187
      %v3189 = vrot.slane %v2919, %v3188
      %v3191 = vunpack.c.l.s4 839922192
      %v3192 = vunpack.c.0.s8 %v3191
      %v3193 = vlaneseq
      %v3194 = vshrl.u32 %v3193, 7
      %v3195 = vsub.s32 %v3192, %v3194
      %v3196 = vrot.slane %v2923, %v3195
      %v3198 = vunpack.c.l.s4 1985246804
      %v3199 = vunpack.c.0.s8 %v3198
      %v3200 = vlaneseq
      %v3201 = vshrl.u32 %v3200, 7
      %v3202 = vsub.s32 %v3199, %v3201
      %v3203 = vrot.slane %v2923, %v3202
      %v3205 = vunpack.c.l.s4 839922192
      %v3206 = vunpack.c.0.s8 %v3205
      %v3207 = vlaneseq
      %v3208 = vshrl.u32 %v3207, 7
      %v3209 = vsub.s32 %v3206, %v3208
      %v3210 = vrot.slane %v2927, %v3209
      %v3212 = vunpack.c.l.s4 1985246804
      %v3213 = vunpack.c.0.s8 %v3212
      %v3214 = vlaneseq
      %v3215 = vshrl.u32 %v3214, 7
      %v3216 = vsub.s32 %v3213, %v3215
      %v3217 = vrot.slane %v2927, %v3216
      %v3219 = vunpack.c.l.s4 839922192
      %v3220 = vunpack.c.0.s8 %v3219
      %v3221 = vlaneseq
      %v3222 = vshrl.u32 %v3221, 7
      %v3223 = vsub.s32 %v3220, %v3222
      %v3224 = vrot.slane %v2931, %v3223
      %v3226 = vunpack.c.l.s4 1985246804
      %v3227 = vunpack.c.0.s8 %v3226
      %v3228 = vlaneseq
      %v3229 = vshrl.u32 %v3228, 7
      %v3230 = vsub.s32 %v3227, %v3229
      %v3231 = vrot.slane %v2931, %v3230
      %v3233 = vunpack.c.l.s4 839922192
      %v3234 = vunpack.c.0.s8 %v3233
      %v3235 = vlaneseq
      %v3236 = vshrl.u32 %v3235, 7
      %v3237 = vsub.s32 %v3234, %v3236
      %v3238 = vrot.slane %v2935, %v3237
      %v3240 = vunpack.c.l.s4 1985246804
      %v3241 = vunpack.c.0.s8 %v3240
      %v3242 = vlaneseq
      %v3243 = vshrl.u32 %v3242, 7
      %v3244 = vsub.s32 %v3241, %v3243
      %v3245 = vrot.slane %v2935, %v3244
      %v3247 = vunpack.c.l.s4 839922192
      %v3248 = vunpack.c.0.s8 %v3247
      %v3249 = vlaneseq
      %v3250 = vshrl.u32 %v3249, 7
      %v3251 = vsub.s32 %v3248, %v3250
      %v3252 = vrot.slane %v2939, %v3251
      %v3254 = vunpack.c.l.s4 1985246804
      %v3255 = vunpack.c.0.s8 %v3254
      %v3256 = vlaneseq
      %v3257 = vshrl.u32 %v3256, 7
      %v3258 = vsub.s32 %v3255, %v3257
      %v3259 = vrot.slane %v2939, %v3258
      %v3261 = vunpack.c.l.s4 839922192
      %v3262 = vunpack.c.0.s8 %v3261
      %v3263 = vlaneseq
      %v3264 = vshrl.u32 %v3263, 7
      %v3265 = vsub.s32 %v3262, %v3264
      %v3266 = vrot.slane %v2943, %v3265
      %v3268 = vunpack.c.l.s4 1985246804
      %v3269 = vunpack.c.0.s8 %v3268
      %v3270 = vlaneseq
      %v3271 = vshrl.u32 %v3270, 7
      %v3272 = vsub.s32 %v3269, %v3271
      %v3273 = vrot.slane %v2943, %v3272
      %v3275 = vunpack.c.l.s4 839922192
      %v3276 = vunpack.c.0.s8 %v3275
      %v3277 = vlaneseq
      %v3278 = vshrl.u32 %v3277, 7
      %v3279 = vsub.s32 %v3276, %v3278
      %v3280 = vrot.slane %v2947, %v3279
      %v3282 = vunpack.c.l.s4 1985246804
      %v3283 = vunpack.c.0.s8 %v3282
      %v3284 = vlaneseq
      %v3285 = vshrl.u32 %v3284, 7
      %v3286 = vsub.s32 %v3283, %v3285
      %v3287 = vrot.slane %v2947, %v3286
      %v3289 = vunpack.c.l.s4 839922192
      %v3290 = vunpack.c.0.s8 %v3289
      %v3291 = vlaneseq
      %v3292 = vshrl.u32 %v3291, 7
      %v3293 = vsub.s32 %v3290, %v3292
      %v3294 = vrot.slane %v2951, %v3293
      %v3296 = vunpack.c.l.s4 1985246804
      %v3297 = vunpack.c.0.s8 %v3296
      %v3298 = vlaneseq
      %v3299 = vshrl.u32 %v3298, 7
      %v3300 = vsub.s32 %v3297, %v3299
      %v3301 = vrot.slane %v2951, %v3300
      %v3303 = vunpack.c.l.s4 839922192
      %v3304 = vunpack.c.0.s8 %v3303
      %v3305 = vlaneseq
      %v3306 = vshrl.u32 %v3305, 7
      %v3307 = vsub.s32 %v3304, %v3306
      %v3308 = vrot.slane %v2955, %v3307
      %v3310 = vunpack.c.l.s4 1985246804
      %v3311 = vunpack.c.0.s8 %v3310
      %v3312 = vlaneseq
      %v3313 = vshrl.u32 %v3312, 7
      %v3314 = vsub.s32 %v3311, %v3313
      %v3315 = vrot.slane %v2955, %v3314
      %v3317 = vunpack.c.l.s4 839922192
      %v3318 = vunpack.c.0.s8 %v3317
      %v3319 = vlaneseq
      %v3320 = vshrl.u32 %v3319, 7
      %v3321 = vsub.s32 %v3318, %v3320
      %v3322 = vrot.slane %v2959, %v3321
      %v3324 = vunpack.c.l.s4 1985246804
      %v3325 = vunpack.c.0.s8 %v3324
      %v3326 = vlaneseq
      %v3327 = vshrl.u32 %v3326, 7
      %v3328 = vsub.s32 %v3325, %v3327
      %v3329 = vrot.slane %v2959, %v3328
      %v3331 = vunpack.c.l.s4 839922192
      %v3332 = vunpack.c.0.s8 %v3331
      %v3333 = vlaneseq
      %v3334 = vshrl.u32 %v3333, 7
      %v3335 = vsub.s32 %v3332, %v3334
      %v3336 = vrot.slane %v2963, %v3335
      %v3338 = vunpack.c.l.s4 1985246804
      %v3339 = vunpack.c.0.s8 %v3338
      %v3340 = vlaneseq
      %v3341 = vshrl.u32 %v3340, 7
      %v3342 = vsub.s32 %v3339, %v3341
      %v3343 = vrot.slane %v2963, %v3342
      %v3345 = vunpack.c.l.s4 839922192
      %v3346 = vunpack.c.0.s8 %v3345
      %v3347 = vlaneseq
      %v3348 = vshrl.u32 %v3347, 7
      %v3349 = vsub.s32 %v3346, %v3348
      %v3350 = vrot.slane %v2967, %v3349
      %v3352 = vunpack.c.l.s4 1985246804
      %v3353 = vunpack.c.0.s8 %v3352
      %v3354 = vlaneseq
      %v3355 = vshrl.u32 %v3354, 7
      %v3356 = vsub.s32 %v3353, %v3355
      %v3357 = vrot.slane %v2967, %v3356
      %v3359 = vunpack.c.l.s4 839922192
      %v3360 = vunpack.c.0.s8 %v3359
      %v3361 = vlaneseq
      %v3362 = vshrl.u32 %v3361, 7
      %v3363 = vsub.s32 %v3360, %v3362
      %v3364 = vrot.slane %v2971, %v3363
      %v3366 = vunpack.c.l.s4 1985246804
      %v3367 = vunpack.c.0.s8 %v3366
      %v3368 = vlaneseq
      %v3369 = vshrl.u32 %v3368, 7
      %v3370 = vsub.s32 %v3367, %v3369
      %v3371 = vrot.slane %v2971, %v3370
      %v3373 = vunpack.c.l.s4 839922192
      %v3374 = vunpack.c.0.s8 %v3373
      %v3375 = vlaneseq
      %v3376 = vshrl.u32 %v3375, 7
      %v3377 = vsub.s32 %v3374, %v3376
      %v3378 = vrot.slane %v2975, %v3377
      %v3380 = vunpack.c.l.s4 1985246804
      %v3381 = vunpack.c.0.s8 %v3380
      %v3382 = vlaneseq
      %v3383 = vshrl.u32 %v3382, 7
      %v3384 = vsub.s32 %v3381, %v3383
      %v3385 = vrot.slane %v2975, %v3384
      %v3387 = vunpack.c.l.s4 839922192
      %v3388 = vunpack.c.0.s8 %v3387
      %v3389 = vlaneseq
      %v3390 = vshrl.u32 %v3389, 7
      %v3391 = vsub.s32 %v3388, %v3390
      %v3392 = vrot.slane %v2979, %v3391
      %v3394 = vunpack.c.l.s4 1985246804
      %v3395 = vunpack.c.0.s8 %v3394
      %v3396 = vlaneseq
      %v3397 = vshrl.u32 %v3396, 7
      %v3398 = vsub.s32 %v3395, %v3397
      %v3399 = vrot.slane %v2979, %v3398
      %v3401 = vunpack.c.l.s4 839922192
      %v3402 = vunpack.c.0.s8 %v3401
      %v3403 = vlaneseq
      %v3404 = vshrl.u32 %v3403, 7
      %v3405 = vsub.s32 %v3402, %v3404
      %v3406 = vrot.slane %v2983, %v3405
      %v3408 = vunpack.c.l.s4 1985246804
      %v3409 = vunpack.c.0.s8 %v3408
      %v3410 = vlaneseq
      %v3411 = vshrl.u32 %v3410, 7
      %v3412 = vsub.s32 %v3409, %v3411
      %v3413 = vrot.slane %v2983, %v3412
      %v3415 = vunpack.c.l.s4 839922192
      %v3416 = vunpack.c.0.s8 %v3415
      %v3417 = vlaneseq
      %v3418 = vshrl.u32 %v3417, 7
      %v3419 = vsub.s32 %v3416, %v3418
      %v3420 = vrot.slane %v2987, %v3419
      %v3422 = vunpack.c.l.s4 1985246804
      %v3423 = vunpack.c.0.s8 %v3422
      %v3424 = vlaneseq
      %v3425 = vshrl.u32 %v3424, 7
      %v3426 = vsub.s32 %v3423, %v3425
      %v3427 = vrot.slane %v2987, %v3426
      %v3429 = vunpack.c.l.s4 839922192
      %v3430 = vunpack.c.0.s8 %v3429
      %v3431 = vlaneseq
      %v3432 = vshrl.u32 %v3431, 7
      %v3433 = vsub.s32 %v3430, %v3432
      %v3434 = vrot.slane %v2991, %v3433
      %v3436 = vunpack.c.l.s4 1985246804
      %v3437 = vunpack.c.0.s8 %v3436
      %v3438 = vlaneseq
      %v3439 = vshrl.u32 %v3438, 7
      %v3440 = vsub.s32 %v3437, %v3439
      %v3441 = vrot.slane %v2991, %v3440
      %v3443 = vunpack.c.l.s4 839922192
      %v3444 = vunpack.c.0.s8 %v3443
      %v3445 = vlaneseq
      %v3446 = vshrl.u32 %v3445, 7
      %v3447 = vsub.s32 %v3444, %v3446
      %v3448 = vrot.slane %v2995, %v3447
      %v3450 = vunpack.c.l.s4 1985246804
      %v3451 = vunpack.c.0.s8 %v3450
      %v3452 = vlaneseq
      %v3453 = vshrl.u32 %v3452, 7
      %v3454 = vsub.s32 %v3451, %v3453
      %v3455 = vrot.slane %v2995, %v3454
      %v3457 = vunpack.c.l.s4 839922192
      %v3458 = vunpack.c.0.s8 %v3457
      %v3459 = vlaneseq
      %v3460 = vshrl.u32 %v3459, 7
      %v3461 = vsub.s32 %v3458, %v3460
      %v3462 = vrot.slane %v2999, %v3461
      %v3464 = vunpack.c.l.s4 1985246804
      %v3465 = vunpack.c.0.s8 %v3464
      %v3466 = vlaneseq
      %v3467 = vshrl.u32 %v3466, 7
      %v3468 = vsub.s32 %v3465, %v3467
      %v3469 = vrot.slane %v2999, %v3468
      %v3471 = vunpack.c.l.s4 839922192
      %v3472 = vunpack.c.0.s8 %v3471
      %v3473 = vlaneseq
      %v3474 = vshrl.u32 %v3473, 7
      %v3475 = vsub.s32 %v3472, %v3474
      %v3476 = vrot.slane %v3003, %v3475
      %v3478 = vunpack.c.l.s4 1985246804
      %v3479 = vunpack.c.0.s8 %v3478
      %v3480 = vlaneseq
      %v3481 = vshrl.u32 %v3480, 7
      %v3482 = vsub.s32 %v3479, %v3481
      %v3483 = vrot.slane %v3003, %v3482
      %v3548 = vmul.bf16 %v359, %v3042
      %v3549 = vmul.bf16 %v360, %v3049
      %v3550 = vmul.bf16 %v361, %v3056
      %v3551 = vmul.bf16 %v362, %v3063
      %v3552 = vmul.bf16 %v363, %v3070
      %v3553 = vmul.bf16 %v364, %v3077
      %v3554 = vmul.bf16 %v365, %v3084
      %v3555 = vmul.bf16 %v366, %v3091
      %v3556 = vmul.bf16 %v367, %v3098
      %v3557 = vmul.bf16 %v368, %v3105
      %v3558 = vmul.bf16 %v369, %v3112
      %v3559 = vmul.bf16 %v370, %v3119
      %v3560 = vmul.bf16 %v371, %v3126
      %v3561 = vmul.bf16 %v372, %v3133
      %v3562 = vmul.bf16 %v373, %v3140
      %v3563 = vmul.bf16 %v374, %v3147
      %v3564 = vmul.bf16 %v375, %v3154
      %v3565 = vmul.bf16 %v376, %v3161
      %v3566 = vmul.bf16 %v377, %v3168
      %v3567 = vmul.bf16 %v378, %v3175
      %v3568 = vmul.bf16 %v379, %v3182
      %v3569 = vmul.bf16 %v380, %v3189
      %v3570 = vmul.bf16 %v381, %v3196
      %v3571 = vmul.bf16 %v382, %v3203
      %v3572 = vmul.bf16 %v383, %v3210
      %v3573 = vmul.bf16 %v384, %v3217
      %v3574 = vmul.bf16 %v385, %v3224
      %v3575 = vmul.bf16 %v386, %v3231
      %v3576 = vmul.bf16 %v387, %v3238
      %v3577 = vmul.bf16 %v388, %v3245
      %v3578 = vmul.bf16 %v389, %v3252
      %v3579 = vmul.bf16 %v390, %v3259
      %v3580 = vmul.bf16 %v391, %v3266
      %v3581 = vmul.bf16 %v392, %v3273
      %v3582 = vmul.bf16 %v393, %v3280
      %v3583 = vmul.bf16 %v394, %v3287
      %v3584 = vmul.bf16 %v395, %v3294
      %v3585 = vmul.bf16 %v396, %v3301
      %v3586 = vmul.bf16 %v397, %v3308
      %v3587 = vmul.bf16 %v398, %v3315
      %v3588 = vmul.bf16 %v399, %v3322
      %v3589 = vmul.bf16 %v400, %v3329
      %v3590 = vmul.bf16 %v401, %v3336
      %v3591 = vmul.bf16 %v402, %v3343
      %v3592 = vmul.bf16 %v403, %v3350
      %v3593 = vmul.bf16 %v404, %v3357
      %v3594 = vmul.bf16 %v405, %v3364
      %v3595 = vmul.bf16 %v406, %v3371
      %v3596 = vmul.bf16 %v407, %v3378
      %v3597 = vmul.bf16 %v408, %v3385
      %v3598 = vmul.bf16 %v409, %v3392
      %v3599 = vmul.bf16 %v410, %v3399
      %v3600 = vmul.bf16 %v411, %v3406
      %v3601 = vmul.bf16 %v412, %v3413
      %v3602 = vmul.bf16 %v413, %v3420
      %v3603 = vmul.bf16 %v414, %v3427
      %v3604 = vmul.bf16 %v415, %v3434
      %v3605 = vmul.bf16 %v416, %v3441
      %v3606 = vmul.bf16 %v417, %v3448
      %v3607 = vmul.bf16 %v418, %v3455
      %v3608 = vmul.bf16 %v419, %v3462
      %v3609 = vmul.bf16 %v420, %v3469
      %v3610 = vmul.bf16 %v421, %v3476
      %v3611 = vmul.bf16 %v422, %v3483
      %v3676 = vunpack.c.l.b16 %v3548
      %v3677 = vunpack.c.l.b16 %v3549
      %v3678 = vunpack.c.l.b16 %v3550
      %v3679 = vunpack.c.l.b16 %v3551
      %v3680 = vunpack.c.l.b16 %v3552
      %v3681 = vunpack.c.l.b16 %v3553
      %v3682 = vunpack.c.l.b16 %v3554
      %v3683 = vunpack.c.l.b16 %v3555
      %v3684 = vunpack.c.l.b16 %v3556
      %v3685 = vunpack.c.l.b16 %v3557
      %v3686 = vunpack.c.l.b16 %v3558
      %v3687 = vunpack.c.l.b16 %v3559
      %v3688 = vunpack.c.l.b16 %v3560
      %v3689 = vunpack.c.l.b16 %v3561
      %v3690 = vunpack.c.l.b16 %v3562
      %v3691 = vunpack.c.l.b16 %v3563
      %v3692 = vunpack.c.l.b16 %v3564
      %v3693 = vunpack.c.l.b16 %v3565
      %v3694 = vunpack.c.l.b16 %v3566
      %v3695 = vunpack.c.l.b16 %v3567
      %v3696 = vunpack.c.l.b16 %v3568
      %v3697 = vunpack.c.l.b16 %v3569
      %v3698 = vunpack.c.l.b16 %v3570
      %v3699 = vunpack.c.l.b16 %v3571
      %v3700 = vunpack.c.l.b16 %v3572
      %v3701 = vunpack.c.l.b16 %v3573
      %v3702 = vunpack.c.l.b16 %v3574
      %v3703 = vunpack.c.l.b16 %v3575
      %v3704 = vunpack.c.l.b16 %v3576
      %v3705 = vunpack.c.l.b16 %v3577
      %v3706 = vunpack.c.l.b16 %v3578
      %v3707 = vunpack.c.l.b16 %v3579
      %v3708 = vunpack.c.l.b16 %v3580
      %v3709 = vunpack.c.l.b16 %v3581
      %v3710 = vunpack.c.l.b16 %v3582
      %v3711 = vunpack.c.l.b16 %v3583
      %v3712 = vunpack.c.l.b16 %v3584
      %v3713 = vunpack.c.l.b16 %v3585
      %v3714 = vunpack.c.l.b16 %v3586
      %v3715 = vunpack.c.l.b16 %v3587
      %v3716 = vunpack.c.l.b16 %v3588
      %v3717 = vunpack.c.l.b16 %v3589
      %v3718 = vunpack.c.l.b16 %v3590
      %v3719 = vunpack.c.l.b16 %v3591
      %v3720 = vunpack.c.l.b16 %v3592
      %v3721 = vunpack.c.l.b16 %v3593
      %v3722 = vunpack.c.l.b16 %v3594
      %v3723 = vunpack.c.l.b16 %v3595
      %v3724 = vunpack.c.l.b16 %v3596
      %v3725 = vunpack.c.l.b16 %v3597
      %v3726 = vunpack.c.l.b16 %v3598
      %v3727 = vunpack.c.l.b16 %v3599
      %v3728 = vunpack.c.l.b16 %v3600
      %v3729 = vunpack.c.l.b16 %v3601
      %v3730 = vunpack.c.l.b16 %v3602
      %v3731 = vunpack.c.l.b16 %v3603
      %v3732 = vunpack.c.l.b16 %v3604
      %v3733 = vunpack.c.l.b16 %v3605
      %v3734 = vunpack.c.l.b16 %v3606
      %v3735 = vunpack.c.l.b16 %v3607
      %v3736 = vunpack.c.l.b16 %v3608
      %v3737 = vunpack.c.l.b16 %v3609
      %v3738 = vunpack.c.l.b16 %v3610
      %v3739 = vunpack.c.l.b16 %v3611
      %v3740 = vpack.c.b16 %v3677, %v3676
      %v3741 = vpack.c.b16 %v3679, %v3678
      %v3742 = vpack.c.b16 %v3681, %v3680
      %v3743 = vpack.c.b16 %v3683, %v3682
      %v3744 = vpack.c.b16 %v3685, %v3684
      %v3745 = vpack.c.b16 %v3687, %v3686
      %v3746 = vpack.c.b16 %v3689, %v3688
      %v3747 = vpack.c.b16 %v3691, %v3690
      %v3748 = vpack.c.b16 %v3693, %v3692
      %v3749 = vpack.c.b16 %v3695, %v3694
      %v3750 = vpack.c.b16 %v3697, %v3696
      %v3751 = vpack.c.b16 %v3699, %v3698
      %v3752 = vpack.c.b16 %v3701, %v3700
      %v3753 = vpack.c.b16 %v3703, %v3702
      %v3754 = vpack.c.b16 %v3705, %v3704
      %v3755 = vpack.c.b16 %v3707, %v3706
      %v3756 = vpack.c.b16 %v3709, %v3708
      %v3757 = vpack.c.b16 %v3711, %v3710
      %v3758 = vpack.c.b16 %v3713, %v3712
      %v3759 = vpack.c.b16 %v3715, %v3714
      %v3760 = vpack.c.b16 %v3717, %v3716
      %v3761 = vpack.c.b16 %v3719, %v3718
      %v3762 = vpack.c.b16 %v3721, %v3720
      %v3763 = vpack.c.b16 %v3723, %v3722
      %v3764 = vpack.c.b16 %v3725, %v3724
      %v3765 = vpack.c.b16 %v3727, %v3726
      %v3766 = vpack.c.b16 %v3729, %v3728
      %v3767 = vpack.c.b16 %v3731, %v3730
      %v3768 = vpack.c.b16 %v3733, %v3732
      %v3769 = vpack.c.b16 %v3735, %v3734
      %v3770 = vpack.c.b16 %v3737, %v3736
      %v3771 = vpack.c.b16 %v3739, %v3738
      %3804 = vxpose.xlu0.c.b16.start [1/8] %v3740, 128
      %3805 = vxpose.xlu0.c.b16.cont [2/8] %v3741, 128
      %3806 = vxpose.xlu0.c.b16.cont [3/8] %v3742, 128
      %3807 = vxpose.xlu0.c.b16.cont [4/8] %v3743, 128
      %3808 = vxpose.xlu0.c.b16.cont [5/8] %v3744, 128
      %3809 = vxpose.xlu0.c.b16.cont [6/8] %v3745, 128
      %3810 = vxpose.xlu0.c.b16.cont [7/8] %v3746, 128
      %3811 = vxpose.xlu0.c.b16.end [8/8] %v3747, 128
      %v3812 = vpop.trf.xlu0
      %v3813 = vpop.trf.xlu0
      %v3814 = vpop.trf.xlu0
      %v3815 = vpop.trf.xlu0
      %v3816 = vpop.trf.xlu0
      %v3817 = vpop.trf.xlu0
      %v3818 = vpop.trf.xlu0
      %v3819 = vpop.trf.xlu0
      %3820 = vxpose.xlu0.c.b16.start [1/8] %v3748, 128
      %3821 = vxpose.xlu0.c.b16.cont [2/8] %v3749, 128
      %3822 = vxpose.xlu0.c.b16.cont [3/8] %v3750, 128
      %3823 = vxpose.xlu0.c.b16.cont [4/8] %v3751, 128
      %3824 = vxpose.xlu0.c.b16.cont [5/8] %v3752, 128
      %3825 = vxpose.xlu0.c.b16.cont [6/8] %v3753, 128
      %3826 = vxpose.xlu0.c.b16.cont [7/8] %v3754, 128
      %3827 = vxpose.xlu0.c.b16.end [8/8] %v3755, 128
      %v3828 = vpop.trf.xlu0
      %v3829 = vpop.trf.xlu0
      %v3830 = vpop.trf.xlu0
      %v3831 = vpop.trf.xlu0
      %v3832 = vpop.trf.xlu0
      %v3833 = vpop.trf.xlu0
      %v3834 = vpop.trf.xlu0
      %v3835 = vpop.trf.xlu0
      %3836 = vxpose.xlu0.c.b16.start [1/8] %v3756, 128
      %3837 = vxpose.xlu0.c.b16.cont [2/8] %v3757, 128
      %3838 = vxpose.xlu0.c.b16.cont [3/8] %v3758, 128
      %3839 = vxpose.xlu0.c.b16.cont [4/8] %v3759, 128
      %3840 = vxpose.xlu0.c.b16.cont [5/8] %v3760, 128
      %3841 = vxpose.xlu0.c.b16.cont [6/8] %v3761, 128
      %3842 = vxpose.xlu0.c.b16.cont [7/8] %v3762, 128
      %3843 = vxpose.xlu0.c.b16.end [8/8] %v3763, 128
      %v3844 = vpop.trf.xlu0
      %v3845 = vpop.trf.xlu0
      %v3846 = vpop.trf.xlu0
      %v3847 = vpop.trf.xlu0
      %v3848 = vpop.trf.xlu0
      %v3849 = vpop.trf.xlu0
      %v3850 = vpop.trf.xlu0
      %v3851 = vpop.trf.xlu0
      %3852 = vxpose.xlu0.c.b16.start [1/8] %v3764, 128
      %3853 = vxpose.xlu0.c.b16.cont [2/8] %v3765, 128
      %3854 = vxpose.xlu0.c.b16.cont [3/8] %v3766, 128
      %3855 = vxpose.xlu0.c.b16.cont [4/8] %v3767, 128
      %3856 = vxpose.xlu0.c.b16.cont [5/8] %v3768, 128
      %3857 = vxpose.xlu0.c.b16.cont [6/8] %v3769, 128
      %3858 = vxpose.xlu0.c.b16.cont [7/8] %v3770, 128
      %3859 = vxpose.xlu0.c.b16.end [8/8] %v3771, 128
      %v3860 = vpop.trf.xlu0
      %v3861 = vpop.trf.xlu0
      %v3862 = vpop.trf.xlu0
      %v3863 = vpop.trf.xlu0
      %v3864 = vpop.trf.xlu0
      %v3865 = vpop.trf.xlu0
      %v3866 = vpop.trf.xlu0
      %v3867 = vpop.trf.xlu0
      %3868 = vmatprep.subr.bf16.mxu0 0
      %3869 = vmatpush1.bf16.msra.mxu0 %v1719
      %3870 = vmatprep.subr.bf16.mxu0 0
      %3871 = vmatpush1.bf16.msra.mxu0 %v1720
      %3872 = vmatprep.subr.bf16.mxu0 0
      %3873 = vmatpush1.bf16.msra.mxu0 %v1721
      %3874 = vmatprep.subr.bf16.mxu0 0
      %3875 = vmatpush1.bf16.msra.mxu0 %v1722
      %3876 = vmatprep.subr.bf16.mxu0 0
      %3877 = vmatpush1.bf16.msra.mxu0 %v1723
      %3878 = vmatprep.subr.bf16.mxu0 0
      %3879 = vmatpush1.bf16.msra.mxu0 %v1724
      %3880 = vmatprep.subr.bf16.mxu0 0
      %3881 = vmatpush1.bf16.msra.mxu0 %v1725
      %3882 = vmatprep.subr.bf16.mxu0 0
      %3883 = vmatpush1.bf16.msra.mxu0 %v1726
      %3884 = vmatprep.subr.bf16.mxu0 0
      %3885 = vmatpush1.bf16.msra.mxu0 %v1727
      %3886 = vmatprep.subr.bf16.mxu0 0
      %3887 = vmatpush1.bf16.msra.mxu0 %v1728
      %3888 = vmatprep.subr.bf16.mxu0 0
      %3889 = vmatpush1.bf16.msra.mxu0 %v1729
      %3890 = vmatprep.subr.bf16.mxu0 0
      %3891 = vmatpush1.bf16.msra.mxu0 %v1730
      %3892 = vmatprep.subr.bf16.mxu0 0
      %3893 = vmatpush1.bf16.msra.mxu0 %v1731
      %3894 = vmatprep.subr.bf16.mxu0 0
      %3895 = vmatpush1.bf16.msra.mxu0 %v1732
      %3896 = vmatprep.subr.bf16.mxu0 0
      %3897 = vmatpush1.bf16.msra.mxu0 %v1733
      %3898 = vmatprep.subr.bf16.mxu0 0
      %3899 = vmatpush1.bf16.msra.mxu0 %v1734
      %3900 = vmatprep.mubr.bf16.mxu0 %v3828
      %3901 = vmatmul.mubr.bf16.gmra.mrb[0].mxu0 %v3812
      %v3902 = vpop.f32.mrb[0].mxu0
      %v3903 = vadd.f32 0.0, %v3902
      %v3904 = vpop.f32.mrb[0].mxu0
      %v3905 = vpop.f32.mrb[0].mxu0
      %v3906 = vadd.f32 0.0, %v3905
      %v3907 = vpop.f32.mrb[0].mxu0
      %3908 = vmatprep.mubr.bf16.mxu0 %v3829
      %3909 = vmatmul.mubr.bf16.gmra.mrb[0].mxu0 %v3813
      %v3910 = vpop.f32.mrb[0].mxu0
      %v3911 = vadd.f32 0.0, %v3910
      %v3912 = vpop.f32.mrb[0].mxu0
      %v3913 = vpop.f32.mrb[0].mxu0
      %v3914 = vadd.f32 0.0, %v3913
      %v3915 = vpop.f32.mrb[0].mxu0
      %3916 = vmatprep.mubr.bf16.mxu0 %v3830
      %3917 = vmatmul.mubr.bf16.gmra.mrb[0].mxu0 %v3814
      %v3918 = vpop.f32.mrb[0].mxu0
      %v3919 = vadd.f32 0.0, %v3918
      %v3920 = vpop.f32.mrb[0].mxu0
      %v3921 = vpop.f32.mrb[0].mxu0
      %v3922 = vadd.f32 0.0, %v3921
      %v3923 = vpop.f32.mrb[0].mxu0
      %3924 = vmatprep.mubr.bf16.mxu0 %v3831
      %3925 = vmatmul.mubr.bf16.gmra.mrb[0].mxu0 %v3815
      %v3926 = vpop.f32.mrb[0].mxu0
      %v3927 = vadd.f32 0.0, %v3926
      %v3928 = vpop.f32.mrb[0].mxu0
      %v3929 = vpop.f32.mrb[0].mxu0
      %v3930 = vadd.f32 0.0, %v3929
      %v3931 = vpop.f32.mrb[0].mxu0
      %3932 = vmatprep.mubr.bf16.mxu0 %v3832
      %3933 = vmatmul.mubr.bf16.gmra.mrb[0].mxu0 %v3816
      %v3934 = vpop.f32.mrb[0].mxu0
      %v3935 = vadd.f32 0.0, %v3934
      %v3936 = vpop.f32.mrb[0].mxu0
      %v3937 = vpop.f32.mrb[0].mxu0
      %v3938 = vadd.f32 0.0, %v3937
      %v3939 = vpop.f32.mrb[0].mxu0
      %3940 = vmatprep.mubr.bf16.mxu0 %v3833
      %3941 = vmatmul.mubr.bf16.gmra.mrb[0].mxu0 %v3817
      %v3942 = vpop.f32.mrb[0].mxu0
      %v3943 = vadd.f32 0.0, %v3942
      %v3944 = vpop.f32.mrb[0].mxu0
      %v3945 = vpop.f32.mrb[0].mxu0
      %v3946 = vadd.f32 0.0, %v3945
      %v3947 = vpop.f32.mrb[0].mxu0
      %3948 = vmatprep.mubr.bf16.mxu0 %v3834
      %3949 = vmatmul.mubr.bf16.gmra.mrb[0].mxu0 %v3818
      %v3950 = vpop.f32.mrb[0].mxu0
      %v3951 = vadd.f32 0.0, %v3950
      %v3952 = vpop.f32.mrb[0].mxu0
      %v3953 = vpop.f32.mrb[0].mxu0
      %v3954 = vadd.f32 0.0, %v3953
      %v3955 = vpop.f32.mrb[0].mxu0
      %3956 = vmatprep.mubr.bf16.mxu0 %v3835
      %3957 = vmatmul.mubr.bf16.gmra.mrb[0].mxu0 %v3819
      %v3958 = vpop.f32.mrb[0].mxu0
      %v3959 = vadd.f32 0.0, %v3958
      %v3960 = vpop.f32.mrb[0].mxu0
      %v3961 = vpop.f32.mrb[0].mxu0
      %v3962 = vadd.f32 0.0, %v3961
      %v3963 = vpop.f32.mrb[0].mxu0
      %3964 = vdwg.mxu0
      %3965 = vmatprep.subr.bf16.mxu0 0
      %3966 = vmatpush1.bf16.msra.mxu0 %v1735
      %3967 = vmatprep.subr.bf16.mxu0 0
      %3968 = vmatpush1.bf16.msra.mxu0 %v1736
      %3969 = vmatprep.subr.bf16.mxu0 0
      %3970 = vmatpush1.bf16.msra.mxu0 %v1737
      %3971 = vmatprep.subr.bf16.mxu0 0
      %3972 = vmatpush1.bf16.msra.mxu0 %v1738
      %3973 = vmatprep.subr.bf16.mxu0 0
      %3974 = vmatpush1.bf16.msra.mxu0 %v1739
      %3975 = vmatprep.subr.bf16.mxu0 0
      %3976 = vmatpush1.bf16.msra.mxu0 %v1740
      %3977 = vmatprep.subr.bf16.mxu0 0
      %3978 = vmatpush1.bf16.msra.mxu0 %v1741
      %3979 = vmatprep.subr.bf16.mxu0 0
      %3980 = vmatpush1.bf16.msra.mxu0 %v1742
      %3981 = vmatprep.subr.bf16.mxu0 0
      %3982 = vmatpush1.bf16.msra.mxu0 %v1743
      %3983 = vmatprep.subr.bf16.mxu0 0
      %3984 = vmatpush1.bf16.msra.mxu0 %v1744
      %3985 = vmatprep.subr.bf16.mxu0 0
      %3986 = vmatpush1.bf16.msra.mxu0 %v1745
      %3987 = vmatprep.subr.bf16.mxu0 0
      %3988 = vmatpush1.bf16.msra.mxu0 %v1746
      %3989 = vmatprep.subr.bf16.mxu0 0
      %3990 = vmatpush1.bf16.msra.mxu0 %v1747
      %3991 = vmatprep.subr.bf16.mxu0 0
      %3992 = vmatpush1.bf16.msra.mxu0 %v1748
      %3993 = vmatprep.subr.bf16.mxu0 0
      %3994 = vmatpush1.bf16.msra.mxu0 %v1749
      %3995 = vmatprep.subr.bf16.mxu0 0
      %3996 = vmatpush1.bf16.msra.mxu0 %v1750
      %3997 = vmatprep.mubr.bf16.mxu0 %v3860
      %3998 = vmatmul.mubr.bf16.gmra.mrb[0].mxu0 %v3844
      %v3999 = vpop.f32.mrb[0].mxu0
      %v4000 = vadd.f32 %v3903, %v3999
      %v4001 = vpop.f32.mrb[0].mxu0
      %v4002 = vpop.f32.mrb[0].mxu0
      %v4003 = vadd.f32 %v3906, %v4002
      %v4004 = vpop.f32.mrb[0].mxu0
      %4005 = vmatprep.mubr.bf16.mxu0 %v3861
      %4006 = vmatmul.mubr.bf16.gmra.mrb[0].mxu0 %v3845
      %v4007 = vpop.f32.mrb[0].mxu0
      %v4008 = vadd.f32 %v3911, %v4007
      %v4009 = vpop.f32.mrb[0].mxu0
      %v4010 = vpop.f32.mrb[0].mxu0
      %v4011 = vadd.f32 %v3914, %v4010
      %v4012 = vpop.f32.mrb[0].mxu0
      %4013 = vmatprep.mubr.bf16.mxu0 %v3862
      %4014 = vmatmul.mubr.bf16.gmra.mrb[0].mxu0 %v3846
      %v4015 = vpop.f32.mrb[0].mxu0
      %v4016 = vadd.f32 %v3919, %v4015
      %v4017 = vpop.f32.mrb[0].mxu0
      %v4018 = vpop.f32.mrb[0].mxu0
      %v4019 = vadd.f32 %v3922, %v4018
      %v4020 = vpop.f32.mrb[0].mxu0
      %4021 = vmatprep.mubr.bf16.mxu0 %v3863
      %4022 = vmatmul.mubr.bf16.gmra.mrb[0].mxu0 %v3847
      %v4023 = vpop.f32.mrb[0].mxu0
      %v4024 = vadd.f32 %v3927, %v4023
      %v4025 = vpop.f32.mrb[0].mxu0
      %v4026 = vpop.f32.mrb[0].mxu0
      %v4027 = vadd.f32 %v3930, %v4026
      %v4028 = vpop.f32.mrb[0].mxu0
      %4029 = vmatprep.mubr.bf16.mxu0 %v3864
      %4030 = vmatmul.mubr.bf16.gmra.mrb[0].mxu0 %v3848
      %v4031 = vpop.f32.mrb[0].mxu0
      %v4032 = vadd.f32 %v3935, %v4031
      %v4033 = vpop.f32.mrb[0].mxu0
      %v4034 = vpop.f32.mrb[0].mxu0
      %v4035 = vadd.f32 %v3938, %v4034
      %v4036 = vpop.f32.mrb[0].mxu0
      %4037 = vmatprep.mubr.bf16.mxu0 %v3865
      %4038 = vmatmul.mubr.bf16.gmra.mrb[0].mxu0 %v3849
      %v4039 = vpop.f32.mrb[0].mxu0
      %v4040 = vadd.f32 %v3943, %v4039
      %v4041 = vpop.f32.mrb[0].mxu0
      %v4042 = vpop.f32.mrb[0].mxu0
      %v4043 = vadd.f32 %v3946, %v4042
      %v4044 = vpop.f32.mrb[0].mxu0
      %4045 = vmatprep.mubr.bf16.mxu0 %v3866
      %4046 = vmatmul.mubr.bf16.gmra.mrb[0].mxu0 %v3850
      %v4047 = vpop.f32.mrb[0].mxu0
      %v4048 = vadd.f32 %v3951, %v4047
      %v4049 = vpop.f32.mrb[0].mxu0
      %v4050 = vpop.f32.mrb[0].mxu0
      %v4051 = vadd.f32 %v3954, %v4050
      %v4052 = vpop.f32.mrb[0].mxu0
      %4053 = vmatprep.mubr.bf16.mxu0 %v3867
      %4054 = vmatmul.mubr.bf16.gmra.mrb[0].mxu0 %v3851
      %v4055 = vpop.f32.mrb[0].mxu0
      %v4056 = vadd.f32 %v3959, %v4055
      %v4057 = vpop.f32.mrb[0].mxu0
      %v4058 = vpop.f32.mrb[0].mxu0
      %v4059 = vadd.f32 %v3962, %v4058
      %v4060 = vpop.f32.mrb[0].mxu0
      %4061 = vdwg.mxu0
      %v4062 = vadd.f32 %v2860, %v4000
      %v4063 = vadd.f32 %v2861, %v4003
      %v4064 = vadd.f32 %v2862, %v4008
      %v4065 = vadd.f32 %v2863, %v4011
      %v4066 = vadd.f32 %v2864, %v4016
      %v4067 = vadd.f32 %v2865, %v4019
      %v4068 = vadd.f32 %v2866, %v4024
      %v4069 = vadd.f32 %v2867, %v4027
      %v4070 = vadd.f32 %v2868, %v4032
      %v4071 = vadd.f32 %v2869, %v4035
      %v4072 = vadd.f32 %v2870, %v4040
      %v4073 = vadd.f32 %v2871, %v4043
      %v4074 = vadd.f32 %v2872, %v4048
      %v4075 = vadd.f32 %v2873, %v4051
      %v4076 = vadd.f32 %v2874, %v4056
      %v4077 = vadd.f32 %v2875, %v4059
      %4078 = vst [vmem:[%s2859] sm:$0xff] %v4062
      %4079 = vst [vmem:[%s2859 + $0x8] sm:$0xff] %v4063
      %4080 = vst [vmem:[%s2859 + $0x10] sm:$0xff] %v4064
      %4081 = vst [vmem:[%s2859 + $0x18] sm:$0xff] %v4065
      %4082 = vst [vmem:[%s2859 + $0x20] sm:$0xff] %v4066
      %4083 = vst [vmem:[%s2859 + $0x28] sm:$0xff] %v4067
      %4084 = vst [vmem:[%s2859 + $0x30] sm:$0xff] %v4068
      %4085 = vst [vmem:[%s2859 + $0x38] sm:$0xff] %v4069
      %4086 = vst [vmem:[%s2859 + $0x40] sm:$0xff] %v4070
      %4087 = vst [vmem:[%s2859 + $0x48] sm:$0xff] %v4071
      %4088 = vst [vmem:[%s2859 + $0x50] sm:$0xff] %v4072
      %4089 = vst [vmem:[%s2859 + $0x58] sm:$0xff] %v4073
      %4090 = vst [vmem:[%s2859 + $0x60] sm:$0xff] %v4074
      %4091 = vst [vmem:[%s2859 + $0x68] sm:$0xff] %v4075
      %4092 = vst [vmem:[%s2859 + $0x70] sm:$0xff] %v4076
      %4093 = vst [vmem:[%s2859 + $0x78] sm:$0xff] %v4077
      %s4094 = scalar_lea.vmem [#allocation3], 128
      %v4095 = vld [vmem:[%s4094] sm:$0xff]
      %v4096 = vld [vmem:[%s4094 + $0x8] sm:$0xff]
      %v4097 = vld [vmem:[%s4094 + $0x10] sm:$0xff]
      %v4098 = vld [vmem:[%s4094 + $0x18] sm:$0xff]
      %v4099 = vld [vmem:[%s4094 + $0x20] sm:$0xff]
      %v4100 = vld [vmem:[%s4094 + $0x28] sm:$0xff]
      %v4101 = vld [vmem:[%s4094 + $0x30] sm:$0xff]
      %v4102 = vld [vmem:[%s4094 + $0x38] sm:$0xff]
      %v4103 = vld [vmem:[%s4094 + $0x40] sm:$0xff]
      %v4104 = vld [vmem:[%s4094 + $0x48] sm:$0xff]
      %v4105 = vld [vmem:[%s4094 + $0x50] sm:$0xff]
      %v4106 = vld [vmem:[%s4094 + $0x58] sm:$0xff]
      %v4107 = vld [vmem:[%s4094 + $0x60] sm:$0xff]
      %v4108 = vld [vmem:[%s4094 + $0x68] sm:$0xff]
      %v4109 = vld [vmem:[%s4094 + $0x70] sm:$0xff]
      %v4110 = vld [vmem:[%s4094 + $0x78] sm:$0xff]
      %v4111 = vmul.bf16 %v423, %v3042
      %v4112 = vmul.bf16 %v424, %v3049
      %v4113 = vmul.bf16 %v425, %v3056
      %v4114 = vmul.bf16 %v426, %v3063
      %v4115 = vmul.bf16 %v427, %v3070
      %v4116 = vmul.bf16 %v428, %v3077
      %v4117 = vmul.bf16 %v429, %v3084
      %v4118 = vmul.bf16 %v430, %v3091
      %v4119 = vmul.bf16 %v431, %v3098
      %v4120 = vmul.bf16 %v432, %v3105
      %v4121 = vmul.bf16 %v433, %v3112
      %v4122 = vmul.bf16 %v434, %v3119
      %v4123 = vmul.bf16 %v435, %v3126
      %v4124 = vmul.bf16 %v436, %v3133
      %v4125 = vmul.bf16 %v437, %v3140
      %v4126 = vmul.bf16 %v438, %v3147
      %v4127 = vmul.bf16 %v439, %v3154
      %v4128 = vmul.bf16 %v440, %v3161
      %v4129 = vmul.bf16 %v441, %v3168
      %v4130 = vmul.bf16 %v442, %v3175
      %v4131 = vmul.bf16 %v443, %v3182
      %v4132 = vmul.bf16 %v444, %v3189
      %v4133 = vmul.bf16 %v445, %v3196
      %v4134 = vmul.bf16 %v446, %v3203
      %v4135 = vmul.bf16 %v447, %v3210
      %v4136 = vmul.bf16 %v448, %v3217
      %v4137 = vmul.bf16 %v449, %v3224
      %v4138 = vmul.bf16 %v450, %v3231
      %v4139 = vmul.bf16 %v451, %v3238
      %v4140 = vmul.bf16 %v452, %v3245
      %v4141 = vmul.bf16 %v453, %v3252
      %v4142 = vmul.bf16 %v454, %v3259
      %v4143 = vmul.bf16 %v455, %v3266
      %v4144 = vmul.bf16 %v456, %v3273
      %v4145 = vmul.bf16 %v457, %v3280
      %v4146 = vmul.bf16 %v458, %v3287
      %v4147 = vmul.bf16 %v459, %v3294
      %v4148 = vmul.bf16 %v460, %v3301
      %v4149 = vmul.bf16 %v461, %v3308
      %v4150 = vmul.bf16 %v462, %v3315
      %v4151 = vmul.bf16 %v463, %v3322
      %v4152 = vmul.bf16 %v464, %v3329
      %v4153 = vmul.bf16 %v465, %v3336
      %v4154 = vmul.bf16 %v466, %v3343
      %v4155 = vmul.bf16 %v467, %v3350
      %v4156 = vmul.bf16 %v468, %v3357
      %v4157 = vmul.bf16 %v469, %v3364
      %v4158 = vmul.bf16 %v470, %v3371
      %v4159 = vmul.bf16 %v471, %v3378
      %v4160 = vmul.bf16 %v472, %v3385
      %v4161 = vmul.bf16 %v473, %v3392
      %v4162 = vmul.bf16 %v474, %v3399
      %v4163 = vmul.bf16 %v475, %v3406
      %v4164 = vmul.bf16 %v476, %v3413
      %v4165 = vmul.bf16 %v477, %v3420
      %v4166 = vmul.bf16 %v478, %v3427
      %v4167 = vmul.bf16 %v479, %v3434
      %v4168 = vmul.bf16 %v480, %v3441
      %v4169 = vmul.bf16 %v481, %v3448
      %v4170 = vmul.bf16 %v482, %v3455
      %v4171 = vmul.bf16 %v483, %v3462
      %v4172 = vmul.bf16 %v484, %v3469
      %v4173 = vmul.bf16 %v485, %v3476
      %v4174 = vmul.bf16 %v486, %v3483
      %v4239 = vunpack.c.l.b16 %v4111
      %v4240 = vunpack.c.l.b16 %v4112
      %v4241 = vunpack.c.l.b16 %v4113
      %v4242 = vunpack.c.l.b16 %v4114
      %v4243 = vunpack.c.l.b16 %v4115
      %v4244 = vunpack.c.l.b16 %v4116
      %v4245 = vunpack.c.l.b16 %v4117
      %v4246 = vunpack.c.l.b16 %v4118
      %v4247 = vunpack.c.l.b16 %v4119
      %v4248 = vunpack.c.l.b16 %v4120
      %v4249 = vunpack.c.l.b16 %v4121
      %v4250 = vunpack.c.l.b16 %v4122
      %v4251 = vunpack.c.l.b16 %v4123
      %v4252 = vunpack.c.l.b16 %v4124
      %v4253 = vunpack.c.l.b16 %v4125
      %v4254 = vunpack.c.l.b16 %v4126
      %v4255 = vunpack.c.l.b16 %v4127
      %v4256 = vunpack.c.l.b16 %v4128
      %v4257 = vunpack.c.l.b16 %v4129
      %v4258 = vunpack.c.l.b16 %v4130
      %v4259 = vunpack.c.l.b16 %v4131
      %v4260 = vunpack.c.l.b16 %v4132
      %v4261 = vunpack.c.l.b16 %v4133
      %v4262 = vunpack.c.l.b16 %v4134
      %v4263 = vunpack.c.l.b16 %v4135
      %v4264 = vunpack.c.l.b16 %v4136
      %v4265 = vunpack.c.l.b16 %v4137
      %v4266 = vunpack.c.l.b16 %v4138
      %v4267 = vunpack.c.l.b16 %v4139
      %v4268 = vunpack.c.l.b16 %v4140
      %v4269 = vunpack.c.l.b16 %v4141
      %v4270 = vunpack.c.l.b16 %v4142
      %v4271 = vunpack.c.l.b16 %v4143
      %v4272 = vunpack.c.l.b16 %v4144
      %v4273 = vunpack.c.l.b16 %v4145
      %v4274 = vunpack.c.l.b16 %v4146
      %v4275 = vunpack.c.l.b16 %v4147
      %v4276 = vunpack.c.l.b16 %v4148
      %v4277 = vunpack.c.l.b16 %v4149
      %v4278 = vunpack.c.l.b16 %v4150
      %v4279 = vunpack.c.l.b16 %v4151
      %v4280 = vunpack.c.l.b16 %v4152
      %v4281 = vunpack.c.l.b16 %v4153
      %v4282 = vunpack.c.l.b16 %v4154
      %v4283 = vunpack.c.l.b16 %v4155
      %v4284 = vunpack.c.l.b16 %v4156
      %v4285 = vunpack.c.l.b16 %v4157
      %v4286 = vunpack.c.l.b16 %v4158
      %v4287 = vunpack.c.l.b16 %v4159
      %v4288 = vunpack.c.l.b16 %v4160
      %v4289 = vunpack.c.l.b16 %v4161
      %v4290 = vunpack.c.l.b16 %v4162
      %v4291 = vunpack.c.l.b16 %v4163
      %v4292 = vunpack.c.l.b16 %v4164
      %v4293 = vunpack.c.l.b16 %v4165
      %v4294 = vunpack.c.l.b16 %v4166
      %v4295 = vunpack.c.l.b16 %v4167
      %v4296 = vunpack.c.l.b16 %v4168
      %v4297 = vunpack.c.l.b16 %v4169
      %v4298 = vunpack.c.l.b16 %v4170
      %v4299 = vunpack.c.l.b16 %v4171
      %v4300 = vunpack.c.l.b16 %v4172
      %v4301 = vunpack.c.l.b16 %v4173
      %v4302 = vunpack.c.l.b16 %v4174
      %v4303 = vpack.c.b16 %v4240, %v4239
      %v4304 = vpack.c.b16 %v4242, %v4241
      %v4305 = vpack.c.b16 %v4244, %v4243
      %v4306 = vpack.c.b16 %v4246, %v4245
      %v4307 = vpack.c.b16 %v4248, %v4247
      %v4308 = vpack.c.b16 %v4250, %v4249
      %v4309 = vpack.c.b16 %v4252, %v4251
      %v4310 = vpack.c.b16 %v4254, %v4253
      %v4311 = vpack.c.b16 %v4256, %v4255
      %v4312 = vpack.c.b16 %v4258, %v4257
      %v4313 = vpack.c.b16 %v4260, %v4259
      %v4314 = vpack.c.b16 %v4262, %v4261
      %v4315 = vpack.c.b16 %v4264, %v4263
      %v4316 = vpack.c.b16 %v4266, %v4265
      %v4317 = vpack.c.b16 %v4268, %v4267
      %v4318 = vpack.c.b16 %v4270, %v4269
      %v4319 = vpack.c.b16 %v4272, %v4271
      %v4320 = vpack.c.b16 %v4274, %v4273
      %v4321 = vpack.c.b16 %v4276, %v4275
      %v4322 = vpack.c.b16 %v4278, %v4277
      %v4323 = vpack.c.b16 %v4280, %v4279
      %v4324 = vpack.c.b16 %v4282, %v4281
      %v4325 = vpack.c.b16 %v4284, %v4283
      %v4326 = vpack.c.b16 %v4286, %v4285
      %v4327 = vpack.c.b16 %v4288, %v4287
      %v4328 = vpack.c.b16 %v4290, %v4289
      %v4329 = vpack.c.b16 %v4292, %v4291
      %v4330 = vpack.c.b16 %v4294, %v4293
      %v4331 = vpack.c.b16 %v4296, %v4295
      %v4332 = vpack.c.b16 %v4298, %v4297
      %v4333 = vpack.c.b16 %v4300, %v4299
      %v4334 = vpack.c.b16 %v4302, %v4301
      %4367 = vxpose.xlu0.c.b16.start [1/8] %v4303, 128
      %4368 = vxpose.xlu0.c.b16.cont [2/8] %v4304, 128
      %4369 = vxpose.xlu0.c.b16.cont [3/8] %v4305, 128
      %4370 = vxpose.xlu0.c.b16.cont [4/8] %v4306, 128
      %4371 = vxpose.xlu0.c.b16.cont [5/8] %v4307, 128
      %4372 = vxpose.xlu0.c.b16.cont [6/8] %v4308, 128
      %4373 = vxpose.xlu0.c.b16.cont [7/8] %v4309, 128
      %4374 = vxpose.xlu0.c.b16.end [8/8] %v4310, 128
      %v4375 = vpop.trf.xlu0
      %v4376 = vpop.trf.xlu0
      %v4377 = vpop.trf.xlu0
      %v4378 = vpop.trf.xlu0
      %v4379 = vpop.trf.xlu0
      %v4380 = vpop.trf.xlu0
      %v4381 = vpop.trf.xlu0
      %v4382 = vpop.trf.xlu0
      %4383 = vxpose.xlu0.c.b16.start [1/8] %v4311, 128
      %4384 = vxpose.xlu0.c.b16.cont [2/8] %v4312, 128
      %4385 = vxpose.xlu0.c.b16.cont [3/8] %v4313, 128
      %4386 = vxpose.xlu0.c.b16.cont [4/8] %v4314, 128
      %4387 = vxpose.xlu0.c.b16.cont [5/8] %v4315, 128
      %4388 = vxpose.xlu0.c.b16.cont [6/8] %v4316, 128
      %4389 = vxpose.xlu0.c.b16.cont [7/8] %v4317, 128
      %4390 = vxpose.xlu0.c.b16.end [8/8] %v4318, 128
      %v4391 = vpop.trf.xlu0
      %v4392 = vpop.trf.xlu0
      %v4393 = vpop.trf.xlu0
      %v4394 = vpop.trf.xlu0
      %v4395 = vpop.trf.xlu0
      %v4396 = vpop.trf.xlu0
      %v4397 = vpop.trf.xlu0
      %v4398 = vpop.trf.xlu0
      %4399 = vxpose.xlu0.c.b16.start [1/8] %v4319, 128
      %4400 = vxpose.xlu0.c.b16.cont [2/8] %v4320, 128
      %4401 = vxpose.xlu0.c.b16.cont [3/8] %v4321, 128
      %4402 = vxpose.xlu0.c.b16.cont [4/8] %v4322, 128
      %4403 = vxpose.xlu0.c.b16.cont [5/8] %v4323, 128
      %4404 = vxpose.xlu0.c.b16.cont [6/8] %v4324, 128
      %4405 = vxpose.xlu0.c.b16.cont [7/8] %v4325, 128
      %4406 = vxpose.xlu0.c.b16.end [8/8] %v4326, 128
      %v4407 = vpop.trf.xlu0
      %v4408 = vpop.trf.xlu0
      %v4409 = vpop.trf.xlu0
      %v4410 = vpop.trf.xlu0
      %v4411 = vpop.trf.xlu0
      %v4412 = vpop.trf.xlu0
      %v4413 = vpop.trf.xlu0
      %v4414 = vpop.trf.xlu0
      %4415 = vxpose.xlu0.c.b16.start [1/8] %v4327, 128
      %4416 = vxpose.xlu0.c.b16.cont [2/8] %v4328, 128
      %4417 = vxpose.xlu0.c.b16.cont [3/8] %v4329, 128
      %4418 = vxpose.xlu0.c.b16.cont [4/8] %v4330, 128
      %4419 = vxpose.xlu0.c.b16.cont [5/8] %v4331, 128
      %4420 = vxpose.xlu0.c.b16.cont [6/8] %v4332, 128
      %4421 = vxpose.xlu0.c.b16.cont [7/8] %v4333, 128
      %4422 = vxpose.xlu0.c.b16.end [8/8] %v4334, 128
      %v4423 = vpop.trf.xlu0
      %v4424 = vpop.trf.xlu0
      %v4425 = vpop.trf.xlu0
      %v4426 = vpop.trf.xlu0
      %v4427 = vpop.trf.xlu0
      %v4428 = vpop.trf.xlu0
      %v4429 = vpop.trf.xlu0
      %v4430 = vpop.trf.xlu0
      %4431 = vmatprep.subr.bf16.mxu0 0
      %4432 = vmatpush1.bf16.msra.mxu0 %v2473
      %4433 = vmatprep.subr.bf16.mxu0 0
      %4434 = vmatpush1.bf16.msra.mxu0 %v2474
      %4435 = vmatprep.subr.bf16.mxu0 0
      %4436 = vmatpush1.bf16.msra.mxu0 %v2475
      %4437 = vmatprep.subr.bf16.mxu0 0
      %4438 = vmatpush1.bf16.msra.mxu0 %v2476
      %4439 = vmatprep.subr.bf16.mxu0 0
      %4440 = vmatpush1.bf16.msra.mxu0 %v2477
      %4441 = vmatprep.subr.bf16.mxu0 0
      %4442 = vmatpush1.bf16.msra.mxu0 %v2478
      %4443 = vmatprep.subr.bf16.mxu0 0
      %4444 = vmatpush1.bf16.msra.mxu0 %v2479
      %4445 = vmatprep.subr.bf16.mxu0 0
      %4446 = vmatpush1.bf16.msra.mxu0 %v2480
      %4447 = vmatprep.subr.bf16.mxu0 0
      %4448 = vmatpush1.bf16.msra.mxu0 %v2481
      %4449 = vmatprep.subr.bf16.mxu0 0
      %4450 = vmatpush1.bf16.msra.mxu0 %v2482
      %4451 = vmatprep.subr.bf16.mxu0 0
      %4452 = vmatpush1.bf16.msra.mxu0 %v2483
      %4453 = vmatprep.subr.bf16.mxu0 0
      %4454 = vmatpush1.bf16.msra.mxu0 %v2484
      %4455 = vmatprep.subr.bf16.mxu0 0
      %4456 = vmatpush1.bf16.msra.mxu0 %v2485
      %4457 = vmatprep.subr.bf16.mxu0 0
      %4458 = vmatpush1.bf16.msra.mxu0 %v2486
      %4459 = vmatprep.subr.bf16.mxu0 0
      %4460 = vmatpush1.bf16.msra.mxu0 %v2487
      %4461 = vmatprep.subr.bf16.mxu0 0
      %4462 = vmatpush1.bf16.msra.mxu0 %v2488
      %4463 = vmatprep.mubr.bf16.mxu0 %v4391
      %4464 = vmatmul.mubr.bf16.gmra.mrb[0].mxu0 %v4375
      %v4465 = vpop.f32.mrb[0].mxu0
      %v4466 = vadd.f32 0.0, %v4465
      %v4467 = vpop.f32.mrb[0].mxu0
      %v4468 = vpop.f32.mrb[0].mxu0
      %v4469 = vadd.f32 0.0, %v4468
      %v4470 = vpop.f32.mrb[0].mxu0
      %4471 = vmatprep.mubr.bf16.mxu0 %v4392
      %4472 = vmatmul.mubr.bf16.gmra.mrb[0].mxu0 %v4376
      %v4473 = vpop.f32.mrb[0].mxu0
      %v4474 = vadd.f32 0.0, %v4473
      %v4475 = vpop.f32.mrb[0].mxu0
      %v4476 = vpop.f32.mrb[0].mxu0
      %v4477 = vadd.f32 0.0, %v4476
      %v4478 = vpop.f32.mrb[0].mxu0
      %4479 = vmatprep.mubr.bf16.mxu0 %v4393
      %4480 = vmatmul.mubr.bf16.gmra.mrb[0].mxu0 %v4377
      %v4481 = vpop.f32.mrb[0].mxu0
      %v4482 = vadd.f32 0.0, %v4481
      %v4483 = vpop.f32.mrb[0].mxu0
      %v4484 = vpop.f32.mrb[0].mxu0
      %v4485 = vadd.f32 0.0, %v4484
      %v4486 = vpop.f32.mrb[0].mxu0
      %4487 = vmatprep.mubr.bf16.mxu0 %v4394
      %4488 = vmatmul.mubr.bf16.gmra.mrb[0].mxu0 %v4378
      %v4489 = vpop.f32.mrb[0].mxu0
      %v4490 = vadd.f32 0.0, %v4489
      %v4491 = vpop.f32.mrb[0].mxu0
      %v4492 = vpop.f32.mrb[0].mxu0
      %v4493 = vadd.f32 0.0, %v4492
      %v4494 = vpop.f32.mrb[0].mxu0
      %4495 = vmatprep.mubr.bf16.mxu0 %v4395
      %4496 = vmatmul.mubr.bf16.gmra.mrb[0].mxu0 %v4379
      %v4497 = vpop.f32.mrb[0].mxu0
      %v4498 = vadd.f32 0.0, %v4497
      %v4499 = vpop.f32.mrb[0].mxu0
      %v4500 = vpop.f32.mrb[0].mxu0
      %v4501 = vadd.f32 0.0, %v4500
      %v4502 = vpop.f32.mrb[0].mxu0
      %4503 = vmatprep.mubr.bf16.mxu0 %v4396
      %4504 = vmatmul.mubr.bf16.gmra.mrb[0].mxu0 %v4380
      %v4505 = vpop.f32.mrb[0].mxu0
      %v4506 = vadd.f32 0.0, %v4505
      %v4507 = vpop.f32.mrb[0].mxu0
      %v4508 = vpop.f32.mrb[0].mxu0
      %v4509 = vadd.f32 0.0, %v4508
      %v4510 = vpop.f32.mrb[0].mxu0
      %4511 = vmatprep.mubr.bf16.mxu0 %v4397
      %4512 = vmatmul.mubr.bf16.gmra.mrb[0].mxu0 %v4381
      %v4513 = vpop.f32.mrb[0].mxu0
      %v4514 = vadd.f32 0.0, %v4513
      %v4515 = vpop.f32.mrb[0].mxu0
      %v4516 = vpop.f32.mrb[0].mxu0
      %v4517 = vadd.f32 0.0, %v4516
      %v4518 = vpop.f32.mrb[0].mxu0
      %4519 = vmatprep.mubr.bf16.mxu0 %v4398
      %4520 = vmatmul.mubr.bf16.gmra.mrb[0].mxu0 %v4382
      %v4521 = vpop.f32.mrb[0].mxu0
      %v4522 = vadd.f32 0.0, %v4521
      %v4523 = vpop.f32.mrb[0].mxu0
      %v4524 = vpop.f32.mrb[0].mxu0
      %v4525 = vadd.f32 0.0, %v4524
      %v4526 = vpop.f32.mrb[0].mxu0
      %4527 = vdwg.mxu0
      %4528 = vmatprep.subr.bf16.mxu0 0
      %4529 = vmatpush1.bf16.msra.mxu0 %v2489
      %4530 = vmatprep.subr.bf16.mxu0 0
      %4531 = vmatpush1.bf16.msra.mxu0 %v2490
      %4532 = vmatprep.subr.bf16.mxu0 0
      %4533 = vmatpush1.bf16.msra.mxu0 %v2491
      %4534 = vmatprep.subr.bf16.mxu0 0
      %4535 = vmatpush1.bf16.msra.mxu0 %v2492
      %4536 = vmatprep.subr.bf16.mxu0 0
      %4537 = vmatpush1.bf16.msra.mxu0 %v2493
      %4538 = vmatprep.subr.bf16.mxu0 0
      %4539 = vmatpush1.bf16.msra.mxu0 %v2494
      %4540 = vmatprep.subr.bf16.mxu0 0
      %4541 = vmatpush1.bf16.msra.mxu0 %v2495
      %4542 = vmatprep.subr.bf16.mxu0 0
      %4543 = vmatpush1.bf16.msra.mxu0 %v2496
      %4544 = vmatprep.subr.bf16.mxu0 0
      %4545 = vmatpush1.bf16.msra.mxu0 %v2497
      %4546 = vmatprep.subr.bf16.mxu0 0
      %4547 = vmatpush1.bf16.msra.mxu0 %v2498
      %4548 = vmatprep.subr.bf16.mxu0 0
      %4549 = vmatpush1.bf16.msra.mxu0 %v2499
      %4550 = vmatprep.subr.bf16.mxu0 0
      %4551 = vmatpush1.bf16.msra.mxu0 %v2500
      %4552 = vmatprep.subr.bf16.mxu0 0
      %4553 = vmatpush1.bf16.msra.mxu0 %v2501
      %4554 = vmatprep.subr.bf16.mxu0 0
      %4555 = vmatpush1.bf16.msra.mxu0 %v2502
      %4556 = vmatprep.subr.bf16.mxu0 0
      %4557 = vmatpush1.bf16.msra.mxu0 %v2503
      %4558 = vmatprep.subr.bf16.mxu0 0
      %4559 = vmatpush1.bf16.msra.mxu0 %v2504
      %4560 = vmatprep.mubr.bf16.mxu0 %v4423
      %4561 = vmatmul.mubr.bf16.gmra.mrb[0].mxu0 %v4407
      %v4562 = vpop.f32.mrb[0].mxu0
      %v4563 = vadd.f32 %v4466, %v4562
      %v4564 = vpop.f32.mrb[0].mxu0
      %v4565 = vpop.f32.mrb[0].mxu0
      %v4566 = vadd.f32 %v4469, %v4565
      %v4567 = vpop.f32.mrb[0].mxu0
      %4568 = vmatprep.mubr.bf16.mxu0 %v4424
      %4569 = vmatmul.mubr.bf16.gmra.mrb[0].mxu0 %v4408
      %v4570 = vpop.f32.mrb[0].mxu0
      %v4571 = vadd.f32 %v4474, %v4570
      %v4572 = vpop.f32.mrb[0].mxu0
      %v4573 = vpop.f32.mrb[0].mxu0
      %v4574 = vadd.f32 %v4477, %v4573
      %v4575 = vpop.f32.mrb[0].mxu0
      %4576 = vmatprep.mubr.bf16.mxu0 %v4425
      %4577 = vmatmul.mubr.bf16.gmra.mrb[0].mxu0 %v4409
      %v4578 = vpop.f32.mrb[0].mxu0
      %v4579 = vadd.f32 %v4482, %v4578
      %v4580 = vpop.f32.mrb[0].mxu0
      %v4581 = vpop.f32.mrb[0].mxu0
      %v4582 = vadd.f32 %v4485, %v4581
      %v4583 = vpop.f32.mrb[0].mxu0
      %4584 = vmatprep.mubr.bf16.mxu0 %v4426
      %4585 = vmatmul.mubr.bf16.gmra.mrb[0].mxu0 %v4410
      %v4586 = vpop.f32.mrb[0].mxu0
      %v4587 = vadd.f32 %v4490, %v4586
      %v4588 = vpop.f32.mrb[0].mxu0
      %v4589 = vpop.f32.mrb[0].mxu0
      %v4590 = vadd.f32 %v4493, %v4589
      %v4591 = vpop.f32.mrb[0].mxu0
      %4592 = vmatprep.mubr.bf16.mxu0 %v4427
      %4593 = vmatmul.mubr.bf16.gmra.mrb[0].mxu0 %v4411
      %v4594 = vpop.f32.mrb[0].mxu0
      %v4595 = vadd.f32 %v4498, %v4594
      %v4596 = vpop.f32.mrb[0].mxu0
      %v4597 = vpop.f32.mrb[0].mxu0
      %v4598 = vadd.f32 %v4501, %v4597
      %v4599 = vpop.f32.mrb[0].mxu0
      %4600 = vmatprep.mubr.bf16.mxu0 %v4428
      %4601 = vmatmul.mubr.bf16.gmra.mrb[0].mxu0 %v4412
      %v4602 = vpop.f32.mrb[0].mxu0
      %v4603 = vadd.f32 %v4506, %v4602
      %v4604 = vpop.f32.mrb[0].mxu0
      %v4605 = vpop.f32.mrb[0].mxu0
      %v4606 = vadd.f32 %v4509, %v4605
      %v4607 = vpop.f32.mrb[0].mxu0
      %4608 = vmatprep.mubr.bf16.mxu0 %v4429
      %4609 = vmatmul.mubr.bf16.gmra.mrb[0].mxu0 %v4413
      %v4610 = vpop.f32.mrb[0].mxu0
      %v4611 = vadd.f32 %v4514, %v4610
      %v4612 = vpop.f32.mrb[0].mxu0
      %v4613 = vpop.f32.mrb[0].mxu0
      %v4614 = vadd.f32 %v4517, %v4613
      %v4615 = vpop.f32.mrb[0].mxu0
      %4616 = vmatprep.mubr.bf16.mxu0 %v4430
      %4617 = vmatmul.mubr.bf16.gmra.mrb[0].mxu0 %v4414
      %v4618 = vpop.f32.mrb[0].mxu0
      %v4619 = vadd.f32 %v4522, %v4618
      %v4620 = vpop.f32.mrb[0].mxu0
      %v4621 = vpop.f32.mrb[0].mxu0
      %v4622 = vadd.f32 %v4525, %v4621
      %v4623 = vpop.f32.mrb[0].mxu0
      %4624 = vdwg.mxu0
      %v4625 = vadd.f32 %v4095, %v4563
      %v4626 = vadd.f32 %v4096, %v4566
      %v4627 = vadd.f32 %v4097, %v4571
      %v4628 = vadd.f32 %v4098, %v4574
      %v4629 = vadd.f32 %v4099, %v4579
      %v4630 = vadd.f32 %v4100, %v4582
      %v4631 = vadd.f32 %v4101, %v4587
      %v4632 = vadd.f32 %v4102, %v4590
      %v4633 = vadd.f32 %v4103, %v4595
      %v4634 = vadd.f32 %v4104, %v4598
      %v4635 = vadd.f32 %v4105, %v4603
      %v4636 = vadd.f32 %v4106, %v4606
      %v4637 = vadd.f32 %v4107, %v4611
      %v4638 = vadd.f32 %v4108, %v4614
      %v4639 = vadd.f32 %v4109, %v4619
      %v4640 = vadd.f32 %v4110, %v4622
      %4641 = vst [vmem:[%s4094] sm:$0xff] %v4625
      %4642 = vst [vmem:[%s4094 + $0x8] sm:$0xff] %v4626
      %4643 = vst [vmem:[%s4094 + $0x10] sm:$0xff] %v4627
      %4644 = vst [vmem:[%s4094 + $0x18] sm:$0xff] %v4628
      %4645 = vst [vmem:[%s4094 + $0x20] sm:$0xff] %v4629
      %4646 = vst [vmem:[%s4094 + $0x28] sm:$0xff] %v4630
      %4647 = vst [vmem:[%s4094 + $0x30] sm:$0xff] %v4631
      %4648 = vst [vmem:[%s4094 + $0x38] sm:$0xff] %v4632
      %4649 = vst [vmem:[%s4094 + $0x40] sm:$0xff] %v4633
      %4650 = vst [vmem:[%s4094 + $0x48] sm:$0xff] %v4634
      %4651 = vst [vmem:[%s4094 + $0x50] sm:$0xff] %v4635
      %4652 = vst [vmem:[%s4094 + $0x58] sm:$0xff] %v4636
      %4653 = vst [vmem:[%s4094 + $0x60] sm:$0xff] %v4637
      %4654 = vst [vmem:[%s4094 + $0x68] sm:$0xff] %v4638
      %4655 = vst [vmem:[%s4094 + $0x70] sm:$0xff] %v4639
      %4656 = vst [vmem:[%s4094 + $0x78] sm:$0xff] %v4640
      // Predicated region
      $region37: #{mcr2_binary_classwise_forward.1} parent=31 // pred_check
        %p4657 = pneg %p291
      $region38: #{mcr2_binary_classwise_forward.1} parent=31 // pred_check_branch
        %4659 = sbr.rel (%p4657) target = $region40
      $region39: #{mcr2_binary_classwise_forward.1} parent=31 // pred_region
        %v4660 = vld [vmem:[#allocation2] sm:$0xff]
        %v4661 = vld [vmem:[#allocation2 + $0x8] sm:$0xff]
        %v4662 = vld [vmem:[#allocation2 + $0x10] sm:$0xff]
        %v4663 = vld [vmem:[#allocation2 + $0x18] sm:$0xff]
        %v4664 = vld [vmem:[#allocation2 + $0x20] sm:$0xff]
        %v4665 = vld [vmem:[#allocation2 + $0x28] sm:$0xff]
        %v4666 = vld [vmem:[#allocation2 + $0x30] sm:$0xff]
        %v4667 = vld [vmem:[#allocation2 + $0x38] sm:$0xff]
        %v4668 = vld [vmem:[#allocation2 + $0x40] sm:$0xff]
        %v4669 = vld [vmem:[#allocation2 + $0x48] sm:$0xff]
        %v4670 = vld [vmem:[#allocation2 + $0x50] sm:$0xff]
        %v4671 = vld [vmem:[#allocation2 + $0x58] sm:$0xff]
        %v4672 = vld [vmem:[#allocation2 + $0x60] sm:$0xff]
        %v4673 = vld [vmem:[#allocation2 + $0x68] sm:$0xff]
        %v4674 = vld [vmem:[#allocation2 + $0x70] sm:$0xff]
        %v4675 = vld [vmem:[#allocation2 + $0x78] sm:$0xff]
        %v4676 = vld [vmem:[#allocation2 + $0x80] sm:$0xff]
        %v4677 = vld [vmem:[#allocation2 + $0x88] sm:$0xff]
        %v4678 = vld [vmem:[#allocation2 + $0x90] sm:$0xff]
        %v4679 = vld [vmem:[#allocation2 + $0x98] sm:$0xff]
        %v4680 = vld [vmem:[#allocation2 + $0xa0] sm:$0xff]
        %v4681 = vld [vmem:[#allocation2 + $0xa8] sm:$0xff]
        %v4682 = vld [vmem:[#allocation2 + $0xb0] sm:$0xff]
        %v4683 = vld [vmem:[#allocation2 + $0xb8] sm:$0xff]
        %v4684 = vld [vmem:[#allocation2 + $0xc0] sm:$0xff]
        %v4685 = vld [vmem:[#allocation2 + $0xc8] sm:$0xff]
        %v4686 = vld [vmem:[#allocation2 + $0xd0] sm:$0xff]
        %v4687 = vld [vmem:[#allocation2 + $0xd8] sm:$0xff]
        %v4688 = vld [vmem:[#allocation2 + $0xe0] sm:$0xff]
        %v4689 = vld [vmem:[#allocation2 + $0xe8] sm:$0xff]
        %v4690 = vld [vmem:[#allocation2 + $0xf0] sm:$0xff]
        %v4691 = vld [vmem:[#allocation2 + $0xf8] sm:$0xff]
        %4692 = vst [vmem:[%s284] sm:$0xff] %v4660
        %4693 = vst [vmem:[%s284 + $0x8] sm:$0xff] %v4661
        %4694 = vst [vmem:[%s284 + $0x10] sm:$0xff] %v4662
        %4695 = vst [vmem:[%s284 + $0x18] sm:$0xff] %v4663
        %4696 = vst [vmem:[%s284 + $0x20] sm:$0xff] %v4664
        %4697 = vst [vmem:[%s284 + $0x28] sm:$0xff] %v4665
        %4698 = vst [vmem:[%s284 + $0x30] sm:$0xff] %v4666
        %4699 = vst [vmem:[%s284 + $0x38] sm:$0xff] %v4667
        %4700 = vst [vmem:[%s284 + $0x40] sm:$0xff] %v4668
        %4701 = vst [vmem:[%s284 + $0x48] sm:$0xff] %v4669
        %4702 = vst [vmem:[%s284 + $0x50] sm:$0xff] %v4670
        %4703 = vst [vmem:[%s284 + $0x58] sm:$0xff] %v4671
        %4704 = vst [vmem:[%s284 + $0x60] sm:$0xff] %v4672
        %4705 = vst [vmem:[%s284 + $0x68] sm:$0xff] %v4673
        %4706 = vst [vmem:[%s284 + $0x70] sm:$0xff] %v4674
        %4707 = vst [vmem:[%s284 + $0x78] sm:$0xff] %v4675
        %4708 = vst [vmem:[%s284 + $0x80] sm:$0xff] %v4676
        %4709 = vst [vmem:[%s284 + $0x88] sm:$0xff] %v4677
        %4710 = vst [vmem:[%s284 + $0x90] sm:$0xff] %v4678
        %4711 = vst [vmem:[%s284 + $0x98] sm:$0xff] %v4679
        %4712 = vst [vmem:[%s284 + $0xa0] sm:$0xff] %v4680
        %4713 = vst [vmem:[%s284 + $0xa8] sm:$0xff] %v4681
        %4714 = vst [vmem:[%s284 + $0xb0] sm:$0xff] %v4682
        %4715 = vst [vmem:[%s284 + $0xb8] sm:$0xff] %v4683
        %4716 = vst [vmem:[%s284 + $0xc0] sm:$0xff] %v4684
        %4717 = vst [vmem:[%s284 + $0xc8] sm:$0xff] %v4685
        %4718 = vst [vmem:[%s284 + $0xd0] sm:$0xff] %v4686
        %4719 = vst [vmem:[%s284 + $0xd8] sm:$0xff] %v4687
        %4720 = vst [vmem:[%s284 + $0xe0] sm:$0xff] %v4688
        %4721 = vst [vmem:[%s284 + $0xe8] sm:$0xff] %v4689
        %4722 = vst [vmem:[%s284 + $0xf0] sm:$0xff] %v4690
        %4723 = vst [vmem:[%s284 + $0xf8] sm:$0xff] %v4691
        %v4724 = vld [vmem:[#allocation3] sm:$0xff]
        %v4725 = vld [vmem:[#allocation3 + $0x8] sm:$0xff]
        %v4726 = vld [vmem:[#allocation3 + $0x10] sm:$0xff]
        %v4727 = vld [vmem:[#allocation3 + $0x18] sm:$0xff]
        %v4728 = vld [vmem:[#allocation3 + $0x20] sm:$0xff]
        %v4729 = vld [vmem:[#allocation3 + $0x28] sm:$0xff]
        %v4730 = vld [vmem:[#allocation3 + $0x30] sm:$0xff]
        %v4731 = vld [vmem:[#allocation3 + $0x38] sm:$0xff]
        %v4732 = vld [vmem:[#allocation3 + $0x40] sm:$0xff]
        %v4733 = vld [vmem:[#allocation3 + $0x48] sm:$0xff]
        %v4734 = vld [vmem:[#allocation3 + $0x50] sm:$0xff]
        %v4735 = vld [vmem:[#allocation3 + $0x58] sm:$0xff]
        %v4736 = vld [vmem:[#allocation3 + $0x60] sm:$0xff]
        %v4737 = vld [vmem:[#allocation3 + $0x68] sm:$0xff]
        %v4738 = vld [vmem:[#allocation3 + $0x70] sm:$0xff]
        %v4739 = vld [vmem:[#allocation3 + $0x78] sm:$0xff]
        %v4740 = vld [vmem:[#allocation3 + $0x80] sm:$0xff]
        %v4741 = vld [vmem:[#allocation3 + $0x88] sm:$0xff]
        %v4742 = vld [vmem:[#allocation3 + $0x90] sm:$0xff]
        %v4743 = vld [vmem:[#allocation3 + $0x98] sm:$0xff]
        %v4744 = vld [vmem:[#allocation3 + $0xa0] sm:$0xff]
        %v4745 = vld [vmem:[#allocation3 + $0xa8] sm:$0xff]
        %v4746 = vld [vmem:[#allocation3 + $0xb0] sm:$0xff]
        %v4747 = vld [vmem:[#allocation3 + $0xb8] sm:$0xff]
        %v4748 = vld [vmem:[#allocation3 + $0xc0] sm:$0xff]
        %v4749 = vld [vmem:[#allocation3 + $0xc8] sm:$0xff]
        %v4750 = vld [vmem:[#allocation3 + $0xd0] sm:$0xff]
        %v4751 = vld [vmem:[#allocation3 + $0xd8] sm:$0xff]
        %v4752 = vld [vmem:[#allocation3 + $0xe0] sm:$0xff]
        %v4753 = vld [vmem:[#allocation3 + $0xe8] sm:$0xff]
        %v4754 = vld [vmem:[#allocation3 + $0xf0] sm:$0xff]
        %v4755 = vld [vmem:[#allocation3 + $0xf8] sm:$0xff]
        %4756 = vst [vmem:[%s289] sm:$0xff] %v4724
        %4757 = vst [vmem:[%s289 + $0x8] sm:$0xff] %v4725
        %4758 = vst [vmem:[%s289 + $0x10] sm:$0xff] %v4726
        %4759 = vst [vmem:[%s289 + $0x18] sm:$0xff] %v4727
        %4760 = vst [vmem:[%s289 + $0x20] sm:$0xff] %v4728
        %4761 = vst [vmem:[%s289 + $0x28] sm:$0xff] %v4729
        %4762 = vst [vmem:[%s289 + $0x30] sm:$0xff] %v4730
        %4763 = vst [vmem:[%s289 + $0x38] sm:$0xff] %v4731
        %4764 = vst [vmem:[%s289 + $0x40] sm:$0xff] %v4732
        %4765 = vst [vmem:[%s289 + $0x48] sm:$0xff] %v4733
        %4766 = vst [vmem:[%s289 + $0x50] sm:$0xff] %v4734
        %4767 = vst [vmem:[%s289 + $0x58] sm:$0xff] %v4735
        %4768 = vst [vmem:[%s289 + $0x60] sm:$0xff] %v4736
        %4769 = vst [vmem:[%s289 + $0x68] sm:$0xff] %v4737
        %4770 = vst [vmem:[%s289 + $0x70] sm:$0xff] %v4738
        %4771 = vst [vmem:[%s289 + $0x78] sm:$0xff] %v4739
        %4772 = vst [vmem:[%s289 + $0x80] sm:$0xff] %v4740
        %4773 = vst [vmem:[%s289 + $0x88] sm:$0xff] %v4741
        %4774 = vst [vmem:[%s289 + $0x90] sm:$0xff] %v4742
        %4775 = vst [vmem:[%s289 + $0x98] sm:$0xff] %v4743
        %4776 = vst [vmem:[%s289 + $0xa0] sm:$0xff] %v4744
        %4777 = vst [vmem:[%s289 + $0xa8] sm:$0xff] %v4745
        %4778 = vst [vmem:[%s289 + $0xb0] sm:$0xff] %v4746
        %4779 = vst [vmem:[%s289 + $0xb8] sm:$0xff] %v4747
        %4780 = vst [vmem:[%s289 + $0xc0] sm:$0xff] %v4748
        %4781 = vst [vmem:[%s289 + $0xc8] sm:$0xff] %v4749
        %4782 = vst [vmem:[%s289 + $0xd0] sm:$0xff] %v4750
        %4783 = vst [vmem:[%s289 + $0xd8] sm:$0xff] %v4751
        %4784 = vst [vmem:[%s289 + $0xe0] sm:$0xff] %v4752
        %4785 = vst [vmem:[%s289 + $0xe8] sm:$0xff] %v4753
        %4786 = vst [vmem:[%s289 + $0xf0] sm:$0xff] %v4754
        %4787 = vst [vmem:[%s289 + $0xf8] sm:$0xff] %v4755
      $region40: #{mcr2_binary_classwise_forward.1} parent=31 // pred_fallthru
        _
      %p4788 = scmp.lt.s32.totalorder %s20, 1
      %s4789 = scalar_select %p4788, %s20, 1
      %s4790 = smul.addr %s4789, 32
      %s4791 = smul.addr %s4790, 8
      %s4792 = scalar_lea.vmem %s3, %s4791
      %p4793 = scmp.lt.s32.totalorder %s20, 1
      %s4794 = scalar_select %p4793, %s20, 1
      %s4795 = smul.addr %s4794, 32
      %s4796 = smul.addr %s4795, 8
      %s4797 = scalar_lea.vmem %s4, %s4796
      // Predicated region
      $region41: #{mcr2_binary_classwise_forward.1} parent=31 // pred_check
        %p4798 = pneg %p130
      $region42: #{mcr2_binary_classwise_forward.1} parent=31 // pred_check_branch
        %4800 = sbr.rel (%p4798) target = $region44
      $region43: #{mcr2_binary_classwise_forward.1} parent=31 // pred_region
        _
      $region44: #{mcr2_binary_classwise_forward.1} parent=31 // pred_fallthru
        _
      // Predicated region
      $region45: #{mcr2_binary_classwise_forward.1} parent=31 // pred_check
        %p4801 = pneg %p156
      $region46: #{mcr2_binary_classwise_forward.1} parent=31 // pred_check_branch
        %4803 = sbr.rel (%p4801) target = $region48
      $region47: #{mcr2_binary_classwise_forward.1} parent=31 // pred_region
        _
      $region48: #{mcr2_binary_classwise_forward.1} parent=31 // pred_fallthru
        _
    $region32: #{mcr2_binary_classwise_forward.1} parent=5 // pred_fallthru
      _
    %p4804 = scmp.le.s32.totalorder 2, %s11
    // Predicated region
    $region49: #{mcr2_binary_classwise_forward.1} parent=5 // pred_check
      %p4805 = pneg %p4804
    $region50: #{mcr2_binary_classwise_forward.1} parent=5 // pred_check_branch
      %4807 = sbr.rel (%p4805) target = $region52
    $region51: #{mcr2_binary_classwise_forward.1} parent=5 // pred_region
      %s4808 = ssub.s32 %s11, 2
      // Predicated region
      $region53: #{mcr2_binary_classwise_forward.1} parent=51 // pred_check
        %p4809 = pneg %p136
      $region54: #{mcr2_binary_classwise_forward.1} parent=51 // pred_check_branch
        %4811 = sbr.rel (%p4809) target = $region56
      $region55: #{mcr2_binary_classwise_forward.1} parent=51 // pred_region
        %p4812 = scmp.lt.s32.totalorder %s22, 1
        %s4813 = scalar_select %p4812, %s22, 1
        %s4814 = smul.addr %s4813, 32
        %s4815 = smul.addr %s4814, 8
        %s4816 = scalar_lea.vmem %s3, %s4815
      $region56: #{mcr2_binary_classwise_forward.1} parent=51 // pred_fallthru
        _
      // Predicated region
      $region57: #{mcr2_binary_classwise_forward.1} parent=51 // pred_check
        %p4817 = pneg %p162
      $region58: #{mcr2_binary_classwise_forward.1} parent=51 // pred_check_branch
        %4819 = sbr.rel (%p4817) target = $region60
      $region59: #{mcr2_binary_classwise_forward.1} parent=51 // pred_region
        %p4820 = scmp.lt.s32.totalorder %s22, 1
        %s4821 = scalar_select %p4820, %s22, 1
        %s4822 = smul.addr %s4821, 32
        %s4823 = smul.addr %s4822, 8
        %s4824 = scalar_lea.vmem %s4, %s4823
      $region60: #{mcr2_binary_classwise_forward.1} parent=51 // pred_fallthru
        _
    $region52: #{mcr2_binary_classwise_forward.1} parent=5 // pred_fallthru
      _
  $region6: #{mcr2_binary_classwise_forward.1} parent=0 // loop_footer
    %s15 = sadd.s32 1, %s11
  $region7: #{mcr2_binary_classwise_forward.1} parent=0 // loop_footer_branch
    %10 = sbr.rel target = $region3
  $region8: #{mcr2_binary_classwise_forward.1} parent=0 // loop_exit
    _

</llo_original>
